<compile_context>
chip_gen: v7x
topology: tpu7x:2x2x1
jax: 0.10.0
libtpu: 0.0.40
codegen_flags: <defaults>
</compile_context>

<pallas_src>
import functools

import jax
import jax.numpy as jnp
from jax.experimental import pallas as pl
from jax.experimental.pallas import tpu as pltpu


_LANE_TILE = 1024                      # target lane tile (columns of M per step)
_VMEM_LIMIT = 32 * 1024 * 1024         # explicit scoped-VMEM budget (all gens)


def _round_up(x, m):
    return (x + m - 1) // m * m


def _plan_m(m):
    """Pick (padded M, lane tile). M is always padded to a tile multiple
    (multiple of 128 lanes) - never fall back to a giant full-M block."""
    if m <= _LANE_TILE:
        mp = _round_up(m, 128)
        return mp, mp
    return _round_up(m, _LANE_TILE), _LANE_TILE


# ----------------------------- Pallas kernels -----------------------------

def _conv_mm_kernel(p_ref, w_ref, b_ref, o_ref, *rest, activation, with_stats):
    """out[O, tm] = W[O, K] @ patches[K, tm] + b  (bf16 x bf16 -> f32 acc).

    Optional fused epilogue: tanh, and per-output-channel sum / sum-of-squares
    (BatchNorm batch statistics) accumulated in VMEM scratch, written once at
    the last grid step."""
    acc = jnp.dot(w_ref[...], p_ref[...], preferred_element_type=jnp.float32)
    acc = acc + b_ref[...]                               # [O, tm] + [O, 1]

    if with_stats:
        sum_out, sq_out, sum_acc, sq_acc = rest

        @pl.when(pl.program_id(0) == 0)
        def _():
            sum_acc[...] = jnp.zeros_like(sum_acc)
            sq_acc[...] = jnp.zeros_like(sq_acc)

        sum_acc[...] += jnp.sum(acc, axis=1, keepdims=True)
        sq_acc[...] += jnp.sum(acc * acc, axis=1, keepdims=True)

        @pl.when(pl.program_id(0) == pl.num_programs(0) - 1)
        def _():
            sum_out[...] = sum_acc[...]
            sq_out[...] = sq_acc[...]

    if activation == "tanh":
        acc = jnp.tanh(acc)
    o_ref[...] = acc.astype(o_ref.dtype)


def _affine_kernel(*refs, relu, has_res):
    """Lane-dense elementwise  y = scale*x + shift (+ residual) (+ ReLU)."""
    if has_res:
        x_ref, s_ref, t_ref, r_ref, o_ref = refs
    else:
        x_ref, s_ref, t_ref, o_ref = refs
    y = x_ref[...].astype(jnp.float32) * s_ref[...] + t_ref[...]
    if has_res:
        y = y + r_ref[...].astype(jnp.float32)
    if relu:
        y = jnp.maximum(y, 0.0)
    o_ref[...] = y.astype(o_ref.dtype)


# ----------------------------- kernel wrappers -----------------------------

def conv_matmul(patches, wmat, bias, *, tm, activation=None, with_stats=False,
                out_dtype=jnp.bfloat16):
    """patches: [K, Mp] bf16, wmat: [O, K] bf16, bias: [O] f32 -> tuple."""
    k, mp = patches.shape
    o = wmat.shape[0]
    grid = (mp // tm,)

    out_shape = [jax.ShapeDtypeStruct((o, mp), out_dtype)]
    out_specs = [pl.BlockSpec((o, tm), lambda i: (0, i))]
    scratch = []
    if with_stats:
        out_shape += [jax.ShapeDtypeStruct((o, 1), jnp.float32),
                      jax.ShapeDtypeStruct((o, 1), jnp.float32)]
        out_specs += [pl.BlockSpec((o, 1), lambda i: (0, 0)),
                      pl.BlockSpec((o, 1), lambda i: (0, 0))]
        scratch = [pltpu.VMEM((o, 1), jnp.float32),
                   pltpu.VMEM((o, 1), jnp.float32)]

    kern = functools.partial(_conv_mm_kernel, activation=activation,
                             with_stats=with_stats)
    return pl.pallas_call(
        kern,
        out_shape=tuple(out_shape),
        grid=grid,
        in_specs=[
            pl.BlockSpec((k, tm), lambda i: (0, i)),   # patch tile (lane-dense)
            pl.BlockSpec((o, k), lambda i: (0, 0)),    # full weight matrix
            pl.BlockSpec((o, 1), lambda i: (0, 0)),    # bias column
        ],
        out_specs=tuple(out_specs),
        scratch_shapes=scratch,
        compiler_params=pltpu.CompilerParams(
            # stats accumulation needs a sequential M axis; otherwise parallel
            # so megacore parts (v7x) can split the lane tiles.
            dimension_semantics=("arbitrary",) if with_stats else ("parallel",),
            vmem_limit_bytes=_VMEM_LIMIT),
    )(patches, wmat, bias.reshape(o, 1).astype(jnp.float32))


def bn_apply(x, scale, shift, *, relu=False, residual=None,
             out_dtype=jnp.bfloat16):
    """x: [C, N, H, W]. Pallas lane-dense elementwise scale*x + shift
    (+ residual) (+ ReLU). Used only where the post-BN map must be
    materialized (residual carry / block tail)."""
    c, n, h, w = x.shape
    m = n * h * w
    mp, tm = _plan_m(m)
    x2 = x.reshape(c, m)
    if mp != m:
        x2 = jnp.pad(x2, ((0, 0), (0, mp - m)))
    args = [x2,
            scale.reshape(c, 1).astype(jnp.float32),
            shift.reshape(c, 1).astype(jnp.float32)]
    in_specs = [pl.BlockSpec((c, tm), lambda i: (0, i)),
                pl.BlockSpec((c, 1), lambda i: (0, 0)),
                pl.BlockSpec((c, 1), lambda i: (0, 0))]
    if residual is not None:
        r2 = residual.reshape(c, m)
        if mp != m:
            r2 = jnp.pad(r2, ((0, 0), (0, mp - m)))
        args.append(r2)
        in_specs.append(pl.BlockSpec((c, tm), lambda i: (0, i)))

    kern = functools.partial(_affine_kernel, relu=relu,
                             has_res=residual is not None)
    y = pl.pallas_call(
        kern,
        out_shape=jax.ShapeDtypeStruct((c, mp), out_dtype),
        grid=(mp // tm,),
        in_specs=in_specs,
        out_specs=pl.BlockSpec((c, tm), lambda i: (0, i)),
        compiler_params=pltpu.CompilerParams(
            dimension_semantics=("parallel",),
            vmem_limit_bytes=_VMEM_LIMIT),
    )(*args)
    return y[:, :m].reshape(c, n, h, w)


# ------------------------------ glue (plain JAX) ------------------------------

def _im2col_cm(x, k, stride, pad):
    """x: [C, N, H, W] -> patches [k*k*C, N*Ho*Wo]  (K ordering: kh, kw, c)."""
    c, n, h, w = x.shape
    xp = jnp.pad(x, ((0, 0), (0, 0), (pad, pad), (pad, pad)))
    ho = (h + 2 * pad - k) // stride + 1
    wo = (w + 2 * pad - k) // stride + 1
    taps = []
    for di in range(k):
        for dj in range(k):
            taps.append(xp[:, :, di:di + stride * ho:stride,
                           dj:dj + stride * wo:stride])
    patches = jnp.stack(taps, axis=0)          # [k*k, C, N, Ho, Wo]
    return patches.reshape(k * k * c, n * ho * wo), (n, ho, wo)


def conv2d(x, w, b, stride, pad, *, activation=None, with_stats=False,
           out_dtype=jnp.bfloat16):
    """x: [C, N, H, W] channel-major. w: PyTorch layout [O, I, kH, kW].
    Returns (y [O, N, Ho, Wo], stats) with stats = (mean, var) of the conv
    output per channel (batch statistics) if with_stats else None."""
    o, _, kh, _ = w.shape
    patches, (n, ho, wo) = _im2col_cm(x, kh, stride, pad)
    kdim, m = patches.shape
    mp, tm = _plan_m(m)
    if mp != m:
        patches = jnp.pad(patches, ((0, 0), (0, mp - m)))
    patches = patches.astype(jnp.bfloat16)
    wmat = jnp.transpose(w, (0, 2, 3, 1)).reshape(o, kdim).astype(jnp.bfloat16)
    b = b.astype(jnp.float32)

    res = conv_matmul(patches, wmat, b, tm=tm, activation=activation,
                      with_stats=with_stats, out_dtype=out_dtype)
    if with_stats:
        y, ssum, ssq = res
        npad = mp - m
        if npad:   # padded patch columns are exactly zero -> their output == b
            ssum = ssum - npad * b.reshape(o, 1)
            ssq = ssq - npad * (b.reshape(o, 1) ** 2)
        mean = ssum[:, 0] / m
        var = jnp.maximum(ssq[:, 0] / m - mean * mean, 0.0)  # clamp cancellation
        stats = (mean, var)
    else:
        (y,) = res
        stats = None
    y = y[:, :m].reshape(o, n, ho, wo)
    return y, stats


def conv_transpose2d(x, w, b, stride, pad, out_pad, *, with_stats=False):
    """ConvTranspose2d as zero-dilation + flipped-weight conv (channel-major).
    x: [C, N, H, W]. w: PyTorch layout [I, O, kH, kW]."""
    # TODO(synk): sub-pixel (stride^2 sub-kernel) decomposition to avoid moving
    # and multiplying the 75%-zero dilated input on the stride-2 stages.
    _, _, kh, _ = w.shape
    c, n, h, wdt = x.shape
    if stride > 1:
        xd = jnp.zeros((c, n, (h - 1) * stride + 1, (wdt - 1) * stride + 1),
                       x.dtype)
        xd = xd.at[:, :, ::stride, ::stride].set(x)
    else:
        xd = x
    p0 = kh - 1 - pad
    p1 = kh - 1 - pad + out_pad
    xp = jnp.pad(xd, ((0, 0), (0, 0), (p0, p1), (p0, p1)))
    w_eq = jnp.flip(w, axis=(2, 3)).transpose(1, 0, 2, 3)   # -> [O, I, kh, kw]
    return conv2d(xp, w_eq, b, 1, 0, with_stats=with_stats)


def bn_scale_shift(stats, gamma, beta, eps=1e-5):
    mean, var = stats
    scale = gamma / jnp.sqrt(var + eps)
    shift = beta - mean * scale
    return scale, shift


def bn_fold_lazy(x, scale, shift, *, relu=True):
    """Per-channel affine (+ReLU) applied lazily in plain JAX so XLA fuses it
    into the next conv's im2col gather (no standalone HBM pass)."""
    y = (x.astype(jnp.float32) * scale[:, None, None, None]
         + shift[:, None, None, None])
    if relu:
        y = jnp.maximum(y, 0.0)
    return y.astype(jnp.bfloat16)


# ------------------------------ parameters ------------------------------

def init_params(key, in_channels, out_channels, ngf=8, nb=2):
    keys = iter(jax.random.split(key, 10 + 2 * nb))

    def conv_p(o, i, k):
        return {"w": 0.02 * jax.random.normal(next(keys), (o, i, k, k), jnp.float32),
                "b": jnp.zeros((o,), jnp.float32)}

    def convT_p(i, o, k):
        return {"w": 0.02 * jax.random.normal(next(keys), (i, o, k, k), jnp.float32),
                "b": jnp.zeros((o,), jnp.float32)}

    def bn_p(c):
        return {"gamma": jnp.ones((c,), jnp.float32),
                "beta": jnp.zeros((c,), jnp.float32)}

    p = {
        "d1": conv_p(ngf, in_channels, 7), "dbn1": bn_p(ngf),
        "d2": conv_p(ngf * 2, ngf, 3),
        "d3": conv_p(ngf * 2, ngf * 2, 3), "dbn2": bn_p(ngf * 2),
        "d4": conv_p(ngf * 4, ngf * 2, 3),
        "d5": conv_p(ngf * 4, ngf * 4, 3), "dbn3": bn_p(ngf * 4),
        "res": [],
        "u1": convT_p(ngf * 4, ngf * 2, 3),
        "u2": convT_p(ngf * 2, ngf * 2, 3), "ubn1": bn_p(ngf * 2),
        "u3": convT_p(ngf * 2, ngf, 3),
        "u4": convT_p(ngf, ngf, 3), "ubn2": bn_p(ngf),
        "u5": conv_p(out_channels, ngf, 7),
    }
    for _ in range(nb):
        p["res"].append({
            "c1": conv_p(ngf * 4, ngf * 4, 3), "bn1": bn_p(ngf * 4),
            "c2": conv_p(ngf * 4, ngf * 4, 3), "bn2": bn_p(ngf * 4),
        })
    return p


# ------------------------------ forward ------------------------------

def generator_forward(params, x_nchw):
    p = params
    x = jnp.transpose(x_nchw, (1, 0, 2, 3)).astype(jnp.bfloat16)  # -> [C,N,H,W]

    # ---- down_convs ----
    y, st = conv2d(x, p["d1"]["w"], p["d1"]["b"], 1, 3, with_stats=True)
    x = bn_fold_lazy(y, *bn_scale_shift(st, p["dbn1"]["gamma"], p["dbn1"]["beta"]))
    y, _ = conv2d(x, p["d2"]["w"], p["d2"]["b"], 2, 1)
    y, st = conv2d(y, p["d3"]["w"], p["d3"]["b"], 1, 1, with_stats=True)
    x = bn_fold_lazy(y, *bn_scale_shift(st, p["dbn2"]["gamma"], p["dbn2"]["beta"]))
    y, _ = conv2d(x, p["d4"]["w"], p["d4"]["b"], 2, 1)
    y, st = conv2d(y, p["d5"]["w"], p["d5"]["b"], 1, 1, with_stats=True)
    s, t = bn_scale_shift(st, p["dbn3"]["gamma"], p["dbn3"]["beta"])
    # materialized (Pallas): this map is both the first residual carry and the
    # first resnet conv's input.
    x = bn_apply(y, s, t, relu=True)

    # ---- resnet blocks: conv-BN-ReLU-conv-BN + identity skip ----
    for blk in p["res"]:
        y1, st1 = conv2d(x, blk["c1"]["w"], blk["c1"]["b"], 1, 1, with_stats=True)
        h = bn_fold_lazy(y1, *bn_scale_shift(st1, blk["bn1"]["gamma"],
                                             blk["bn1"]["beta"]))
        y2, st2 = conv2d(h, blk["c2"]["w"], blk["c2"]["b"], 1, 1, with_stats=True)
        s2, t2 = bn_scale_shift(st2, blk["bn2"]["gamma"], blk["bn2"]["beta"])
        x = bn_apply(y2, s2, t2, relu=False, residual=x)   # x + BN(conv(...))

    # ---- up_convs ----
    y, _ = conv_transpose2d(x, p["u1"]["w"], p["u1"]["b"], 2, 1, 1)
    y, st = conv_transpose2d(y, p["u2"]["w"], p["u2"]["b"], 1, 1, 0, with_stats=True)
    x = bn_fold_lazy(y, *bn_scale_shift(st, p["ubn1"]["gamma"], p["ubn1"]["beta"]))
    y, _ = conv_transpose2d(x, p["u3"]["w"], p["u3"]["b"], 2, 1, 1)
    y, st = conv_transpose2d(y, p["u4"]["w"], p["u4"]["b"], 1, 1, 0, with_stats=True)
    x = bn_fold_lazy(y, *bn_scale_shift(st, p["ubn2"]["gamma"], p["ubn2"]["beta"]))
    y, _ = conv2d(x, p["u5"]["w"], p["u5"]["b"], 1, 3, activation="tanh",
                  out_dtype=jnp.float32)

    return jnp.transpose(y, (1, 0, 2, 3))  # [C,N,H,W] -> NCHW


# ------------------------------ main ------------------------------

if __name__ == "__main__":
    key = jax.random.PRNGKey(0)
    k_param, k_x = jax.random.split(key)

    in_channels, out_channels, ngf, nb = 3, 3, 8, 2  # small test config
    batch, H, W = 2, 16, 16

    params = init_params(k_param, in_channels, out_channels, ngf=ngf, nb=nb)
    x = jax.random.normal(k_x, (batch, in_channels, H, W), jnp.float32)

    fwd = jax.jit(generator_forward)
    out = jax.block_until_ready(fwd(params, x))

    assert out.shape == (batch, out_channels, H, W), out.shape
    assert bool(jnp.all(jnp.isfinite(out)))
    assert bool(jnp.all(jnp.abs(out) <= 1.0))  # tanh output range
    print("KERNEL_OK")
</pallas_src>

<mosaic_0001>
module attributes {stable_mosaic.version = 11 : i64} {
  func.func @_conv_mm_kernel(%arg0: i32, %arg1: memref<147x512xbf16, #tpu.memory_space<vmem>>, %arg2: memref<8x147xbf16, #tpu.memory_space<vmem>>, %arg3: memref<8x1xf32, #tpu.memory_space<vmem>>, %arg4: memref<8x512xbf16, #tpu.memory_space<vmem>>, %arg5: memref<8x1xf32, #tpu.memory_space<vmem>>, %arg6: memref<8x1xf32, #tpu.memory_space<vmem>>, %arg7: memref<8x1xf32, #tpu.memory_space<vmem>>, %arg8: memref<8x1xf32, #tpu.memory_space<vmem>>) attributes {dimension_semantics = [#tpu.dimension_semantics<arbitrary>], iteration_bounds = array<i64: 1>, scalar_prefetch = 0 : i64, scratch_operands = 2 : i64, tpu.core_type = #tpu.core_type<tc>, window_params = [{transform_indices = @transform_0, window_bounds = array<i64: 147, 512>}, {pipeline_mode = #tpu.pipeline_mode<synchronous>, transform_indices = @transform_1, window_bounds = array<i64: 8, 147>}, {pipeline_mode = #tpu.pipeline_mode<synchronous>, transform_indices = @transform_2, window_bounds = array<i64: 8, 1>}, {transform_indices = @transform_3, window_bounds = array<i64: 8, 512>}, {pipeline_mode = #tpu.pipeline_mode<synchronous>, transform_indices = @transform_4, window_bounds = array<i64: 8, 1>}, {pipeline_mode = #tpu.pipeline_mode<synchronous>, transform_indices = @transform_5, window_bounds = array<i64: 8, 1>}]} {
    %c0 = arith.constant 0 : index
    %c0_0 = arith.constant 0 : index
    %0 = vector.load %arg2[%c0, %c0_0] : memref<8x147xbf16, #tpu.memory_space<vmem>>, vector<8x147xbf16>
    %c0_1 = arith.constant 0 : index
    %c0_2 = arith.constant 0 : index
    %1 = vector.load %arg1[%c0_1, %c0_2] : memref<147x512xbf16, #tpu.memory_space<vmem>>, vector<147x512xbf16>
    %cst = arith.constant dense<0.000000e+00> : vector<8x512xf32>
    %2 = tpu.matmul %0, %1, %cst {dimension_numbers = #tpu.dot_dimension_numbers<[1], [0], [0], [1], [0, 0, 1, 1], [], []>} : vector<8x147xbf16>, vector<147x512xbf16>, vector<8x512xf32> -> vector<8x512xf32>
    %c0_3 = arith.constant 0 : index
    %c0_4 = arith.constant 0 : index
    %3 = vector.load %arg3[%c0_3, %c0_4] : memref<8x1xf32, #tpu.memory_space<vmem>>, vector<8x1xf32>
    %4 = vector.broadcast %3 : vector<8x1xf32> to vector<8x512xf32>
    %5 = arith.addf %2, %4 : vector<8x512xf32>
    %c0_i32 = arith.constant 0 : i32
    %6 = arith.cmpi eq, %arg0, %c0_i32 : i32
    %7 = arith.extui %6 : i1 to i32
    %c0_i32_5 = arith.constant 0 : i32
    %8 = arith.cmpi ne, %7, %c0_i32_5 : i32
    scf.if %8 {
      %cst_20 = arith.constant 0.000000e+00 : f32
      %25 = vector.broadcast %cst_20 : f32 to vector<8x1xf32>
      %c0_21 = arith.constant 0 : index
      %c0_22 = arith.constant 0 : index
      %26 = vector.load %arg7[%c0_21, %c0_22] : memref<8x1xf32, #tpu.memory_space<vmem>>, vector<8x1xf32>
      tpu.vector_store %arg7[%c0_21, %c0_22], %25 {strides = array<i32>} : memref<8x1xf32, #tpu.memory_space<vmem>>, vector<8x1xf32>,
      %cst_23 = arith.constant 0.000000e+00 : f32
      %27 = vector.broadcast %cst_23 : f32 to vector<8x1xf32>
      %c0_24 = arith.constant 0 : index
      %c0_25 = arith.constant 0 : index
      %28 = vector.load %arg8[%c0_24, %c0_25] : memref<8x1xf32, #tpu.memory_space<vmem>>, vector<8x1xf32>
      tpu.vector_store %arg8[%c0_24, %c0_25], %27 {strides = array<i32>} : memref<8x1xf32, #tpu.memory_space<vmem>>, vector<8x1xf32>,
    } else {
    }
    %c0_6 = arith.constant 0 : index
    %c0_7 = arith.constant 0 : index
    %9 = vector.load %arg7[%c0_6, %c0_7] : memref<8x1xf32, #tpu.memory_space<vmem>>, vector<8x1xf32>
    %cst_8 = arith.constant dense<0.000000e+00> : vector<8xf32>
    %10 = vector.multi_reduction <add>, %5, %cst_8 [1] : vector<8x512xf32> to vector<8xf32>
    %11 = vector.shape_cast %10 : vector<8xf32> to vector<8x1xf32>
    %12 = arith.addf %9, %11 : vector<8x1xf32>
    %c0_9 = arith.constant 0 : index
    %c0_10 = arith.constant 0 : index
    %13 = vector.load %arg7[%c0_9, %c0_10] : memref<8x1xf32, #tpu.memory_space<vmem>>, vector<8x1xf32>
    tpu.vector_store %arg7[%c0_9, %c0_10], %12 {strides = array<i32>} : memref<8x1xf32, #tpu.memory_space<vmem>>, vector<8x1xf32>,
    %c0_11 = arith.constant 0 : index
    %c0_12 = arith.constant 0 : index
    %14 = vector.load %arg8[%c0_11, %c0_12] : memref<8x1xf32, #tpu.memory_space<vmem>>, vector<8x1xf32>
    %15 = arith.mulf %5, %5 : vector<8x512xf32>
    %cst_13 = arith.constant dense<0.000000e+00> : vector<8xf32>
    %16 = vector.multi_reduction <add>, %15, %cst_13 [1] : vector<8x512xf32> to vector<8xf32>
    %17 = vector.shape_cast %16 : vector<8xf32> to vector<8x1xf32>
    %18 = arith.addf %14, %17 : vector<8x1xf32>
    %c0_14 = arith.constant 0 : index
    %c0_15 = arith.constant 0 : index
    %19 = vector.load %arg8[%c0_14, %c0_15] : memref<8x1xf32, #tpu.memory_space<vmem>>, vector<8x1xf32>
    tpu.vector_store %arg8[%c0_14, %c0_15], %18 {strides = array<i32>} : memref<8x1xf32, #tpu.memory_space<vmem>>, vector<8x1xf32>,
    %c0_i32_16 = arith.constant 0 : i32
    %20 = arith.cmpi eq, %arg0, %c0_i32_16 : i32
    %21 = arith.extui %20 : i1 to i32
    %c0_i32_17 = arith.constant 0 : i32
    %22 = arith.cmpi ne, %21, %c0_i32_17 : i32
    scf.if %22 {
      %c0_20 = arith.constant 0 : index
      %c0_21 = arith.constant 0 : index
      %25 = vector.load %arg7[%c0_20, %c0_21] : memref<8x1xf32, #tpu.memory_space<vmem>>, vector<8x1xf32>
      %c0_22 = arith.constant 0 : index
      %c0_23 = arith.constant 0 : index
      %26 = vector.load %arg5[%c0_22, %c0_23] : memref<8x1xf32, #tpu.memory_space<vmem>>, vector<8x1xf32>
      tpu.vector_store %arg5[%c0_22, %c0_23], %25 {strides = array<i32>} : memref<8x1xf32, #tpu.memory_space<vmem>>, vector<8x1xf32>,
      %c0_24 = arith.constant 0 : index
      %c0_25 = arith.constant 0 : index
      %27 = vector.load %arg8[%c0_24, %c0_25] : memref<8x1xf32, #tpu.memory_space<vmem>>, vector<8x1xf32>
      %c0_26 = arith.constant 0 : index
      %c0_27 = arith.constant 0 : index
      %28 = vector.load %arg6[%c0_26, %c0_27] : memref<8x1xf32, #tpu.memory_space<vmem>>, vector<8x1xf32>
      tpu.vector_store %arg6[%c0_26, %c0_27], %27 {strides = array<i32>} : memref<8x1xf32, #tpu.memory_space<vmem>>, vector<8x1xf32>,
    } else {
    }
    %23 = arith.truncf %5 : vector<8x512xf32> to vector<8x512xbf16>
    %c0_18 = arith.constant 0 : index
    %c0_19 = arith.constant 0 : index
    %24 = vector.load %arg4[%c0_18, %c0_19] : memref<8x512xbf16, #tpu.memory_space<vmem>>, vector<8x512xbf16>
    tpu.vector_store %arg4[%c0_18, %c0_19], %23 {strides = array<i32>} : memref<8x512xbf16, #tpu.memory_space<vmem>>, vector<8x512xbf16>,
    return
  }
  func.func @transform_0(%arg0: i32) -> (i32, i32) {
    %c0_i32 = arith.constant 0 : i32
    %c0_i32_0 = arith.constant 0 : i32
    return %c0_i32, %arg0 : i32, i32
  }
  func.func @transform_1(%arg0: i32) -> (i32, i32) {
    %c0_i32 = arith.constant 0 : i32
    %c0_i32_0 = arith.constant 0 : i32
    %c0_i32_1 = arith.constant 0 : i32
    return %c0_i32, %c0_i32_0 : i32, i32
  }
  func.func @transform_2(%arg0: i32) -> (i32, i32) {
    %c0_i32 = arith.constant 0 : i32
    %c0_i32_0 = arith.constant 0 : i32
    %c0_i32_1 = arith.constant 0 : i32
    return %c0_i32, %c0_i32_0 : i32, i32
  }
  func.func @transform_3(%arg0: i32) -> (i32, i32) {
    %c0_i32 = arith.constant 0 : i32
    %c0_i32_0 = arith.constant 0 : i32
    return %c0_i32, %arg0 : i32, i32
  }
  func.func @transform_4(%arg0: i32) -> (i32, i32) {
    %c0_i32 = arith.constant 0 : i32
    %c0_i32_0 = arith.constant 0 : i32
    %c0_i32_1 = arith.constant 0 : i32
    return %c0_i32, %c0_i32_0 : i32, i32
  }
  func.func @transform_5(%arg0: i32) -> (i32, i32) {
    %c0_i32 = arith.constant 0 : i32
    %c0_i32_0 = arith.constant 0 : i32
    %c0_i32_1 = arith.constant 0 : i32
    return %c0_i32, %c0_i32_0 : i32, i32
  }
}

module attributes {stable_mosaic.version = 11 : i64} {
  func.func @_conv_mm_kernel(%arg0: i32, %arg1: memref<72x128xbf16, #tpu.memory_space<vmem>>, %arg2: memref<16x72xbf16, #tpu.memory_space<vmem>>, %arg3: memref<16x1xf32, #tpu.memory_space<vmem>>, %arg4: memref<16x128xbf16, #tpu.memory_space<vmem>>) attributes {dimension_semantics = [#tpu.dimension_semantics<parallel>], iteration_bounds = array<i64: 1>, scalar_prefetch = 0 : i64, scratch_operands = 0 : i64, tpu.core_type = #tpu.core_type<tc>, window_params = [{transform_indices = @transform_0, window_bounds = array<i64: 72, 128>}, {pipeline_mode = #tpu.pipeline_mode<synchronous>, transform_indices = @transform_1, window_bounds = array<i64: 16, 72>}, {pipeline_mode = #tpu.pipeline_mode<synchronous>, transform_indices = @transform_2, window_bounds = array<i64: 16, 1>}, {transform_indices = @transform_3, window_bounds = array<i64: 16, 128>}]} {
    %c0 = arith.constant 0 : index
    %c0_0 = arith.constant 0 : index
    %0 = vector.load %arg2[%c0, %c0_0] : memref<16x72xbf16, #tpu.memory_space<vmem>>, vector<16x72xbf16>
    %c0_1 = arith.constant 0 : index
    %c0_2 = arith.constant 0 : index
    %1 = vector.load %arg1[%c0_1, %c0_2] : memref<72x128xbf16, #tpu.memory_space<vmem>>, vector<72x128xbf16>
    %cst = arith.constant dense<0.000000e+00> : vector<16x128xf32>
    %2 = tpu.matmul %0, %1, %cst {dimension_numbers = #tpu.dot_dimension_numbers<[1], [0], [0], [1], [0, 0, 1, 1], [], []>} : vector<16x72xbf16>, vector<72x128xbf16>, vector<16x128xf32> -> vector<16x128xf32>
    %c0_3 = arith.constant 0 : index
    %c0_4 = arith.constant 0 : index
    %3 = vector.load %arg3[%c0_3, %c0_4] : memref<16x1xf32, #tpu.memory_space<vmem>>, vector<16x1xf32>
    %4 = vector.broadcast %3 : vector<16x1xf32> to vector<16x128xf32>
    %5 = arith.addf %2, %4 : vector<16x128xf32>
    %6 = arith.truncf %5 : vector<16x128xf32> to vector<16x128xbf16>
    %c0_5 = arith.constant 0 : index
    %c0_6 = arith.constant 0 : index
    %7 = vector.load %arg4[%c0_5, %c0_6] : memref<16x128xbf16, #tpu.memory_space<vmem>>, vector<16x128xbf16>
    tpu.vector_store %arg4[%c0_5, %c0_6], %6 {strides = array<i32>} : memref<16x128xbf16, #tpu.memory_space<vmem>>, vector<16x128xbf16>,
    return
  }
  func.func @transform_0(%arg0: i32) -> (i32, i32) {
    %c0_i32 = arith.constant 0 : i32
    %c0_i32_0 = arith.constant 0 : i32
    return %c0_i32, %arg0 : i32, i32
  }
  func.func @transform_1(%arg0: i32) -> (i32, i32) {
    %c0_i32 = arith.constant 0 : i32
    %c0_i32_0 = arith.constant 0 : i32
    %c0_i32_1 = arith.constant 0 : i32
    return %c0_i32, %c0_i32_0 : i32, i32
  }
  func.func @transform_2(%arg0: i32) -> (i32, i32) {
    %c0_i32 = arith.constant 0 : i32
    %c0_i32_0 = arith.constant 0 : i32
    %c0_i32_1 = arith.constant 0 : i32
    return %c0_i32, %c0_i32_0 : i32, i32
  }
  func.func @transform_3(%arg0: i32) -> (i32, i32) {
    %c0_i32 = arith.constant 0 : i32
    %c0_i32_0 = arith.constant 0 : i32
    return %c0_i32, %arg0 : i32, i32
  }
}

module attributes {stable_mosaic.version = 11 : i64} {
  func.func @_conv_mm_kernel(%arg0: i32, %arg1: memref<144x128xbf16, #tpu.memory_space<vmem>>, %arg2: memref<16x144xbf16, #tpu.memory_space<vmem>>, %arg3: memref<16x1xf32, #tpu.memory_space<vmem>>, %arg4: memref<16x128xbf16, #tpu.memory_space<vmem>>, %arg5: memref<16x1xf32, #tpu.memory_space<vmem>>, %arg6: memref<16x1xf32, #tpu.memory_space<vmem>>, %arg7: memref<16x1xf32, #tpu.memory_space<vmem>>, %arg8: memref<16x1xf32, #tpu.memory_space<vmem>>) attributes {dimension_semantics = [#tpu.dimension_semantics<arbitrary>], iteration_bounds = array<i64: 1>, scalar_prefetch = 0 : i64, scratch_operands = 2 : i64, tpu.core_type = #tpu.core_type<tc>, window_params = [{transform_indices = @transform_0, window_bounds = array<i64: 144, 128>}, {pipeline_mode = #tpu.pipeline_mode<synchronous>, transform_indices = @transform_1, window_bounds = array<i64: 16, 144>}, {pipeline_mode = #tpu.pipeline_mode<synchronous>, transform_indices = @transform_2, window_bounds = array<i64: 16, 1>}, {transform_indices = @transform_3, window_bounds = array<i64: 16, 128>}, {pipeline_mode = #tpu.pipeline_mode<synchronous>, transform_indices = @transform_4, window_bounds = array<i64: 16, 1>}, {pipeline_mode = #tpu.pipeline_mode<synchronous>, transform_indices = @transform_5, window_bounds = array<i64: 16, 1>}]} {
    %c0 = arith.constant 0 : index
    %c0_0 = arith.constant 0 : index
    %0 = vector.load %arg2[%c0, %c0_0] : memref<16x144xbf16, #tpu.memory_space<vmem>>, vector<16x144xbf16>
    %c0_1 = arith.constant 0 : index
    %c0_2 = arith.constant 0 : index
    %1 = vector.load %arg1[%c0_1, %c0_2] : memref<144x128xbf16, #tpu.memory_space<vmem>>, vector<144x128xbf16>
    %cst = arith.constant dense<0.000000e+00> : vector<16x128xf32>
    %2 = tpu.matmul %0, %1, %cst {dimension_numbers = #tpu.dot_dimension_numbers<[1], [0], [0], [1], [0, 0, 1, 1], [], []>} : vector<16x144xbf16>, vector<144x128xbf16>, vector<16x128xf32> -> vector<16x128xf32>
    %c0_3 = arith.constant 0 : index
    %c0_4 = arith.constant 0 : index
    %3 = vector.load %arg3[%c0_3, %c0_4] : memref<16x1xf32, #tpu.memory_space<vmem>>, vector<16x1xf32>
    %4 = vector.broadcast %3 : vector<16x1xf32> to vector<16x128xf32>
    %5 = arith.addf %2, %4 : vector<16x128xf32>
    %c0_i32 = arith.constant 0 : i32
    %6 = arith.cmpi eq, %arg0, %c0_i32 : i32
    %7 = arith.extui %6 : i1 to i32
    %c0_i32_5 = arith.constant 0 : i32
    %8 = arith.cmpi ne, %7, %c0_i32_5 : i32
    scf.if %8 {
      %cst_20 = arith.constant 0.000000e+00 : f32
      %25 = vector.broadcast %cst_20 : f32 to vector<16x1xf32>
      %c0_21 = arith.constant 0 : index
      %c0_22 = arith.constant 0 : index
      %26 = vector.load %arg7[%c0_21, %c0_22] : memref<16x1xf32, #tpu.memory_space<vmem>>, vector<16x1xf32>
      tpu.vector_store %arg7[%c0_21, %c0_22], %25 {strides = array<i32>} : memref<16x1xf32, #tpu.memory_space<vmem>>, vector<16x1xf32>,
      %cst_23 = arith.constant 0.000000e+00 : f32
      %27 = vector.broadcast %cst_23 : f32 to vector<16x1xf32>
      %c0_24 = arith.constant 0 : index
      %c0_25 = arith.constant 0 : index
      %28 = vector.load %arg8[%c0_24, %c0_25] : memref<16x1xf32, #tpu.memory_space<vmem>>, vector<16x1xf32>
      tpu.vector_store %arg8[%c0_24, %c0_25], %27 {strides = array<i32>} : memref<16x1xf32, #tpu.memory_space<vmem>>, vector<16x1xf32>,
    } else {
    }
    %c0_6 = arith.constant 0 : index
    %c0_7 = arith.constant 0 : index
    %9 = vector.load %arg7[%c0_6, %c0_7] : memref<16x1xf32, #tpu.memory_space<vmem>>, vector<16x1xf32>
    %cst_8 = arith.constant dense<0.000000e+00> : vector<16xf32>
    %10 = vector.multi_reduction <add>, %5, %cst_8 [1] : vector<16x128xf32> to vector<16xf32>
    %11 = vector.shape_cast %10 : vector<16xf32> to vector<16x1xf32>
    %12 = arith.addf %9, %11 : vector<16x1xf32>
    %c0_9 = arith.constant 0 : index
    %c0_10 = arith.constant 0 : index
    %13 = vector.load %arg7[%c0_9, %c0_10] : memref<16x1xf32, #tpu.memory_space<vmem>>, vector<16x1xf32>
    tpu.vector_store %arg7[%c0_9, %c0_10], %12 {strides = array<i32>} : memref<16x1xf32, #tpu.memory_space<vmem>>, vector<16x1xf32>,
    %c0_11 = arith.constant 0 : index
    %c0_12 = arith.constant 0 : index
    %14 = vector.load %arg8[%c0_11, %c0_12] : memref<16x1xf32, #tpu.memory_space<vmem>>, vector<16x1xf32>
    %15 = arith.mulf %5, %5 : vector<16x128xf32>
    %cst_13 = arith.constant dense<0.000000e+00> : vector<16xf32>
    %16 = vector.multi_reduction <add>, %15, %cst_13 [1] : vector<16x128xf32> to vector<16xf32>
    %17 = vector.shape_cast %16 : vector<16xf32> to vector<16x1xf32>
    %18 = arith.addf %14, %17 : vector<16x1xf32>
    %c0_14 = arith.constant 0 : index
    %c0_15 = arith.constant 0 : index
    %19 = vector.load %arg8[%c0_14, %c0_15] : memref<16x1xf32, #tpu.memory_space<vmem>>, vector<16x1xf32>
    tpu.vector_store %arg8[%c0_14, %c0_15], %18 {strides = array<i32>} : memref<16x1xf32, #tpu.memory_space<vmem>>, vector<16x1xf32>,
    %c0_i32_16 = arith.constant 0 : i32
    %20 = arith.cmpi eq, %arg0, %c0_i32_16 : i32
    %21 = arith.extui %20 : i1 to i32
    %c0_i32_17 = arith.constant 0 : i32
    %22 = arith.cmpi ne, %21, %c0_i32_17 : i32
    scf.if %22 {
      %c0_20 = arith.constant 0 : index
      %c0_21 = arith.constant 0 : index
      %25 = vector.load %arg7[%c0_20, %c0_21] : memref<16x1xf32, #tpu.memory_space<vmem>>, vector<16x1xf32>
      %c0_22 = arith.constant 0 : index
      %c0_23 = arith.constant 0 : index
      %26 = vector.load %arg5[%c0_22, %c0_23] : memref<16x1xf32, #tpu.memory_space<vmem>>, vector<16x1xf32>
      tpu.vector_store %arg5[%c0_22, %c0_23], %25 {strides = array<i32>} : memref<16x1xf32, #tpu.memory_space<vmem>>, vector<16x1xf32>,
      %c0_24 = arith.constant 0 : index
      %c0_25 = arith.constant 0 : index
      %27 = vector.load %arg8[%c0_24, %c0_25] : memref<16x1xf32, #tpu.memory_space<vmem>>, vector<16x1xf32>
      %c0_26 = arith.constant 0 : index
      %c0_27 = arith.constant 0 : index
      %28 = vector.load %arg6[%c0_26, %c0_27] : memref<16x1xf32, #tpu.memory_space<vmem>>, vector<16x1xf32>
      tpu.vector_store %arg6[%c0_26, %c0_27], %27 {strides = array<i32>} : memref<16x1xf32, #tpu.memory_space<vmem>>, vector<16x1xf32>,
    } else {
    }
    %23 = arith.truncf %5 : vector<16x128xf32> to vector<16x128xbf16>
    %c0_18 = arith.constant 0 : index
    %c0_19 = arith.constant 0 : index
    %24 = vector.load %arg4[%c0_18, %c0_19] : memref<16x128xbf16, #tpu.memory_space<vmem>>, vector<16x128xbf16>
    tpu.vector_store %arg4[%c0_18, %c0_19], %23 {strides = array<i32>} : memref<16x128xbf16, #tpu.memory_space<vmem>>, vector<16x128xbf16>,
    return
  }
  func.func @transform_0(%arg0: i32) -> (i32, i32) {
    %c0_i32 = arith.constant 0 : i32
    %c0_i32_0 = arith.constant 0 : i32
    return %c0_i32, %arg0 : i32, i32
  }
  func.func @transform_1(%arg0: i32) -> (i32, i32) {
    %c0_i32 = arith.constant 0 : i32
    %c0_i32_0 = arith.constant 0 : i32
    %c0_i32_1 = arith.constant 0 : i32
    return %c0_i32, %c0_i32_0 : i32, i32
  }
  func.func @transform_2(%arg0: i32) -> (i32, i32) {
    %c0_i32 = arith.constant 0 : i32
    %c0_i32_0 = arith.constant 0 : i32
    %c0_i32_1 = arith.constant 0 : i32
    return %c0_i32, %c0_i32_0 : i32, i32
  }
  func.func @transform_3(%arg0: i32) -> (i32, i32) {
    %c0_i32 = arith.constant 0 : i32
    %c0_i32_0 = arith.constant 0 : i32
    return %c0_i32, %arg0 : i32, i32
  }
  func.func @transform_4(%arg0: i32) -> (i32, i32) {
    %c0_i32 = arith.constant 0 : i32
    %c0_i32_0 = arith.constant 0 : i32
    %c0_i32_1 = arith.constant 0 : i32
    return %c0_i32, %c0_i32_0 : i32, i32
  }
  func.func @transform_5(%arg0: i32) -> (i32, i32) {
    %c0_i32 = arith.constant 0 : i32
    %c0_i32_0 = arith.constant 0 : i32
    %c0_i32_1 = arith.constant 0 : i32
    return %c0_i32, %c0_i32_0 : i32, i32
  }
}

module attributes {stable_mosaic.version = 11 : i64} {
  func.func @_conv_mm_kernel(%arg0: i32, %arg1: memref<144x128xbf16, #tpu.memory_space<vmem>>, %arg2: memref<32x144xbf16, #tpu.memory_space<vmem>>, %arg3: memref<32x1xf32, #tpu.memory_space<vmem>>, %arg4: memref<32x128xbf16, #tpu.memory_space<vmem>>) attributes {dimension_semantics = [#tpu.dimension_semantics<parallel>], iteration_bounds = array<i64: 1>, scalar_prefetch = 0 : i64, scratch_operands = 0 : i64, tpu.core_type = #tpu.core_type<tc>, window_params = [{transform_indices = @transform_0, window_bounds = array<i64: 144, 128>}, {pipeline_mode = #tpu.pipeline_mode<synchronous>, transform_indices = @transform_1, window_bounds = array<i64: 32, 144>}, {pipeline_mode = #tpu.pipeline_mode<synchronous>, transform_indices = @transform_2, window_bounds = array<i64: 32, 1>}, {transform_indices = @transform_3, window_bounds = array<i64: 32, 128>}]} {
    %c0 = arith.constant 0 : index
    %c0_0 = arith.constant 0 : index
    %0 = vector.load %arg2[%c0, %c0_0] : memref<32x144xbf16, #tpu.memory_space<vmem>>, vector<32x144xbf16>
    %c0_1 = arith.constant 0 : index
    %c0_2 = arith.constant 0 : index
    %1 = vector.load %arg1[%c0_1, %c0_2] : memref<144x128xbf16, #tpu.memory_space<vmem>>, vector<144x128xbf16>
    %cst = arith.constant dense<0.000000e+00> : vector<32x128xf32>
    %2 = tpu.matmul %0, %1, %cst {dimension_numbers = #tpu.dot_dimension_numbers<[1], [0], [0], [1], [0, 0, 1, 1], [], []>} : vector<32x144xbf16>, vector<144x128xbf16>, vector<32x128xf32> -> vector<32x128xf32>
    %c0_3 = arith.constant 0 : index
    %c0_4 = arith.constant 0 : index
    %3 = vector.load %arg3[%c0_3, %c0_4] : memref<32x1xf32, #tpu.memory_space<vmem>>, vector<32x1xf32>
    %4 = vector.broadcast %3 : vector<32x1xf32> to vector<32x128xf32>
    %5 = arith.addf %2, %4 : vector<32x128xf32>
    %6 = arith.truncf %5 : vector<32x128xf32> to vector<32x128xbf16>
    %c0_5 = arith.constant 0 : index
    %c0_6 = arith.constant 0 : index
    %7 = vector.load %arg4[%c0_5, %c0_6] : memref<32x128xbf16, #tpu.memory_space<vmem>>, vector<32x128xbf16>
    tpu.vector_store %arg4[%c0_5, %c0_6], %6 {strides = array<i32>} : memref<32x128xbf16, #tpu.memory_space<vmem>>, vector<32x128xbf16>,
    return
  }
  func.func @transform_0(%arg0: i32) -> (i32, i32) {
    %c0_i32 = arith.constant 0 : i32
    %c0_i32_0 = arith.constant 0 : i32
    return %c0_i32, %arg0 : i32, i32
  }
  func.func @transform_1(%arg0: i32) -> (i32, i32) {
    %c0_i32 = arith.constant 0 : i32
    %c0_i32_0 = arith.constant 0 : i32
    %c0_i32_1 = arith.constant 0 : i32
    return %c0_i32, %c0_i32_0 : i32, i32
  }
  func.func @transform_2(%arg0: i32) -> (i32, i32) {
    %c0_i32 = arith.constant 0 : i32
    %c0_i32_0 = arith.constant 0 : i32
    %c0_i32_1 = arith.constant 0 : i32
    return %c0_i32, %c0_i32_0 : i32, i32
  }
  func.func @transform_3(%arg0: i32) -> (i32, i32) {
    %c0_i32 = arith.constant 0 : i32
    %c0_i32_0 = arith.constant 0 : i32
    return %c0_i32, %arg0 : i32, i32
  }
}

module attributes {stable_mosaic.version = 11 : i64} {
  func.func @_conv_mm_kernel(%arg0: i32, %arg1: memref<288x128xbf16, #tpu.memory_space<vmem>>, %arg2: memref<32x288xbf16, #tpu.memory_space<vmem>>, %arg3: memref<32x1xf32, #tpu.memory_space<vmem>>, %arg4: memref<32x128xbf16, #tpu.memory_space<vmem>>, %arg5: memref<32x1xf32, #tpu.memory_space<vmem>>, %arg6: memref<32x1xf32, #tpu.memory_space<vmem>>, %arg7: memref<32x1xf32, #tpu.memory_space<vmem>>, %arg8: memref<32x1xf32, #tpu.memory_space<vmem>>) attributes {dimension_semantics = [#tpu.dimension_semantics<arbitrary>], iteration_bounds = array<i64: 1>, scalar_prefetch = 0 : i64, scratch_operands = 2 : i64, tpu.core_type = #tpu.core_type<tc>, window_params = [{transform_indices = @transform_0, window_bounds = array<i64: 288, 128>}, {pipeline_mode = #tpu.pipeline_mode<synchronous>, transform_indices = @transform_1, window_bounds = array<i64: 32, 288>}, {pipeline_mode = #tpu.pipeline_mode<synchronous>, transform_indices = @transform_2, window_bounds = array<i64: 32, 1>}, {transform_indices = @transform_3, window_bounds = array<i64: 32, 128>}, {pipeline_mode = #tpu.pipeline_mode<synchronous>, transform_indices = @transform_4, window_bounds = array<i64: 32, 1>}, {pipeline_mode = #tpu.pipeline_mode<synchronous>, transform_indices = @transform_5, window_bounds = array<i64: 32, 1>}]} {
    %c0 = arith.constant 0 : index
    %c0_0 = arith.constant 0 : index
    %0 = vector.load %arg2[%c0, %c0_0] : memref<32x288xbf16, #tpu.memory_space<vmem>>, vector<32x288xbf16>
    %c0_1 = arith.constant 0 : index
    %c0_2 = arith.constant 0 : index
    %1 = vector.load %arg1[%c0_1, %c0_2] : memref<288x128xbf16, #tpu.memory_space<vmem>>, vector<288x128xbf16>
    %cst = arith.constant dense<0.000000e+00> : vector<32x128xf32>
    %2 = tpu.matmul %0, %1, %cst {dimension_numbers = #tpu.dot_dimension_numbers<[1], [0], [0], [1], [0, 0, 1, 1], [], []>} : vector<32x288xbf16>, vector<288x128xbf16>, vector<32x128xf32> -> vector<32x128xf32>
    %c0_3 = arith.constant 0 : index
    %c0_4 = arith.constant 0 : index
    %3 = vector.load %arg3[%c0_3, %c0_4] : memref<32x1xf32, #tpu.memory_space<vmem>>, vector<32x1xf32>
    %4 = vector.broadcast %3 : vector<32x1xf32> to vector<32x128xf32>
    %5 = arith.addf %2, %4 : vector<32x128xf32>
    %c0_i32 = arith.constant 0 : i32
    %6 = arith.cmpi eq, %arg0, %c0_i32 : i32
    %7 = arith.extui %6 : i1 to i32
    %c0_i32_5 = arith.constant 0 : i32
    %8 = arith.cmpi ne, %7, %c0_i32_5 : i32
    scf.if %8 {
      %cst_20 = arith.constant 0.000000e+00 : f32
      %25 = vector.broadcast %cst_20 : f32 to vector<32x1xf32>
      %c0_21 = arith.constant 0 : index
      %c0_22 = arith.constant 0 : index
      %26 = vector.load %arg7[%c0_21, %c0_22] : memref<32x1xf32, #tpu.memory_space<vmem>>, vector<32x1xf32>
      tpu.vector_store %arg7[%c0_21, %c0_22], %25 {strides = array<i32>} : memref<32x1xf32, #tpu.memory_space<vmem>>, vector<32x1xf32>,
      %cst_23 = arith.constant 0.000000e+00 : f32
      %27 = vector.broadcast %cst_23 : f32 to vector<32x1xf32>
      %c0_24 = arith.constant 0 : index
      %c0_25 = arith.constant 0 : index
      %28 = vector.load %arg8[%c0_24, %c0_25] : memref<32x1xf32, #tpu.memory_space<vmem>>, vector<32x1xf32>
      tpu.vector_store %arg8[%c0_24, %c0_25], %27 {strides = array<i32>} : memref<32x1xf32, #tpu.memory_space<vmem>>, vector<32x1xf32>,
    } else {
    }
    %c0_6 = arith.constant 0 : index
    %c0_7 = arith.constant 0 : index
    %9 = vector.load %arg7[%c0_6, %c0_7] : memref<32x1xf32, #tpu.memory_space<vmem>>, vector<32x1xf32>
    %cst_8 = arith.constant dense<0.000000e+00> : vector<32xf32>
    %10 = vector.multi_reduction <add>, %5, %cst_8 [1] : vector<32x128xf32> to vector<32xf32>
    %11 = vector.shape_cast %10 : vector<32xf32> to vector<32x1xf32>
    %12 = arith.addf %9, %11 : vector<32x1xf32>
    %c0_9 = arith.constant 0 : index
    %c0_10 = arith.constant 0 : index
    %13 = vector.load %arg7[%c0_9, %c0_10] : memref<32x1xf32, #tpu.memory_space<vmem>>, vector<32x1xf32>
    tpu.vector_store %arg7[%c0_9, %c0_10], %12 {strides = array<i32>} : memref<32x1xf32, #tpu.memory_space<vmem>>, vector<32x1xf32>,
    %c0_11 = arith.constant 0 : index
    %c0_12 = arith.constant 0 : index
    %14 = vector.load %arg8[%c0_11, %c0_12] : memref<32x1xf32, #tpu.memory_space<vmem>>, vector<32x1xf32>
    %15 = arith.mulf %5, %5 : vector<32x128xf32>
    %cst_13 = arith.constant dense<0.000000e+00> : vector<32xf32>
    %16 = vector.multi_reduction <add>, %15, %cst_13 [1] : vector<32x128xf32> to vector<32xf32>
    %17 = vector.shape_cast %16 : vector<32xf32> to vector<32x1xf32>
    %18 = arith.addf %14, %17 : vector<32x1xf32>
    %c0_14 = arith.constant 0 : index
    %c0_15 = arith.constant 0 : index
    %19 = vector.load %arg8[%c0_14, %c0_15] : memref<32x1xf32, #tpu.memory_space<vmem>>, vector<32x1xf32>
    tpu.vector_store %arg8[%c0_14, %c0_15], %18 {strides = array<i32>} : memref<32x1xf32, #tpu.memory_space<vmem>>, vector<32x1xf32>,
    %c0_i32_16 = arith.constant 0 : i32
    %20 = arith.cmpi eq, %arg0, %c0_i32_16 : i32
    %21 = arith.extui %20 : i1 to i32
    %c0_i32_17 = arith.constant 0 : i32
    %22 = arith.cmpi ne, %21, %c0_i32_17 : i32
    scf.if %22 {
      %c0_20 = arith.constant 0 : index
      %c0_21 = arith.constant 0 : index
      %25 = vector.load %arg7[%c0_20, %c0_21] : memref<32x1xf32, #tpu.memory_space<vmem>>, vector<32x1xf32>
      %c0_22 = arith.constant 0 : index
      %c0_23 = arith.constant 0 : index
      %26 = vector.load %arg5[%c0_22, %c0_23] : memref<32x1xf32, #tpu.memory_space<vmem>>, vector<32x1xf32>
      tpu.vector_store %arg5[%c0_22, %c0_23], %25 {strides = array<i32>} : memref<32x1xf32, #tpu.memory_space<vmem>>, vector<32x1xf32>,
      %c0_24 = arith.constant 0 : index
      %c0_25 = arith.constant 0 : index
      %27 = vector.load %arg8[%c0_24, %c0_25] : memref<32x1xf32, #tpu.memory_space<vmem>>, vector<32x1xf32>
      %c0_26 = arith.constant 0 : index
      %c0_27 = arith.constant 0 : index
      %28 = vector.load %arg6[%c0_26, %c0_27] : memref<32x1xf32, #tpu.memory_space<vmem>>, vector<32x1xf32>
      tpu.vector_store %arg6[%c0_26, %c0_27], %27 {strides = array<i32>} : memref<32x1xf32, #tpu.memory_space<vmem>>, vector<32x1xf32>,
    } else {
    }
    %23 = arith.truncf %5 : vector<32x128xf32> to vector<32x128xbf16>
    %c0_18 = arith.constant 0 : index
    %c0_19 = arith.constant 0 : index
    %24 = vector.load %arg4[%c0_18, %c0_19] : memref<32x128xbf16, #tpu.memory_space<vmem>>, vector<32x128xbf16>
    tpu.vector_store %arg4[%c0_18, %c0_19], %23 {strides = array<i32>} : memref<32x128xbf16, #tpu.memory_space<vmem>>, vector<32x128xbf16>,
    return
  }
  func.func @transform_0(%arg0: i32) -> (i32, i32) {
    %c0_i32 = arith.constant 0 : i32
    %c0_i32_0 = arith.constant 0 : i32
    return %c0_i32, %arg0 : i32, i32
  }
  func.func @transform_1(%arg0: i32) -> (i32, i32) {
    %c0_i32 = arith.constant 0 : i32
    %c0_i32_0 = arith.constant 0 : i32
    %c0_i32_1 = arith.constant 0 : i32
    return %c0_i32, %c0_i32_0 : i32, i32
  }
  func.func @transform_2(%arg0: i32) -> (i32, i32) {
    %c0_i32 = arith.constant 0 : i32
    %c0_i32_0 = arith.constant 0 : i32
    %c0_i32_1 = arith.constant 0 : i32
    return %c0_i32, %c0_i32_0 : i32, i32
  }
  func.func @transform_3(%arg0: i32) -> (i32, i32) {
    %c0_i32 = arith.constant 0 : i32
    %c0_i32_0 = arith.constant 0 : i32
    return %c0_i32, %arg0 : i32, i32
  }
  func.func @transform_4(%arg0: i32) -> (i32, i32) {
    %c0_i32 = arith.constant 0 : i32
    %c0_i32_0 = arith.constant 0 : i32
    %c0_i32_1 = arith.constant 0 : i32
    return %c0_i32, %c0_i32_0 : i32, i32
  }
  func.func @transform_5(%arg0: i32) -> (i32, i32) {
    %c0_i32 = arith.constant 0 : i32
    %c0_i32_0 = arith.constant 0 : i32
    %c0_i32_1 = arith.constant 0 : i32
    return %c0_i32, %c0_i32_0 : i32, i32
  }
}

module attributes {stable_mosaic.version = 11 : i64} {
  func.func @_affine_kernel(%arg0: i32, %arg1: memref<32x128xbf16, #tpu.memory_space<vmem>>, %arg2: memref<32x1xf32, #tpu.memory_space<vmem>>, %arg3: memref<32x1xf32, #tpu.memory_space<vmem>>, %arg4: memref<32x128xbf16, #tpu.memory_space<vmem>>) attributes {dimension_semantics = [#tpu.dimension_semantics<parallel>], iteration_bounds = array<i64: 1>, scalar_prefetch = 0 : i64, scratch_operands = 0 : i64, tpu.core_type = #tpu.core_type<tc>, window_params = [{transform_indices = @transform_0, window_bounds = array<i64: 32, 128>}, {pipeline_mode = #tpu.pipeline_mode<synchronous>, transform_indices = @transform_1, window_bounds = array<i64: 32, 1>}, {pipeline_mode = #tpu.pipeline_mode<synchronous>, transform_indices = @transform_2, window_bounds = array<i64: 32, 1>}, {transform_indices = @transform_3, window_bounds = array<i64: 32, 128>}]} {
    %c0 = arith.constant 0 : index
    %c0_0 = arith.constant 0 : index
    %0 = vector.load %arg1[%c0, %c0_0] : memref<32x128xbf16, #tpu.memory_space<vmem>>, vector<32x128xbf16>
    %1 = arith.extf %0 : vector<32x128xbf16> to vector<32x128xf32>
    %c0_1 = arith.constant 0 : index
    %c0_2 = arith.constant 0 : index
    %2 = vector.load %arg2[%c0_1, %c0_2] : memref<32x1xf32, #tpu.memory_space<vmem>>, vector<32x1xf32>
    %3 = vector.broadcast %2 : vector<32x1xf32> to vector<32x128xf32>
    %4 = arith.mulf %1, %3 : vector<32x128xf32>
    %c0_3 = arith.constant 0 : index
    %c0_4 = arith.constant 0 : index
    %5 = vector.load %arg3[%c0_3, %c0_4] : memref<32x1xf32, #tpu.memory_space<vmem>>, vector<32x1xf32>
    %6 = vector.broadcast %5 : vector<32x1xf32> to vector<32x128xf32>
    %7 = arith.addf %4, %6 : vector<32x128xf32>
    %cst = arith.constant 0.000000e+00 : f32
    %8 = vector.broadcast %cst : f32 to vector<32x128xf32>
    %9 = arith.maximumf %7, %8 : vector<32x128xf32>
    %10 = arith.truncf %9 : vector<32x128xf32> to vector<32x128xbf16>
    %c0_5 = arith.constant 0 : index
    %c0_6 = arith.constant 0 : index
    %11 = vector.load %arg4[%c0_5, %c0_6] : memref<32x128xbf16, #tpu.memory_space<vmem>>, vector<32x128xbf16>
    tpu.vector_store %arg4[%c0_5, %c0_6], %10 {strides = array<i32>} : memref<32x128xbf16, #tpu.memory_space<vmem>>, vector<32x128xbf16>,
    return
  }
  func.func @transform_0(%arg0: i32) -> (i32, i32) {
    %c0_i32 = arith.constant 0 : i32
    %c0_i32_0 = arith.constant 0 : i32
    return %c0_i32, %arg0 : i32, i32
  }
  func.func @transform_1(%arg0: i32) -> (i32, i32) {
    %c0_i32 = arith.constant 0 : i32
    %c0_i32_0 = arith.constant 0 : i32
    %c0_i32_1 = arith.constant 0 : i32
    return %c0_i32, %c0_i32_0 : i32, i32
  }
  func.func @transform_2(%arg0: i32) -> (i32, i32) {
    %c0_i32 = arith.constant 0 : i32
    %c0_i32_0 = arith.constant 0 : i32
    %c0_i32_1 = arith.constant 0 : i32
    return %c0_i32, %c0_i32_0 : i32, i32
  }
  func.func @transform_3(%arg0: i32) -> (i32, i32) {
    %c0_i32 = arith.constant 0 : i32
    %c0_i32_0 = arith.constant 0 : i32
    return %c0_i32, %arg0 : i32, i32
  }
}

module attributes {stable_mosaic.version = 11 : i64} {
  func.func @_affine_kernel(%arg0: i32, %arg1: memref<32x128xbf16, #tpu.memory_space<vmem>>, %arg2: memref<32x1xf32, #tpu.memory_space<vmem>>, %arg3: memref<32x1xf32, #tpu.memory_space<vmem>>, %arg4: memref<32x128xbf16, #tpu.memory_space<vmem>>, %arg5: memref<32x128xbf16, #tpu.memory_space<vmem>>) attributes {dimension_semantics = [#tpu.dimension_semantics<parallel>], iteration_bounds = array<i64: 1>, scalar_prefetch = 0 : i64, scratch_operands = 0 : i64, tpu.core_type = #tpu.core_type<tc>, window_params = [{transform_indices = @transform_0, window_bounds = array<i64: 32, 128>}, {pipeline_mode = #tpu.pipeline_mode<synchronous>, transform_indices = @transform_1, window_bounds = array<i64: 32, 1>}, {pipeline_mode = #tpu.pipeline_mode<synchronous>, transform_indices = @transform_2, window_bounds = array<i64: 32, 1>}, {transform_indices = @transform_3, window_bounds = array<i64: 32, 128>}, {transform_indices = @transform_4, window_bounds = array<i64: 32, 128>}]} {
    %c0 = arith.constant 0 : index
    %c0_0 = arith.constant 0 : index
    %0 = vector.load %arg1[%c0, %c0_0] : memref<32x128xbf16, #tpu.memory_space<vmem>>, vector<32x128xbf16>
    %1 = arith.extf %0 : vector<32x128xbf16> to vector<32x128xf32>
    %c0_1 = arith.constant 0 : index
    %c0_2 = arith.constant 0 : index
    %2 = vector.load %arg2[%c0_1, %c0_2] : memref<32x1xf32, #tpu.memory_space<vmem>>, vector<32x1xf32>
    %3 = vector.broadcast %2 : vector<32x1xf32> to vector<32x128xf32>
    %4 = arith.mulf %1, %3 : vector<32x128xf32>
    %c0_3 = arith.constant 0 : index
    %c0_4 = arith.constant 0 : index
    %5 = vector.load %arg3[%c0_3, %c0_4] : memref<32x1xf32, #tpu.memory_space<vmem>>, vector<32x1xf32>
    %6 = vector.broadcast %5 : vector<32x1xf32> to vector<32x128xf32>
    %7 = arith.addf %4, %6 : vector<32x128xf32>
    %c0_5 = arith.constant 0 : index
    %c0_6 = arith.constant 0 : index
    %8 = vector.load %arg4[%c0_5, %c0_6] : memref<32x128xbf16, #tpu.memory_space<vmem>>, vector<32x128xbf16>
    %9 = arith.extf %8 : vector<32x128xbf16> to vector<32x128xf32>
    %10 = arith.addf %7, %9 : vector<32x128xf32>
    %11 = arith.truncf %10 : vector<32x128xf32> to vector<32x128xbf16>
    %c0_7 = arith.constant 0 : index
    %c0_8 = arith.constant 0 : index
    %12 = vector.load %arg5[%c0_7, %c0_8] : memref<32x128xbf16, #tpu.memory_space<vmem>>, vector<32x128xbf16>
    tpu.vector_store %arg5[%c0_7, %c0_8], %11 {strides = array<i32>} : memref<32x128xbf16, #tpu.memory_space<vmem>>, vector<32x128xbf16>,
    return
  }
  func.func @transform_0(%arg0: i32) -> (i32, i32) {
    %c0_i32 = arith.constant 0 : i32
    %c0_i32_0 = arith.constant 0 : i32
    return %c0_i32, %arg0 : i32, i32
  }
  func.func @transform_1(%arg0: i32) -> (i32, i32) {
    %c0_i32 = arith.constant 0 : i32
    %c0_i32_0 = arith.constant 0 : i32
    %c0_i32_1 = arith.constant 0 : i32
    return %c0_i32, %c0_i32_0 : i32, i32
  }
  func.func @transform_2(%arg0: i32) -> (i32, i32) {
    %c0_i32 = arith.constant 0 : i32
    %c0_i32_0 = arith.constant 0 : i32
    %c0_i32_1 = arith.constant 0 : i32
    return %c0_i32, %c0_i32_0 : i32, i32
  }
  func.func @transform_3(%arg0: i32) -> (i32, i32) {
    %c0_i32 = arith.constant 0 : i32
    %c0_i32_0 = arith.constant 0 : i32
    return %c0_i32, %arg0 : i32, i32
  }
  func.func @transform_4(%arg0: i32) -> (i32, i32) {
    %c0_i32 = arith.constant 0 : i32
    %c0_i32_0 = arith.constant 0 : i32
    return %c0_i32, %arg0 : i32, i32
  }
}

module attributes {stable_mosaic.version = 11 : i64} {
  func.func @_conv_mm_kernel(%arg0: i32, %arg1: memref<288x128xbf16, #tpu.memory_space<vmem>>, %arg2: memref<16x288xbf16, #tpu.memory_space<vmem>>, %arg3: memref<16x1xf32, #tpu.memory_space<vmem>>, %arg4: memref<16x128xbf16, #tpu.memory_space<vmem>>) attributes {dimension_semantics = [#tpu.dimension_semantics<parallel>], iteration_bounds = array<i64: 1>, scalar_prefetch = 0 : i64, scratch_operands = 0 : i64, tpu.core_type = #tpu.core_type<tc>, window_params = [{transform_indices = @transform_0, window_bounds = array<i64: 288, 128>}, {pipeline_mode = #tpu.pipeline_mode<synchronous>, transform_indices = @transform_1, window_bounds = array<i64: 16, 288>}, {pipeline_mode = #tpu.pipeline_mode<synchronous>, transform_indices = @transform_2, window_bounds = array<i64: 16, 1>}, {transform_indices = @transform_3, window_bounds = array<i64: 16, 128>}]} {
    %c0 = arith.constant 0 : index
    %c0_0 = arith.constant 0 : index
    %0 = vector.load %arg2[%c0, %c0_0] : memref<16x288xbf16, #tpu.memory_space<vmem>>, vector<16x288xbf16>
    %c0_1 = arith.constant 0 : index
    %c0_2 = arith.constant 0 : index
    %1 = vector.load %arg1[%c0_1, %c0_2] : memref<288x128xbf16, #tpu.memory_space<vmem>>, vector<288x128xbf16>
    %cst = arith.constant dense<0.000000e+00> : vector<16x128xf32>
    %2 = tpu.matmul %0, %1, %cst {dimension_numbers = #tpu.dot_dimension_numbers<[1], [0], [0], [1], [0, 0, 1, 1], [], []>} : vector<16x288xbf16>, vector<288x128xbf16>, vector<16x128xf32> -> vector<16x128xf32>
    %c0_3 = arith.constant 0 : index
    %c0_4 = arith.constant 0 : index
    %3 = vector.load %arg3[%c0_3, %c0_4] : memref<16x1xf32, #tpu.memory_space<vmem>>, vector<16x1xf32>
    %4 = vector.broadcast %3 : vector<16x1xf32> to vector<16x128xf32>
    %5 = arith.addf %2, %4 : vector<16x128xf32>
    %6 = arith.truncf %5 : vector<16x128xf32> to vector<16x128xbf16>
    %c0_5 = arith.constant 0 : index
    %c0_6 = arith.constant 0 : index
    %7 = vector.load %arg4[%c0_5, %c0_6] : memref<16x128xbf16, #tpu.memory_space<vmem>>, vector<16x128xbf16>
    tpu.vector_store %arg4[%c0_5, %c0_6], %6 {strides = array<i32>} : memref<16x128xbf16, #tpu.memory_space<vmem>>, vector<16x128xbf16>,
    return
  }
  func.func @transform_0(%arg0: i32) -> (i32, i32) {
    %c0_i32 = arith.constant 0 : i32
    %c0_i32_0 = arith.constant 0 : i32
    return %c0_i32, %arg0 : i32, i32
  }
  func.func @transform_1(%arg0: i32) -> (i32, i32) {
    %c0_i32 = arith.constant 0 : i32
    %c0_i32_0 = arith.constant 0 : i32
    %c0_i32_1 = arith.constant 0 : i32
    return %c0_i32, %c0_i32_0 : i32, i32
  }
  func.func @transform_2(%arg0: i32) -> (i32, i32) {
    %c0_i32 = arith.constant 0 : i32
    %c0_i32_0 = arith.constant 0 : i32
    %c0_i32_1 = arith.constant 0 : i32
    return %c0_i32, %c0_i32_0 : i32, i32
  }
  func.func @transform_3(%arg0: i32) -> (i32, i32) {
    %c0_i32 = arith.constant 0 : i32
    %c0_i32_0 = arith.constant 0 : i32
    return %c0_i32, %arg0 : i32, i32
  }
}

module attributes {stable_mosaic.version = 11 : i64} {
  func.func @_conv_mm_kernel(%arg0: i32, %arg1: memref<144x512xbf16, #tpu.memory_space<vmem>>, %arg2: memref<8x144xbf16, #tpu.memory_space<vmem>>, %arg3: memref<8x1xf32, #tpu.memory_space<vmem>>, %arg4: memref<8x512xbf16, #tpu.memory_space<vmem>>) attributes {dimension_semantics = [#tpu.dimension_semantics<parallel>], iteration_bounds = array<i64: 1>, scalar_prefetch = 0 : i64, scratch_operands = 0 : i64, tpu.core_type = #tpu.core_type<tc>, window_params = [{transform_indices = @transform_0, window_bounds = array<i64: 144, 512>}, {pipeline_mode = #tpu.pipeline_mode<synchronous>, transform_indices = @transform_1, window_bounds = array<i64: 8, 144>}, {pipeline_mode = #tpu.pipeline_mode<synchronous>, transform_indices = @transform_2, window_bounds = array<i64: 8, 1>}, {transform_indices = @transform_3, window_bounds = array<i64: 8, 512>}]} {
    %c0 = arith.constant 0 : index
    %c0_0 = arith.constant 0 : index
    %0 = vector.load %arg2[%c0, %c0_0] : memref<8x144xbf16, #tpu.memory_space<vmem>>, vector<8x144xbf16>
    %c0_1 = arith.constant 0 : index
    %c0_2 = arith.constant 0 : index
    %1 = vector.load %arg1[%c0_1, %c0_2] : memref<144x512xbf16, #tpu.memory_space<vmem>>, vector<144x512xbf16>
    %cst = arith.constant dense<0.000000e+00> : vector<8x512xf32>
    %2 = tpu.matmul %0, %1, %cst {dimension_numbers = #tpu.dot_dimension_numbers<[1], [0], [0], [1], [0, 0, 1, 1], [], []>} : vector<8x144xbf16>, vector<144x512xbf16>, vector<8x512xf32> -> vector<8x512xf32>
    %c0_3 = arith.constant 0 : index
    %c0_4 = arith.constant 0 : index
    %3 = vector.load %arg3[%c0_3, %c0_4] : memref<8x1xf32, #tpu.memory_space<vmem>>, vector<8x1xf32>
    %4 = vector.broadcast %3 : vector<8x1xf32> to vector<8x512xf32>
    %5 = arith.addf %2, %4 : vector<8x512xf32>
    %6 = arith.truncf %5 : vector<8x512xf32> to vector<8x512xbf16>
    %c0_5 = arith.constant 0 : index
    %c0_6 = arith.constant 0 : index
    %7 = vector.load %arg4[%c0_5, %c0_6] : memref<8x512xbf16, #tpu.memory_space<vmem>>, vector<8x512xbf16>
    tpu.vector_store %arg4[%c0_5, %c0_6], %6 {strides = array<i32>} : memref<8x512xbf16, #tpu.memory_space<vmem>>, vector<8x512xbf16>,
    return
  }
  func.func @transform_0(%arg0: i32) -> (i32, i32) {
    %c0_i32 = arith.constant 0 : i32
    %c0_i32_0 = arith.constant 0 : i32
    return %c0_i32, %arg0 : i32, i32
  }
  func.func @transform_1(%arg0: i32) -> (i32, i32) {
    %c0_i32 = arith.constant 0 : i32
    %c0_i32_0 = arith.constant 0 : i32
    %c0_i32_1 = arith.constant 0 : i32
    return %c0_i32, %c0_i32_0 : i32, i32
  }
  func.func @transform_2(%arg0: i32) -> (i32, i32) {
    %c0_i32 = arith.constant 0 : i32
    %c0_i32_0 = arith.constant 0 : i32
    %c0_i32_1 = arith.constant 0 : i32
    return %c0_i32, %c0_i32_0 : i32, i32
  }
  func.func @transform_3(%arg0: i32) -> (i32, i32) {
    %c0_i32 = arith.constant 0 : i32
    %c0_i32_0 = arith.constant 0 : i32
    return %c0_i32, %arg0 : i32, i32
  }
}

module attributes {stable_mosaic.version = 11 : i64} {
  func.func @_conv_mm_kernel(%arg0: i32, %arg1: memref<72x512xbf16, #tpu.memory_space<vmem>>, %arg2: memref<8x72xbf16, #tpu.memory_space<vmem>>, %arg3: memref<8x1xf32, #tpu.memory_space<vmem>>, %arg4: memref<8x512xbf16, #tpu.memory_space<vmem>>, %arg5: memref<8x1xf32, #tpu.memory_space<vmem>>, %arg6: memref<8x1xf32, #tpu.memory_space<vmem>>, %arg7: memref<8x1xf32, #tpu.memory_space<vmem>>, %arg8: memref<8x1xf32, #tpu.memory_space<vmem>>) attributes {dimension_semantics = [#tpu.dimension_semantics<arbitrary>], iteration_bounds = array<i64: 1>, scalar_prefetch = 0 : i64, scratch_operands = 2 : i64, tpu.core_type = #tpu.core_type<tc>, window_params = [{transform_indices = @transform_0, window_bounds = array<i64: 72, 512>}, {pipeline_mode = #tpu.pipeline_mode<synchronous>, transform_indices = @transform_1, window_bounds = array<i64: 8, 72>}, {pipeline_mode = #tpu.pipeline_mode<synchronous>, transform_indices = @transform_2, window_bounds = array<i64: 8, 1>}, {transform_indices = @transform_3, window_bounds = array<i64: 8, 512>}, {pipeline_mode = #tpu.pipeline_mode<synchronous>, transform_indices = @transform_4, window_bounds = array<i64: 8, 1>}, {pipeline_mode = #tpu.pipeline_mode<synchronous>, transform_indices = @transform_5, window_bounds = array<i64: 8, 1>}]} {
    %c0 = arith.constant 0 : index
    %c0_0 = arith.constant 0 : index
    %0 = vector.load %arg2[%c0, %c0_0] : memref<8x72xbf16, #tpu.memory_space<vmem>>, vector<8x72xbf16>
    %c0_1 = arith.constant 0 : index
    %c0_2 = arith.constant 0 : index
    %1 = vector.load %arg1[%c0_1, %c0_2] : memref<72x512xbf16, #tpu.memory_space<vmem>>, vector<72x512xbf16>
    %cst = arith.constant dense<0.000000e+00> : vector<8x512xf32>
    %2 = tpu.matmul %0, %1, %cst {dimension_numbers = #tpu.dot_dimension_numbers<[1], [0], [0], [1], [0, 0, 1, 1], [], []>} : vector<8x72xbf16>, vector<72x512xbf16>, vector<8x512xf32> -> vector<8x512xf32>
    %c0_3 = arith.constant 0 : index
    %c0_4 = arith.constant 0 : index
    %3 = vector.load %arg3[%c0_3, %c0_4] : memref<8x1xf32, #tpu.memory_space<vmem>>, vector<8x1xf32>
    %4 = vector.broadcast %3 : vector<8x1xf32> to vector<8x512xf32>
    %5 = arith.addf %2, %4 : vector<8x512xf32>
    %c0_i32 = arith.constant 0 : i32
    %6 = arith.cmpi eq, %arg0, %c0_i32 : i32
    %7 = arith.extui %6 : i1 to i32
    %c0_i32_5 = arith.constant 0 : i32
    %8 = arith.cmpi ne, %7, %c0_i32_5 : i32
    scf.if %8 {
      %cst_20 = arith.constant 0.000000e+00 : f32
      %25 = vector.broadcast %cst_20 : f32 to vector<8x1xf32>
      %c0_21 = arith.constant 0 : index
      %c0_22 = arith.constant 0 : index
      %26 = vector.load %arg7[%c0_21, %c0_22] : memref<8x1xf32, #tpu.memory_space<vmem>>, vector<8x1xf32>
      tpu.vector_store %arg7[%c0_21, %c0_22], %25 {strides = array<i32>} : memref<8x1xf32, #tpu.memory_space<vmem>>, vector<8x1xf32>,
      %cst_23 = arith.constant 0.000000e+00 : f32
      %27 = vector.broadcast %cst_23 : f32 to vector<8x1xf32>
      %c0_24 = arith.constant 0 : index
      %c0_25 = arith.constant 0 : index
      %28 = vector.load %arg8[%c0_24, %c0_25] : memref<8x1xf32, #tpu.memory_space<vmem>>, vector<8x1xf32>
      tpu.vector_store %arg8[%c0_24, %c0_25], %27 {strides = array<i32>} : memref<8x1xf32, #tpu.memory_space<vmem>>, vector<8x1xf32>,
    } else {
    }
    %c0_6 = arith.constant 0 : index
    %c0_7 = arith.constant 0 : index
    %9 = vector.load %arg7[%c0_6, %c0_7] : memref<8x1xf32, #tpu.memory_space<vmem>>, vector<8x1xf32>
    %cst_8 = arith.constant dense<0.000000e+00> : vector<8xf32>
    %10 = vector.multi_reduction <add>, %5, %cst_8 [1] : vector<8x512xf32> to vector<8xf32>
    %11 = vector.shape_cast %10 : vector<8xf32> to vector<8x1xf32>
    %12 = arith.addf %9, %11 : vector<8x1xf32>
    %c0_9 = arith.constant 0 : index
    %c0_10 = arith.constant 0 : index
    %13 = vector.load %arg7[%c0_9, %c0_10] : memref<8x1xf32, #tpu.memory_space<vmem>>, vector<8x1xf32>
    tpu.vector_store %arg7[%c0_9, %c0_10], %12 {strides = array<i32>} : memref<8x1xf32, #tpu.memory_space<vmem>>, vector<8x1xf32>,
    %c0_11 = arith.constant 0 : index
    %c0_12 = arith.constant 0 : index
    %14 = vector.load %arg8[%c0_11, %c0_12] : memref<8x1xf32, #tpu.memory_space<vmem>>, vector<8x1xf32>
    %15 = arith.mulf %5, %5 : vector<8x512xf32>
    %cst_13 = arith.constant dense<0.000000e+00> : vector<8xf32>
    %16 = vector.multi_reduction <add>, %15, %cst_13 [1] : vector<8x512xf32> to vector<8xf32>
    %17 = vector.shape_cast %16 : vector<8xf32> to vector<8x1xf32>
    %18 = arith.addf %14, %17 : vector<8x1xf32>
    %c0_14 = arith.constant 0 : index
    %c0_15 = arith.constant 0 : index
    %19 = vector.load %arg8[%c0_14, %c0_15] : memref<8x1xf32, #tpu.memory_space<vmem>>, vector<8x1xf32>
    tpu.vector_store %arg8[%c0_14, %c0_15], %18 {strides = array<i32>} : memref<8x1xf32, #tpu.memory_space<vmem>>, vector<8x1xf32>,
    %c0_i32_16 = arith.constant 0 : i32
    %20 = arith.cmpi eq, %arg0, %c0_i32_16 : i32
    %21 = arith.extui %20 : i1 to i32
    %c0_i32_17 = arith.constant 0 : i32
    %22 = arith.cmpi ne, %21, %c0_i32_17 : i32
    scf.if %22 {
      %c0_20 = arith.constant 0 : index
      %c0_21 = arith.constant 0 : index
      %25 = vector.load %arg7[%c0_20, %c0_21] : memref<8x1xf32, #tpu.memory_space<vmem>>, vector<8x1xf32>
      %c0_22 = arith.constant 0 : index
      %c0_23 = arith.constant 0 : index
      %26 = vector.load %arg5[%c0_22, %c0_23] : memref<8x1xf32, #tpu.memory_space<vmem>>, vector<8x1xf32>
      tpu.vector_store %arg5[%c0_22, %c0_23], %25 {strides = array<i32>} : memref<8x1xf32, #tpu.memory_space<vmem>>, vector<8x1xf32>,
      %c0_24 = arith.constant 0 : index
      %c0_25 = arith.constant 0 : index
      %27 = vector.load %arg8[%c0_24, %c0_25] : memref<8x1xf32, #tpu.memory_space<vmem>>, vector<8x1xf32>
      %c0_26 = arith.constant 0 : index
      %c0_27 = arith.constant 0 : index
      %28 = vector.load %arg6[%c0_26, %c0_27] : memref<8x1xf32, #tpu.memory_space<vmem>>, vector<8x1xf32>
      tpu.vector_store %arg6[%c0_26, %c0_27], %27 {strides = array<i32>} : memref<8x1xf32, #tpu.memory_space<vmem>>, vector<8x1xf32>,
    } else {
    }
    %23 = arith.truncf %5 : vector<8x512xf32> to vector<8x512xbf16>
    %c0_18 = arith.constant 0 : index
    %c0_19 = arith.constant 0 : index
    %24 = vector.load %arg4[%c0_18, %c0_19] : memref<8x512xbf16, #tpu.memory_space<vmem>>, vector<8x512xbf16>
    tpu.vector_store %arg4[%c0_18, %c0_19], %23 {strides = array<i32>} : memref<8x512xbf16, #tpu.memory_space<vmem>>, vector<8x512xbf16>,
    return
  }
  func.func @transform_0(%arg0: i32) -> (i32, i32) {
    %c0_i32 = arith.constant 0 : i32
    %c0_i32_0 = arith.constant 0 : i32
    return %c0_i32, %arg0 : i32, i32
  }
  func.func @transform_1(%arg0: i32) -> (i32, i32) {
    %c0_i32 = arith.constant 0 : i32
    %c0_i32_0 = arith.constant 0 : i32
    %c0_i32_1 = arith.constant 0 : i32
    return %c0_i32, %c0_i32_0 : i32, i32
  }
  func.func @transform_2(%arg0: i32) -> (i32, i32) {
    %c0_i32 = arith.constant 0 : i32
    %c0_i32_0 = arith.constant 0 : i32
    %c0_i32_1 = arith.constant 0 : i32
    return %c0_i32, %c0_i32_0 : i32, i32
  }
  func.func @transform_3(%arg0: i32) -> (i32, i32) {
    %c0_i32 = arith.constant 0 : i32
    %c0_i32_0 = arith.constant 0 : i32
    return %c0_i32, %arg0 : i32, i32
  }
  func.func @transform_4(%arg0: i32) -> (i32, i32) {
    %c0_i32 = arith.constant 0 : i32
    %c0_i32_0 = arith.constant 0 : i32
    %c0_i32_1 = arith.constant 0 : i32
    return %c0_i32, %c0_i32_0 : i32, i32
  }
  func.func @transform_5(%arg0: i32) -> (i32, i32) {
    %c0_i32 = arith.constant 0 : i32
    %c0_i32_0 = arith.constant 0 : i32
    %c0_i32_1 = arith.constant 0 : i32
    return %c0_i32, %c0_i32_0 : i32, i32
  }
}

module attributes {stable_mosaic.version = 11 : i64} {
  func.func @_conv_mm_kernel(%arg0: i32, %arg1: memref<392x512xbf16, #tpu.memory_space<vmem>>, %arg2: memref<3x392xbf16, #tpu.memory_space<vmem>>, %arg3: memref<3x1xf32, #tpu.memory_space<vmem>>, %arg4: memref<3x512xf32, #tpu.memory_space<vmem>>) attributes {dimension_semantics = [#tpu.dimension_semantics<parallel>], iteration_bounds = array<i64: 1>, scalar_prefetch = 0 : i64, scratch_operands = 0 : i64, tpu.core_type = #tpu.core_type<tc>, window_params = [{transform_indices = @transform_0, window_bounds = array<i64: 392, 512>}, {pipeline_mode = #tpu.pipeline_mode<synchronous>, transform_indices = @transform_1, window_bounds = array<i64: 3, 392>}, {pipeline_mode = #tpu.pipeline_mode<synchronous>, transform_indices = @transform_2, window_bounds = array<i64: 3, 1>}, {transform_indices = @transform_3, window_bounds = array<i64: 3, 512>}]} {
    %c0 = arith.constant 0 : index
    %c0_0 = arith.constant 0 : index
    %0 = vector.load %arg2[%c0, %c0_0] : memref<3x392xbf16, #tpu.memory_space<vmem>>, vector<3x392xbf16>
    %c0_1 = arith.constant 0 : index
    %c0_2 = arith.constant 0 : index
    %1 = vector.load %arg1[%c0_1, %c0_2] : memref<392x512xbf16, #tpu.memory_space<vmem>>, vector<392x512xbf16>
    %cst = arith.constant dense<0.000000e+00> : vector<3x512xf32>
    %2 = tpu.matmul %0, %1, %cst {dimension_numbers = #tpu.dot_dimension_numbers<[1], [0], [0], [1], [0, 0, 1, 1], [], []>} : vector<3x392xbf16>, vector<392x512xbf16>, vector<3x512xf32> -> vector<3x512xf32>
    %c0_3 = arith.constant 0 : index
    %c0_4 = arith.constant 0 : index
    %3 = vector.load %arg3[%c0_3, %c0_4] : memref<3x1xf32, #tpu.memory_space<vmem>>, vector<3x1xf32>
    %4 = vector.broadcast %3 : vector<3x1xf32> to vector<3x512xf32>
    %5 = arith.addf %2, %4 : vector<3x512xf32>
    %6 = math.tanh %5 : vector<3x512xf32>
    %c0_5 = arith.constant 0 : index
    %c0_6 = arith.constant 0 : index
    %7 = vector.load %arg4[%c0_5, %c0_6] : memref<3x512xf32, #tpu.memory_space<vmem>>, vector<3x512xf32>
    tpu.vector_store %arg4[%c0_5, %c0_6], %6 {strides = array<i32>} : memref<3x512xf32, #tpu.memory_space<vmem>>, vector<3x512xf32>,
    return
  }
  func.func @transform_0(%arg0: i32) -> (i32, i32) {
    %c0_i32 = arith.constant 0 : i32
    %c0_i32_0 = arith.constant 0 : i32
    return %c0_i32, %arg0 : i32, i32
  }
  func.func @transform_1(%arg0: i32) -> (i32, i32) {
    %c0_i32 = arith.constant 0 : i32
    %c0_i32_0 = arith.constant 0 : i32
    %c0_i32_1 = arith.constant 0 : i32
    return %c0_i32, %c0_i32_0 : i32, i32
  }
  func.func @transform_2(%arg0: i32) -> (i32, i32) {
    %c0_i32 = arith.constant 0 : i32
    %c0_i32_0 = arith.constant 0 : i32
    %c0_i32_1 = arith.constant 0 : i32
    return %c0_i32, %c0_i32_0 : i32, i32
  }
  func.func @transform_3(%arg0: i32) -> (i32, i32) {
    %c0_i32 = arith.constant 0 : i32
    %c0_i32_0 = arith.constant 0 : i32
    return %c0_i32, %arg0 : i32, i32
  }
}

</mosaic_0001>

<llo_original>
// kernel: generator_forward.17
$region0: #{generator_forward.17}
  #allocation0 [shape = 'u32[]', space=smem, size = 0x4, offset = 0x4, fixed_abs, tag = 'smem constant byte address 0x4 - core index']
  #allocation1 [shape = 'u32[144,128]{1,0:T(1,128)}', space=vmem, size = 0x12000, scoped, tag = 'internal scratch']
  #allocation2 [shape = 'f32[8,1]{1,0:T(8,128)}', space=vmem, size = 0x1000, scoped, tag = 'scratch operand']
  #allocation3 [shape = 'f32[8,1]{1,0:T(8,128)}', space=vmem, size = 0x1000, scoped, tag = 'scratch operand']
  %s0 = inlined_call_operand.vmem [shape: bf16[147,512], index: 0, kind: input, shape index: {}]
  %s1 = inlined_call_operand.vmem [shape: bf16[8,147], index: 1, kind: input, shape index: {}]
  %s2 = inlined_call_operand.vmem [shape: f32[8,1], index: 2, kind: input, shape index: {}]
  %s3 = inlined_call_operand.vmem [shape: bf16[8,512], index: 3, kind: output, shape index: {0}]
  %s4 = inlined_call_operand.vmem [shape: f32[8,1], index: 4, kind: output, shape index: {1}]
  %s5 = inlined_call_operand.vmem [shape: f32[8,1], index: 5, kind: output, shape index: {2}]
  %6 = xla_tuple %s3, %s4, %s5
  %s7 = sld [smem:[#allocation0]]
  $region46: #{generator_forward.17} parent=0
    _
  %s9 = ssub.s32 1, %s7
  %s10 = scalar_select 0, %s9, %s7
  // Predicated region
  $region2: #{generator_forward.17} parent=0 // pred_check
    _
  $region3: #{generator_forward.17} parent=0 // pred_check_branch
    %12 = sbr.rel (0) target = $region5
  $region4: #{generator_forward.17} parent=0 // pred_region
    _
  $region5: #{generator_forward.17} parent=0 // pred_fallthru
    _
  // Predicated region
  $region6: #{generator_forward.17} parent=0 // pred_check
    _
  $region7: #{generator_forward.17} parent=0 // pred_check_branch
    %14 = sbr.rel (0) target = $region9
  $region8: #{generator_forward.17} parent=0 // pred_region
    _
  $region9: #{generator_forward.17} parent=0 // pred_fallthru
    _
  // Predicated region
  $region10: #{generator_forward.17} parent=0 // pred_check
    _
  $region11: #{generator_forward.17} parent=0 // pred_check_branch
    %16 = sbr.rel (0) target = $region13
  $region12: #{generator_forward.17} parent=0 // pred_region
    _
  $region13: #{generator_forward.17} parent=0 // pred_fallthru
    _
  %v18 = vld [vmem:[%s1] sm:$0xff]
  %v19 = vld [vmem:[%s0] sm:$0xff]
  %v20 = vld [vmem:[%s0 + $0x8] sm:$0xff]
  %v21 = vld [vmem:[%s0 + $0x10] sm:$0xff]
  %v22 = vld [vmem:[%s0 + $0x18] sm:$0xff]
  %v23 = vld [vmem:[%s0 + $0x20] sm:$0xff]
  %v24 = vld [vmem:[%s0 + $0x28] sm:$0xff]
  %v25 = vld [vmem:[%s0 + $0x30] sm:$0xff]
  %v26 = vld [vmem:[%s0 + $0x38] sm:$0xff]
  %v27 = vld [vmem:[%s0 + $0x40] sm:$0xff]
  %v28 = vld [vmem:[%s0 + $0x48] sm:$0xff]
  %v29 = vld [vmem:[%s0 + $0x50] sm:$0xff]
  %v30 = vld [vmem:[%s0 + $0x58] sm:$0xff]
  %v31 = vld [vmem:[%s0 + $0x60] sm:$0xff]
  %v32 = vld [vmem:[%s0 + $0x68] sm:$0xff]
  %v33 = vld [vmem:[%s0 + $0x70] sm:$0xff]
  %v34 = vld [vmem:[%s0 + $0x78] sm:$0xff]
  %v35 = vld [vmem:[%s0 + $0x80] sm:$0xff]
  %v36 = vld [vmem:[%s0 + $0x88] sm:$0xff]
  %v37 = vld [vmem:[%s0 + $0x90] sm:$0xff]
  %v38 = vld [vmem:[%s0 + $0x98] sm:$0xff]
  %v39 = vld [vmem:[%s0 + $0xa0] sm:$0xff]
  %v40 = vld [vmem:[%s0 + $0xa8] sm:$0xff]
  %v41 = vld [vmem:[%s0 + $0xb0] sm:$0xff]
  %v42 = vld [vmem:[%s0 + $0xb8] sm:$0xff]
  %v43 = vld [vmem:[%s0 + $0xc0] sm:$0xff]
  %v44 = vld [vmem:[%s0 + $0xc8] sm:$0xff]
  %v45 = vld [vmem:[%s0 + $0xd0] sm:$0xff]
  %v46 = vld [vmem:[%s0 + $0xd8] sm:$0xff]
  %v47 = vld [vmem:[%s0 + $0xe0] sm:$0xff]
  %v48 = vld [vmem:[%s0 + $0xe8] sm:$0xff]
  %v49 = vld [vmem:[%s0 + $0xf0] sm:$0xff]
  %v50 = vld [vmem:[%s0 + $0xf8] sm:$0xff]
  %v51 = vld [vmem:[%s0 + $0x100] sm:$0xff]
  %v52 = vld [vmem:[%s0 + $0x108] sm:$0xff]
  %v53 = vld [vmem:[%s0 + $0x110] sm:$0xff]
  %v54 = vld [vmem:[%s0 + $0x118] sm:$0xff]
  %v55 = vld [vmem:[%s0 + $0x120] sm:$0x33]
  %v56 = vld [vmem:[%s0 + $0x128] sm:$0x33]
  %v57 = vld [vmem:[%s2] sm:$0xff]
  %59 = vset.pattern.permute.xlu0 0
  %60 = vperm.xlu0 %59, %v57
  %v61 = vpop.permute.xlu0 %60
  %v64 = vunpack.c.l.b16 %v18
  %v65 = vunpack.c.h.b16 %v18
  %v66 = vpack.c.b16 %v64, %v64
  %v67 = vpack.c.b16 %v65, %v65
  %v107 = vunpack.c.l.b16 %v19
  %v108 = vunpack.c.h.b16 %v19
  %v109 = vunpack.c.l.b16 %v20
  %v110 = vunpack.c.h.b16 %v20
  %v111 = vunpack.c.l.b16 %v21
  %v112 = vunpack.c.h.b16 %v21
  %v113 = vunpack.c.l.b16 %v22
  %v114 = vunpack.c.h.b16 %v22
  %v115 = vunpack.c.l.b16 %v23
  %v116 = vunpack.c.h.b16 %v23
  %v117 = vunpack.c.l.b16 %v24
  %v118 = vunpack.c.h.b16 %v24
  %v119 = vunpack.c.l.b16 %v25
  %v120 = vunpack.c.h.b16 %v25
  %v121 = vunpack.c.l.b16 %v26
  %v122 = vunpack.c.h.b16 %v26
  %v123 = vunpack.c.l.b16 %v27
  %v124 = vunpack.c.h.b16 %v27
  %v125 = vunpack.c.l.b16 %v28
  %v126 = vunpack.c.h.b16 %v28
  %v127 = vunpack.c.l.b16 %v29
  %v128 = vunpack.c.h.b16 %v29
  %v129 = vunpack.c.l.b16 %v30
  %v130 = vunpack.c.h.b16 %v30
  %v131 = vunpack.c.l.b16 %v31
  %v132 = vunpack.c.h.b16 %v31
  %v133 = vunpack.c.l.b16 %v32
  %v134 = vunpack.c.h.b16 %v32
  %v135 = vunpack.c.l.b16 %v33
  %v136 = vunpack.c.h.b16 %v33
  %v137 = vunpack.c.l.b16 %v34
  %v138 = vunpack.c.h.b16 %v34
  %v139 = vunpack.c.l.b16 %v35
  %v140 = vunpack.c.h.b16 %v35
  %v141 = vunpack.c.l.b16 %v36
  %v142 = vunpack.c.h.b16 %v36
  %v143 = vunpack.c.l.b16 %v37
  %v144 = vunpack.c.h.b16 %v37
  %v145 = vunpack.c.l.b16 %v38
  %v146 = vunpack.c.h.b16 %v38
  %v147 = vunpack.c.l.b16 %v39
  %v148 = vunpack.c.h.b16 %v39
  %v149 = vunpack.c.l.b16 %v40
  %v150 = vunpack.c.h.b16 %v40
  %v151 = vunpack.c.l.b16 %v41
  %v152 = vunpack.c.h.b16 %v41
  %v153 = vunpack.c.l.b16 %v42
  %v154 = vunpack.c.h.b16 %v42
  %v155 = vunpack.c.l.b16 %v43
  %v156 = vunpack.c.h.b16 %v43
  %v157 = vunpack.c.l.b16 %v44
  %v158 = vunpack.c.h.b16 %v44
  %v159 = vunpack.c.l.b16 %v45
  %v160 = vunpack.c.h.b16 %v45
  %v161 = vunpack.c.l.b16 %v46
  %v162 = vunpack.c.h.b16 %v46
  %v163 = vunpack.c.l.b16 %v47
  %v164 = vunpack.c.h.b16 %v47
  %v165 = vunpack.c.l.b16 %v48
  %v166 = vunpack.c.h.b16 %v48
  %v167 = vunpack.c.l.b16 %v49
  %v168 = vunpack.c.h.b16 %v49
  %v169 = vunpack.c.l.b16 %v50
  %v170 = vunpack.c.h.b16 %v50
  %v171 = vunpack.c.l.b16 %v51
  %v172 = vunpack.c.h.b16 %v51
  %v173 = vunpack.c.l.b16 %v52
  %v174 = vunpack.c.h.b16 %v52
  %v175 = vunpack.c.l.b16 %v53
  %v176 = vunpack.c.h.b16 %v53
  %v177 = vunpack.c.l.b16 %v54
  %v178 = vunpack.c.h.b16 %v54
  %v179 = vunpack.c.l.b16 %v55
  %v180 = vunpack.c.h.b16 %v55
  %v181 = vunpack.c.l.b16 %v56
  %v182 = vunpack.c.h.b16 %v56
  %v183 = vpack.c.b16 %v111, %v107
  %v184 = vpack.c.b16 %v112, %v108
  %v185 = vpack.c.b16 %v113, %v109
  %v186 = vpack.c.b16 %v114, %v110
  %v187 = vpack.c.b16 %v119, %v115
  %v188 = vpack.c.b16 %v120, %v116
  %v189 = vpack.c.b16 %v121, %v117
  %v190 = vpack.c.b16 %v122, %v118
  %v191 = vpack.c.b16 %v127, %v123
  %v192 = vpack.c.b16 %v128, %v124
  %v193 = vpack.c.b16 %v129, %v125
  %v194 = vpack.c.b16 %v130, %v126
  %v195 = vpack.c.b16 %v135, %v131
  %v196 = vpack.c.b16 %v136, %v132
  %v197 = vpack.c.b16 %v137, %v133
  %v198 = vpack.c.b16 %v138, %v134
  %v199 = vpack.c.b16 %v143, %v139
  %v200 = vpack.c.b16 %v144, %v140
  %v201 = vpack.c.b16 %v145, %v141
  %v202 = vpack.c.b16 %v146, %v142
  %v203 = vpack.c.b16 %v151, %v147
  %v204 = vpack.c.b16 %v152, %v148
  %v205 = vpack.c.b16 %v153, %v149
  %v206 = vpack.c.b16 %v154, %v150
  %v207 = vpack.c.b16 %v159, %v155
  %v208 = vpack.c.b16 %v160, %v156
  %v209 = vpack.c.b16 %v161, %v157
  %v210 = vpack.c.b16 %v162, %v158
  %v211 = vpack.c.b16 %v167, %v163
  %v212 = vpack.c.b16 %v168, %v164
  %v213 = vpack.c.b16 %v169, %v165
  %v214 = vpack.c.b16 %v170, %v166
  %v215 = vpack.c.b16 %v175, %v171
  %v216 = vpack.c.b16 %v176, %v172
  %v217 = vpack.c.b16 %v177, %v173
  %v218 = vpack.c.b16 %v178, %v174
  %v219 = vpack.c.b16 %v179, %v179
  %v220 = vpack.c.b16 %v180, %v180
  %v221 = vpack.c.b16 %v181, %v181
  %v222 = vpack.c.b16 %v182, %v182
  %vm259 = vcmask 154624
  %v261 = vsel %vm259, %v67, 0
  %vm263 = vcmask 1040384
  %vm264 = vcmask 1041408
  %v265 = vsel %vm263, 4294967295, 65535
  %v266 = vsel %vm264, %v265, 0
  %v268 = vand.u32 %v219, %v266
  %v271 = vand.u32 %v220, %v266
  %v274 = vand.u32 %v221, %v266
  %v277 = vand.u32 %v222, %v266
  %279 = vmatprep.subr.bf16.mxu0 %v184
  %280 = vmatpush1.bf16.msra.mxu0 %v183
  %281 = vmatprep.subr.bf16.mxu0 %v188
  %282 = vmatpush1.bf16.msra.mxu0 %v187
  %283 = vmatprep.subr.bf16.mxu0 %v192
  %284 = vmatpush1.bf16.msra.mxu0 %v191
  %285 = vmatprep.subr.bf16.mxu0 %v196
  %286 = vmatpush1.bf16.msra.mxu0 %v195
  %287 = vmatprep.subr.bf16.mxu0 %v200
  %288 = vmatpush1.bf16.msra.mxu0 %v199
  %289 = vmatprep.subr.bf16.mxu0 %v204
  %290 = vmatpush1.bf16.msra.mxu0 %v203
  %291 = vmatprep.subr.bf16.mxu0 %v208
  %292 = vmatpush1.bf16.msra.mxu0 %v207
  %293 = vmatprep.subr.bf16.mxu0 %v212
  %294 = vmatpush1.bf16.msra.mxu0 %v211
  %295 = vmatprep.subr.bf16.mxu0 %v216
  %296 = vmatpush1.bf16.msra.mxu0 %v215
  %297 = vmatprep.subr.bf16.mxu0 %v271
  %298 = vmatpush1.bf16.msra.mxu0 %v268
  %299 = vmatprep.subr.bf16.mxu0 0
  %300 = vmatpush1.bf16.msra.mxu0 0
  %301 = vmatprep.subr.bf16.mxu0 0
  %302 = vmatpush1.bf16.msra.mxu0 0
  %303 = vmatprep.subr.bf16.mxu0 0
  %304 = vmatpush1.bf16.msra.mxu0 0
  %305 = vmatprep.subr.bf16.mxu0 0
  %306 = vmatpush1.bf16.msra.mxu0 0
  %307 = vmatprep.subr.bf16.mxu0 0
  %308 = vmatpush1.bf16.msra.mxu0 0
  %309 = vmatprep.subr.bf16.mxu0 0
  %310 = vmatpush1.bf16.msra.mxu0 0
  %311 = vmatprep.mubr.bf16.mxu0 %v261
  %312 = vmatmul.mubr.bf16.gmra.mrb[0].mxu0 %v66
  %v313 = vpop.f32.mrb[0].mxu0
  %v314 = vadd.f32 %v61, %v313
  %v315 = vpop.f32.mrb[0].mxu0
  %v316 = vadd.f32 %v61, %v315
  %v317 = vpop.f32.mrb[0].mxu0
  %v318 = vpop.f32.mrb[0].mxu0
  %319 = vdwg.mxu0
  %320 = vmatprep.subr.bf16.mxu0 %v186
  %321 = vmatpush1.bf16.msra.mxu0 %v185
  %322 = vmatprep.subr.bf16.mxu0 %v190
  %323 = vmatpush1.bf16.msra.mxu0 %v189
  %324 = vmatprep.subr.bf16.mxu0 %v194
  %325 = vmatpush1.bf16.msra.mxu0 %v193
  %326 = vmatprep.subr.bf16.mxu0 %v198
  %327 = vmatpush1.bf16.msra.mxu0 %v197
  %328 = vmatprep.subr.bf16.mxu0 %v202
  %329 = vmatpush1.bf16.msra.mxu0 %v201
  %330 = vmatprep.subr.bf16.mxu0 %v206
  %331 = vmatpush1.bf16.msra.mxu0 %v205
  %332 = vmatprep.subr.bf16.mxu0 %v210
  %333 = vmatpush1.bf16.msra.mxu0 %v209
  %334 = vmatprep.subr.bf16.mxu0 %v214
  %335 = vmatpush1.bf16.msra.mxu0 %v213
  %336 = vmatprep.subr.bf16.mxu0 %v218
  %337 = vmatpush1.bf16.msra.mxu0 %v217
  %338 = vmatprep.subr.bf16.mxu0 %v277
  %339 = vmatpush1.bf16.msra.mxu0 %v274
  %340 = vmatprep.subr.bf16.mxu0 0
  %341 = vmatpush1.bf16.msra.mxu0 0
  %342 = vmatprep.subr.bf16.mxu0 0
  %343 = vmatpush1.bf16.msra.mxu0 0
  %344 = vmatprep.subr.bf16.mxu0 0
  %345 = vmatpush1.bf16.msra.mxu0 0
  %346 = vmatprep.subr.bf16.mxu0 0
  %347 = vmatpush1.bf16.msra.mxu0 0
  %348 = vmatprep.subr.bf16.mxu0 0
  %349 = vmatpush1.bf16.msra.mxu0 0
  %350 = vmatprep.subr.bf16.mxu0 0
  %351 = vmatpush1.bf16.msra.mxu0 0
  %352 = vmatprep.mubr.bf16.mxu0 %v261
  %353 = vmatmul.mubr.bf16.gmra.mrb[0].mxu0 %v66
  %v354 = vpop.f32.mrb[0].mxu0
  %v355 = vadd.f32 %v61, %v354
  %v356 = vpop.f32.mrb[0].mxu0
  %v357 = vadd.f32 %v61, %v356
  %v358 = vpop.f32.mrb[0].mxu0
  %v359 = vpop.f32.mrb[0].mxu0
  %360 = vdwg.mxu0
  %p361 = scmp.eq.s32.totalorder 0, 0
  // Predicated region
  $region14: #{generator_forward.17} parent=0 // pred_check
    %p362 = pneg %p361
  $region15: #{generator_forward.17} parent=0 // pred_check_branch
    %364 = sbr.rel (%p362) target = $region17
  $region16: #{generator_forward.17} parent=0 // pred_region
    %vm365 = vcmask 7168
    %366 = vst.msk [vmem:[#allocation2] sm:$0xff] %vm365, 0.0
    %367 = vst.msk [vmem:[#allocation3] sm:$0xff] %vm365, 0.0
  $region17: #{generator_forward.17} parent=0 // pred_fallthru
    _
  %v368 = vld [vmem:[#allocation2] sm:$0xff]
  %v369 = vadd.f32 %v314, %v316
  %v370 = vadd.f32 %v369, %v355
  %v371 = vadd.f32 %v370, %v357
  %372 = vadd.xlane.f32.xlu0 %v371
  %v373 = vpop.xlane.xlu0 %372
  %v374 = vadd.f32 %v368, %v373
  %vm375 = vcmask 7168
  %376 = vst.msk [vmem:[#allocation2] sm:$0xff] %vm375, %v374
  %v377 = vld [vmem:[#allocation3] sm:$0xff]
  %v378 = vmul.f32 %v314, %v314
  %v379 = vmul.f32 %v316, %v316
  %v380 = vmul.f32 %v355, %v355
  %v381 = vmul.f32 %v357, %v357
  %v382 = vadd.f32 %v378, %v379
  %v383 = vadd.f32 %v382, %v380
  %v384 = vadd.f32 %v383, %v381
  %385 = vadd.xlane.f32.xlu0 %v384
  %v386 = vpop.xlane.xlu0 %385
  %v387 = vadd.f32 %v377, %v386
  %388 = vst.msk [vmem:[#allocation3] sm:$0xff] %vm375, %v387
  // Predicated region
  $region18: #{generator_forward.17} parent=0 // pred_check
    %p389 = pneg %p361
  $region19: #{generator_forward.17} parent=0 // pred_check_branch
    %391 = sbr.rel (%p389) target = $region21
  $region20: #{generator_forward.17} parent=0 // pred_region
    %v392 = vld [vmem:[#allocation2] sm:$0xff]
    %393 = vst.msk [vmem:[%s4] sm:$0xff] %vm375, %v392
    %v394 = vld [vmem:[#allocation3] sm:$0xff]
    %395 = vst.msk [vmem:[%s5] sm:$0xff] %vm375, %v394
  $region21: #{generator_forward.17} parent=0 // pred_fallthru
    _
  %v396 = vpack.c.bf16 %v314, %v314
  %v397 = vpack.c.bf16 %v316, %v316
  %v398 = vpack.c.bf16 %v355, %v355
  %v399 = vpack.c.bf16 %v357, %v357
  %v404 = vunpack.c.l.b16 %v396
  %v405 = vunpack.c.l.b16 %v397
  %v406 = vunpack.c.l.b16 %v398
  %v407 = vunpack.c.l.b16 %v399
  %v408 = vpack.c.b16 %v405, %v404
  %v409 = vpack.c.b16 %v407, %v406
  %412 = vst [vmem:[%s3] sm:$0xff] %v408
  %413 = vst [vmem:[%s3 + $0x8] sm:$0xff] %v409
  // Predicated region
  $region22: #{generator_forward.17} parent=0 // pred_check
    _
  $region23: #{generator_forward.17} parent=0 // pred_check_branch
    %415 = sbr.rel (0) target = $region25
  $region24: #{generator_forward.17} parent=0 // pred_region
    _
  $region25: #{generator_forward.17} parent=0 // pred_fallthru
    _
  // Predicated region
  $region26: #{generator_forward.17} parent=0 // pred_check
    _
  $region27: #{generator_forward.17} parent=0 // pred_check_branch
    %417 = sbr.rel (0) target = $region29
  $region28: #{generator_forward.17} parent=0 // pred_region
    _
  $region29: #{generator_forward.17} parent=0 // pred_fallthru
    _
  // Predicated region
  $region30: #{generator_forward.17} parent=0 // pred_check
    _
  $region31: #{generator_forward.17} parent=0 // pred_check_branch
    %419 = sbr.rel (0) target = $region33
  $region32: #{generator_forward.17} parent=0 // pred_region
    _
  $region33: #{generator_forward.17} parent=0 // pred_fallthru
    _
  // Predicated region
  $region34: #{generator_forward.17} parent=0 // pred_check
    _
  $region35: #{generator_forward.17} parent=0 // pred_check_branch
    %421 = sbr.rel (0) target = $region37
  $region36: #{generator_forward.17} parent=0 // pred_region
    _
  $region37: #{generator_forward.17} parent=0 // pred_fallthru
    _
  // Predicated region
  $region38: #{generator_forward.17} parent=0 // pred_check
    _
  $region39: #{generator_forward.17} parent=0 // pred_check_branch
    %423 = sbr.rel (0) target = $region41
  $region40: #{generator_forward.17} parent=0 // pred_region
    _
  $region41: #{generator_forward.17} parent=0 // pred_fallthru
    _
  // Predicated region
  $region42: #{generator_forward.17} parent=0 // pred_check
    _
  $region43: #{generator_forward.17} parent=0 // pred_check_branch
    %425 = sbr.rel (0) target = $region45
  $region44: #{generator_forward.17} parent=0 // pred_region
    _
  $region45: #{generator_forward.17} parent=0 // pred_fallthru
    _

// kernel: generator_forward.18
$region0: #{generator_forward.18}
  #allocation0 [shape = 'u32[]', space=smem, size = 0x4, offset = 0x4, fixed_abs, tag = 'smem constant byte address 0x4 - core index']
  #allocation1 [shape = 'u32[144,128]{1,0:T(1,128)}', space=vmem, size = 0x12000, scoped, tag = 'internal scratch']
  %s0 = inlined_call_operand.vmem [shape: bf16[72,128], index: 0, kind: input, shape index: {}]
  %s1 = inlined_call_operand.vmem [shape: bf16[16,72], index: 1, kind: input, shape index: {}]
  %s2 = inlined_call_operand.vmem [shape: f32[16,1], index: 2, kind: input, shape index: {}]
  %s3 = inlined_call_operand.vmem [shape: bf16[16,128], index: 3, kind: output, shape index: {}]
  %s4 = sld [smem:[#allocation0]]
  $region22: #{generator_forward.18} parent=0
    _
  %s6 = ssub.s32 1, %s4
  %s7 = scalar_select 0, %s6, %s4
  // Predicated region
  $region2: #{generator_forward.18} parent=0 // pred_check
    _
  $region3: #{generator_forward.18} parent=0 // pred_check_branch
    %9 = sbr.rel (0) target = $region5
  $region4: #{generator_forward.18} parent=0 // pred_region
    _
  $region5: #{generator_forward.18} parent=0 // pred_fallthru
    _
  // Predicated region
  $region6: #{generator_forward.18} parent=0 // pred_check
    _
  $region7: #{generator_forward.18} parent=0 // pred_check_branch
    %11 = sbr.rel (0) target = $region9
  $region8: #{generator_forward.18} parent=0 // pred_region
    _
  $region9: #{generator_forward.18} parent=0 // pred_fallthru
    _
  // Predicated region
  $region10: #{generator_forward.18} parent=0 // pred_check
    _
  $region11: #{generator_forward.18} parent=0 // pred_check_branch
    %13 = sbr.rel (0) target = $region13
  $region12: #{generator_forward.18} parent=0 // pred_region
    _
  $region13: #{generator_forward.18} parent=0 // pred_fallthru
    _
  %v15 = vld [vmem:[%s1] sm:$0xf]
  %v16 = vld [vmem:[%s1 + $0x4] sm:$0xf]
  %v17 = vld [vmem:[%s0] sm:$0xf]
  %v18 = vld [vmem:[%s0 + $0x4] sm:$0xf]
  %v19 = vld [vmem:[%s0 + $0x8] sm:$0xf]
  %v20 = vld [vmem:[%s0 + $0xc] sm:$0xf]
  %v21 = vld [vmem:[%s0 + $0x10] sm:$0xf]
  %v22 = vld [vmem:[%s0 + $0x14] sm:$0xf]
  %v23 = vld [vmem:[%s0 + $0x18] sm:$0xf]
  %v24 = vld [vmem:[%s0 + $0x1c] sm:$0xf]
  %v25 = vld [vmem:[%s0 + $0x20] sm:$0xf]
  %v26 = vld [vmem:[%s2] sm:$0xff]
  %v27 = vld [vmem:[%s2 + $0x8] sm:$0xff]
  %29 = vset.pattern.permute.xlu0 0
  %30 = vperm.xlu0 %29, %v26
  %v31 = vpop.permute.xlu0 %30
  %34 = vset.pattern.permute.xlu0 0
  %35 = vperm.xlu0 %34, %v27
  %v36 = vpop.permute.xlu0 %35
  %v40 = vunpack.c.l.b16 %v15
  %v41 = vunpack.c.l.b16 %v16
  %v42 = vpack.c.b16 %v41, %v40
  %v52 = vunpack.c.l.b16 %v17
  %v53 = vunpack.c.l.b16 %v18
  %v54 = vunpack.c.l.b16 %v19
  %v55 = vunpack.c.l.b16 %v20
  %v56 = vunpack.c.l.b16 %v21
  %v57 = vunpack.c.l.b16 %v22
  %v58 = vunpack.c.l.b16 %v23
  %v59 = vunpack.c.l.b16 %v24
  %v60 = vunpack.c.l.b16 %v25
  %v61 = vpack.c.b16 %v53, %v52
  %v62 = vpack.c.b16 %v55, %v54
  %v63 = vpack.c.b16 %v57, %v56
  %v64 = vpack.c.b16 %v59, %v58
  %v65 = vpack.c.b16 %v60, %v60
  %vm70 = vcmask 588800
  %v72 = vsel %vm70, %v42, 0
  %vm74 = vcmask 1043456
  %v76 = vsel %vm74, %v65, 0
  %78 = vmatprep.subr.bf16.mxu0 0
  %79 = vmatpush1.bf16.msra.mxu0 %v61
  %80 = vmatprep.subr.bf16.mxu0 0
  %81 = vmatpush1.bf16.msra.mxu0 %v62
  %82 = vmatprep.subr.bf16.mxu0 0
  %83 = vmatpush1.bf16.msra.mxu0 %v63
  %84 = vmatprep.subr.bf16.mxu0 0
  %85 = vmatpush1.bf16.msra.mxu0 %v64
  %86 = vmatprep.subr.bf16.mxu0 0
  %87 = vmatpush1.bf16.msra.mxu0 %v76
  %88 = vmatprep.subr.bf16.mxu0 0
  %89 = vmatpush1.bf16.msra.mxu0 0
  %90 = vmatprep.subr.bf16.mxu0 0
  %91 = vmatpush1.bf16.msra.mxu0 0
  %92 = vmatprep.subr.bf16.mxu0 0
  %93 = vmatpush1.bf16.msra.mxu0 0
  %94 = vmatprep.subr.bf16.mxu0 0
  %95 = vmatpush1.bf16.msra.mxu0 0
  %96 = vmatprep.subr.bf16.mxu0 0
  %97 = vmatpush1.bf16.msra.mxu0 0
  %98 = vmatprep.subr.bf16.mxu0 0
  %99 = vmatpush1.bf16.msra.mxu0 0
  %100 = vmatprep.subr.bf16.mxu0 0
  %101 = vmatpush1.bf16.msra.mxu0 0
  %102 = vmatprep.subr.bf16.mxu0 0
  %103 = vmatpush1.bf16.msra.mxu0 0
  %104 = vmatprep.subr.bf16.mxu0 0
  %105 = vmatpush1.bf16.msra.mxu0 0
  %106 = vmatprep.subr.bf16.mxu0 0
  %107 = vmatpush1.bf16.msra.mxu0 0
  %108 = vmatprep.subr.bf16.mxu0 0
  %109 = vmatpush1.bf16.msra.mxu0 0
  %110 = vmatprep.mubr.bf16.mxu0 0
  %111 = vmatmul.mubr.bf16.gmra.mrb[0].mxu0 %v72
  %v112 = vpop.f32.mrb[0].mxu0
  %v113 = vadd.f32 %v31, %v112
  %v114 = vpop.f32.mrb[0].mxu0
  %v115 = vpop.f32.mrb[0].mxu0
  %v116 = vadd.f32 %v36, %v115
  %v117 = vpop.f32.mrb[0].mxu0
  %118 = vdwg.mxu0
  %v119 = vpack.c.bf16 %v116, %v113
  %v121 = vunpack.c.l.b16 %v119
  %v122 = vunpack.c.h.b16 %v119
  %v123 = vpack.c.b16 %v121, %v121
  %v124 = vpack.c.b16 %v122, %v122
  %127 = vst [vmem:[%s3] sm:$0xf] %v123
  %128 = vst [vmem:[%s3 + $0x4] sm:$0xf] %v124
  // Predicated region
  $region14: #{generator_forward.18} parent=0 // pred_check
    _
  $region15: #{generator_forward.18} parent=0 // pred_check_branch
    %130 = sbr.rel (0) target = $region17
  $region16: #{generator_forward.18} parent=0 // pred_region
    _
  $region17: #{generator_forward.18} parent=0 // pred_fallthru
    _
  // Predicated region
  $region18: #{generator_forward.18} parent=0 // pred_check
    _
  $region19: #{generator_forward.18} parent=0 // pred_check_branch
    %132 = sbr.rel (0) target = $region21
  $region20: #{generator_forward.18} parent=0 // pred_region
    _
  $region21: #{generator_forward.18} parent=0 // pred_fallthru
    _

// kernel: generator_forward.19
$region0: #{generator_forward.19}
  #allocation0 [shape = 'u32[]', space=smem, size = 0x4, offset = 0x4, fixed_abs, tag = 'smem constant byte address 0x4 - core index']
  #allocation1 [shape = 'u32[144,128]{1,0:T(1,128)}', space=vmem, size = 0x12000, scoped, tag = 'internal scratch']
  #allocation2 [shape = 'f32[16,1]{1,0:T(8,128)}', space=vmem, size = 0x2000, scoped, tag = 'scratch operand']
  #allocation3 [shape = 'f32[16,1]{1,0:T(8,128)}', space=vmem, size = 0x2000, scoped, tag = 'scratch operand']
  %s0 = inlined_call_operand.vmem [shape: bf16[144,128], index: 0, kind: input, shape index: {}]
  %s1 = inlined_call_operand.vmem [shape: bf16[16,144], index: 1, kind: input, shape index: {}]
  %s2 = inlined_call_operand.vmem [shape: f32[16,1], index: 2, kind: input, shape index: {}]
  %s3 = inlined_call_operand.vmem [shape: bf16[16,128], index: 3, kind: output, shape index: {0}]
  %s4 = inlined_call_operand.vmem [shape: f32[16,1], index: 4, kind: output, shape index: {1}]
  %s5 = inlined_call_operand.vmem [shape: f32[16,1], index: 5, kind: output, shape index: {2}]
  %6 = xla_tuple %s3, %s4, %s5
  %s7 = sld [smem:[#allocation0]]
  $region46: #{generator_forward.19} parent=0
    _
  %s9 = ssub.s32 1, %s7
  %s10 = scalar_select 0, %s9, %s7
  // Predicated region
  $region2: #{generator_forward.19} parent=0 // pred_check
    _
  $region3: #{generator_forward.19} parent=0 // pred_check_branch
    %12 = sbr.rel (0) target = $region5
  $region4: #{generator_forward.19} parent=0 // pred_region
    _
  $region5: #{generator_forward.19} parent=0 // pred_fallthru
    _
  // Predicated region
  $region6: #{generator_forward.19} parent=0 // pred_check
    _
  $region7: #{generator_forward.19} parent=0 // pred_check_branch
    %14 = sbr.rel (0) target = $region9
  $region8: #{generator_forward.19} parent=0 // pred_region
    _
  $region9: #{generator_forward.19} parent=0 // pred_fallthru
    _
  // Predicated region
  $region10: #{generator_forward.19} parent=0 // pred_check
    _
  $region11: #{generator_forward.19} parent=0 // pred_check_branch
    %16 = sbr.rel (0) target = $region13
  $region12: #{generator_forward.19} parent=0 // pred_region
    _
  $region13: #{generator_forward.19} parent=0 // pred_fallthru
    _
  %v18 = vld [vmem:[%s1] sm:$0xff]
  %v19 = vld [vmem:[%s1 + $0x8] sm:$0xff]
  %v20 = vld [vmem:[%s0] sm:$0xf]
  %v21 = vld [vmem:[%s0 + $0x4] sm:$0xf]
  %v22 = vld [vmem:[%s0 + $0x8] sm:$0xf]
  %v23 = vld [vmem:[%s0 + $0xc] sm:$0xf]
  %v24 = vld [vmem:[%s0 + $0x10] sm:$0xf]
  %v25 = vld [vmem:[%s0 + $0x14] sm:$0xf]
  %v26 = vld [vmem:[%s0 + $0x18] sm:$0xf]
  %v27 = vld [vmem:[%s0 + $0x1c] sm:$0xf]
  %v28 = vld [vmem:[%s0 + $0x20] sm:$0xf]
  %v29 = vld [vmem:[%s0 + $0x24] sm:$0xf]
  %v30 = vld [vmem:[%s0 + $0x28] sm:$0xf]
  %v31 = vld [vmem:[%s0 + $0x2c] sm:$0xf]
  %v32 = vld [vmem:[%s0 + $0x30] sm:$0xf]
  %v33 = vld [vmem:[%s0 + $0x34] sm:$0xf]
  %v34 = vld [vmem:[%s0 + $0x38] sm:$0xf]
  %v35 = vld [vmem:[%s0 + $0x3c] sm:$0xf]
  %v36 = vld [vmem:[%s0 + $0x40] sm:$0xf]
  %v37 = vld [vmem:[%s0 + $0x44] sm:$0xf]
  %v38 = vld [vmem:[%s2] sm:$0xff]
  %v39 = vld [vmem:[%s2 + $0x8] sm:$0xff]
  %41 = vset.pattern.permute.xlu0 0
  %42 = vperm.xlu0 %41, %v38
  %v43 = vpop.permute.xlu0 %42
  %46 = vset.pattern.permute.xlu0 0
  %47 = vperm.xlu0 %46, %v39
  %v48 = vpop.permute.xlu0 %47
  %v52 = vunpack.c.l.b16 %v18
  %v53 = vunpack.c.h.b16 %v18
  %v54 = vunpack.c.l.b16 %v19
  %v55 = vunpack.c.h.b16 %v19
  %v56 = vpack.c.b16 %v54, %v52
  %v57 = vpack.c.b16 %v55, %v53
  %v77 = vunpack.c.l.b16 %v20
  %v78 = vunpack.c.l.b16 %v21
  %v79 = vunpack.c.l.b16 %v22
  %v80 = vunpack.c.l.b16 %v23
  %v81 = vunpack.c.l.b16 %v24
  %v82 = vunpack.c.l.b16 %v25
  %v83 = vunpack.c.l.b16 %v26
  %v84 = vunpack.c.l.b16 %v27
  %v85 = vunpack.c.l.b16 %v28
  %v86 = vunpack.c.l.b16 %v29
  %v87 = vunpack.c.l.b16 %v30
  %v88 = vunpack.c.l.b16 %v31
  %v89 = vunpack.c.l.b16 %v32
  %v90 = vunpack.c.l.b16 %v33
  %v91 = vunpack.c.l.b16 %v34
  %v92 = vunpack.c.l.b16 %v35
  %v93 = vunpack.c.l.b16 %v36
  %v94 = vunpack.c.l.b16 %v37
  %v95 = vpack.c.b16 %v78, %v77
  %v96 = vpack.c.b16 %v80, %v79
  %v97 = vpack.c.b16 %v82, %v81
  %v98 = vpack.c.b16 %v84, %v83
  %v99 = vpack.c.b16 %v86, %v85
  %v100 = vpack.c.b16 %v88, %v87
  %v101 = vpack.c.b16 %v90, %v89
  %v102 = vpack.c.b16 %v92, %v91
  %v103 = vpack.c.b16 %v94, %v93
  %vm113 = vcmask 130048
  %v115 = vsel %vm113, %v57, 0
  %117 = vmatprep.subr.bf16.mxu0 0
  %118 = vmatpush1.bf16.msra.mxu0 %v95
  %119 = vmatprep.subr.bf16.mxu0 0
  %120 = vmatpush1.bf16.msra.mxu0 %v96
  %121 = vmatprep.subr.bf16.mxu0 0
  %122 = vmatpush1.bf16.msra.mxu0 %v97
  %123 = vmatprep.subr.bf16.mxu0 0
  %124 = vmatpush1.bf16.msra.mxu0 %v98
  %125 = vmatprep.subr.bf16.mxu0 0
  %126 = vmatpush1.bf16.msra.mxu0 %v99
  %127 = vmatprep.subr.bf16.mxu0 0
  %128 = vmatpush1.bf16.msra.mxu0 %v100
  %129 = vmatprep.subr.bf16.mxu0 0
  %130 = vmatpush1.bf16.msra.mxu0 %v101
  %131 = vmatprep.subr.bf16.mxu0 0
  %132 = vmatpush1.bf16.msra.mxu0 %v102
  %133 = vmatprep.subr.bf16.mxu0 0
  %134 = vmatpush1.bf16.msra.mxu0 %v103
  %135 = vmatprep.subr.bf16.mxu0 0
  %136 = vmatpush1.bf16.msra.mxu0 0
  %137 = vmatprep.subr.bf16.mxu0 0
  %138 = vmatpush1.bf16.msra.mxu0 0
  %139 = vmatprep.subr.bf16.mxu0 0
  %140 = vmatpush1.bf16.msra.mxu0 0
  %141 = vmatprep.subr.bf16.mxu0 0
  %142 = vmatpush1.bf16.msra.mxu0 0
  %143 = vmatprep.subr.bf16.mxu0 0
  %144 = vmatpush1.bf16.msra.mxu0 0
  %145 = vmatprep.subr.bf16.mxu0 0
  %146 = vmatpush1.bf16.msra.mxu0 0
  %147 = vmatprep.subr.bf16.mxu0 0
  %148 = vmatpush1.bf16.msra.mxu0 0
  %149 = vmatprep.mubr.bf16.mxu0 %v115
  %150 = vmatmul.mubr.bf16.gmra.mrb[0].mxu0 %v56
  %v151 = vpop.f32.mrb[0].mxu0
  %v152 = vadd.f32 %v43, %v151
  %v153 = vpop.f32.mrb[0].mxu0
  %v154 = vpop.f32.mrb[0].mxu0
  %v155 = vadd.f32 %v48, %v154
  %v156 = vpop.f32.mrb[0].mxu0
  %157 = vdwg.mxu0
  %p158 = scmp.eq.s32.totalorder 0, 0
  // Predicated region
  $region14: #{generator_forward.19} parent=0 // pred_check
    %p159 = pneg %p158
  $region15: #{generator_forward.19} parent=0 // pred_check_branch
    %161 = sbr.rel (%p159) target = $region17
  $region16: #{generator_forward.19} parent=0 // pred_region
    %vm162 = vcmask 7168
    %163 = vst.msk [vmem:[#allocation2] sm:$0xff] %vm162, 0.0
    %164 = vst.msk [vmem:[#allocation2 + $0x8] sm:$0xff] %vm162, 0.0
    %165 = vst.msk [vmem:[#allocation3] sm:$0xff] %vm162, 0.0
    %166 = vst.msk [vmem:[#allocation3 + $0x8] sm:$0xff] %vm162, 0.0
  $region17: #{generator_forward.19} parent=0 // pred_fallthru
    _
  %v167 = vld [vmem:[#allocation2] sm:$0xff]
  %v168 = vld [vmem:[#allocation2 + $0x8] sm:$0xff]
  %169 = vadd.xlane.f32.xlu0 %v152
  %v170 = vpop.xlane.xlu0 %169
  %171 = vadd.xlane.f32.xlu0 %v155
  %v172 = vpop.xlane.xlu0 %171
  %v173 = vadd.f32 %v167, %v170
  %v174 = vadd.f32 %v168, %v172
  %vm175 = vcmask 7168
  %176 = vst.msk [vmem:[#allocation2] sm:$0xff] %vm175, %v173
  %177 = vst.msk [vmem:[#allocation2 + $0x8] sm:$0xff] %vm175, %v174
  %v178 = vld [vmem:[#allocation3] sm:$0xff]
  %v179 = vld [vmem:[#allocation3 + $0x8] sm:$0xff]
  %v180 = vmul.f32 %v152, %v152
  %v181 = vmul.f32 %v155, %v155
  %182 = vadd.xlane.f32.xlu0 %v180
  %v183 = vpop.xlane.xlu0 %182
  %184 = vadd.xlane.f32.xlu0 %v181
  %v185 = vpop.xlane.xlu0 %184
  %v186 = vadd.f32 %v178, %v183
  %v187 = vadd.f32 %v179, %v185
  %188 = vst.msk [vmem:[#allocation3] sm:$0xff] %vm175, %v186
  %189 = vst.msk [vmem:[#allocation3 + $0x8] sm:$0xff] %vm175, %v187
  // Predicated region
  $region18: #{generator_forward.19} parent=0 // pred_check
    %p190 = pneg %p158
  $region19: #{generator_forward.19} parent=0 // pred_check_branch
    %192 = sbr.rel (%p190) target = $region21
  $region20: #{generator_forward.19} parent=0 // pred_region
    %v193 = vld [vmem:[#allocation2] sm:$0xff]
    %v194 = vld [vmem:[#allocation2 + $0x8] sm:$0xff]
    %195 = vst.msk [vmem:[%s4] sm:$0xff] %vm175, %v193
    %196 = vst.msk [vmem:[%s4 + $0x8] sm:$0xff] %vm175, %v194
    %v197 = vld [vmem:[#allocation3] sm:$0xff]
    %v198 = vld [vmem:[#allocation3 + $0x8] sm:$0xff]
    %199 = vst.msk [vmem:[%s5] sm:$0xff] %vm175, %v197
    %200 = vst.msk [vmem:[%s5 + $0x8] sm:$0xff] %vm175, %v198
  $region21: #{generator_forward.19} parent=0 // pred_fallthru
    _
  %v201 = vpack.c.bf16 %v155, %v152
  %v203 = vunpack.c.l.b16 %v201
  %v204 = vunpack.c.h.b16 %v201
  %v205 = vpack.c.b16 %v203, %v203
  %v206 = vpack.c.b16 %v204, %v204
  %209 = vst [vmem:[%s3] sm:$0xf] %v205
  %210 = vst [vmem:[%s3 + $0x4] sm:$0xf] %v206
  // Predicated region
  $region22: #{generator_forward.19} parent=0 // pred_check
    _
  $region23: #{generator_forward.19} parent=0 // pred_check_branch
    %212 = sbr.rel (0) target = $region25
  $region24: #{generator_forward.19} parent=0 // pred_region
    _
  $region25: #{generator_forward.19} parent=0 // pred_fallthru
    _
  // Predicated region
  $region26: #{generator_forward.19} parent=0 // pred_check
    _
  $region27: #{generator_forward.19} parent=0 // pred_check_branch
    %214 = sbr.rel (0) target = $region29
  $region28: #{generator_forward.19} parent=0 // pred_region
    _
  $region29: #{generator_forward.19} parent=0 // pred_fallthru
    _
  // Predicated region
  $region30: #{generator_forward.19} parent=0 // pred_check
    _
  $region31: #{generator_forward.19} parent=0 // pred_check_branch
    %216 = sbr.rel (0) target = $region33
  $region32: #{generator_forward.19} parent=0 // pred_region
    _
  $region33: #{generator_forward.19} parent=0 // pred_fallthru
    _
  // Predicated region
  $region34: #{generator_forward.19} parent=0 // pred_check
    _
  $region35: #{generator_forward.19} parent=0 // pred_check_branch
    %218 = sbr.rel (0) target = $region37
  $region36: #{generator_forward.19} parent=0 // pred_region
    _
  $region37: #{generator_forward.19} parent=0 // pred_fallthru
    _
  // Predicated region
  $region38: #{generator_forward.19} parent=0 // pred_check
    _
  $region39: #{generator_forward.19} parent=0 // pred_check_branch
    %220 = sbr.rel (0) target = $region41
  $region40: #{generator_forward.19} parent=0 // pred_region
    _
  $region41: #{generator_forward.19} parent=0 // pred_fallthru
    _
  // Predicated region
  $region42: #{generator_forward.19} parent=0 // pred_check
    _
  $region43: #{generator_forward.19} parent=0 // pred_check_branch
    %222 = sbr.rel (0) target = $region45
  $region44: #{generator_forward.19} parent=0 // pred_region
    _
  $region45: #{generator_forward.19} parent=0 // pred_fallthru
    _

// kernel: generator_forward.20
$region0: #{generator_forward.20}
  #allocation0 [shape = 'u32[]', space=smem, size = 0x4, offset = 0x4, fixed_abs, tag = 'smem constant byte address 0x4 - core index']
  #allocation1 [shape = 'u32[144,128]{1,0:T(1,128)}', space=vmem, size = 0x12000, scoped, tag = 'internal scratch']
  %s0 = inlined_call_operand.vmem [shape: bf16[144,128], index: 0, kind: input, shape index: {}]
  %s1 = inlined_call_operand.vmem [shape: bf16[32,144], index: 1, kind: input, shape index: {}]
  %s2 = inlined_call_operand.vmem [shape: f32[32,1], index: 2, kind: input, shape index: {}]
  %s3 = inlined_call_operand.vmem [shape: bf16[32,128], index: 3, kind: output, shape index: {}]
  %s4 = sld [smem:[#allocation0]]
  $region22: #{generator_forward.20} parent=0
    _
  %s6 = ssub.s32 1, %s4
  %s7 = scalar_select 0, %s6, %s4
  // Predicated region
  $region2: #{generator_forward.20} parent=0 // pred_check
    _
  $region3: #{generator_forward.20} parent=0 // pred_check_branch
    %9 = sbr.rel (0) target = $region5
  $region4: #{generator_forward.20} parent=0 // pred_region
    _
  $region5: #{generator_forward.20} parent=0 // pred_fallthru
    _
  // Predicated region
  $region6: #{generator_forward.20} parent=0 // pred_check
    _
  $region7: #{generator_forward.20} parent=0 // pred_check_branch
    %11 = sbr.rel (0) target = $region9
  $region8: #{generator_forward.20} parent=0 // pred_region
    _
  $region9: #{generator_forward.20} parent=0 // pred_fallthru
    _
  // Predicated region
  $region10: #{generator_forward.20} parent=0 // pred_check
    _
  $region11: #{generator_forward.20} parent=0 // pred_check_branch
    %13 = sbr.rel (0) target = $region13
  $region12: #{generator_forward.20} parent=0 // pred_region
    _
  $region13: #{generator_forward.20} parent=0 // pred_fallthru
    _
  %v15 = vld [vmem:[%s1] sm:$0xff]
  %v16 = vld [vmem:[%s1 + $0x8] sm:$0xff]
  %v17 = vld [vmem:[%s1 + $0x10] sm:$0xff]
  %v18 = vld [vmem:[%s1 + $0x18] sm:$0xff]
  %v19 = vld [vmem:[%s0] sm:$0xf]
  %v20 = vld [vmem:[%s0 + $0x4] sm:$0xf]
  %v21 = vld [vmem:[%s0 + $0x8] sm:$0xf]
  %v22 = vld [vmem:[%s0 + $0xc] sm:$0xf]
  %v23 = vld [vmem:[%s0 + $0x10] sm:$0xf]
  %v24 = vld [vmem:[%s0 + $0x14] sm:$0xf]
  %v25 = vld [vmem:[%s0 + $0x18] sm:$0xf]
  %v26 = vld [vmem:[%s0 + $0x1c] sm:$0xf]
  %v27 = vld [vmem:[%s0 + $0x20] sm:$0xf]
  %v28 = vld [vmem:[%s0 + $0x24] sm:$0xf]
  %v29 = vld [vmem:[%s0 + $0x28] sm:$0xf]
  %v30 = vld [vmem:[%s0 + $0x2c] sm:$0xf]
  %v31 = vld [vmem:[%s0 + $0x30] sm:$0xf]
  %v32 = vld [vmem:[%s0 + $0x34] sm:$0xf]
  %v33 = vld [vmem:[%s0 + $0x38] sm:$0xf]
  %v34 = vld [vmem:[%s0 + $0x3c] sm:$0xf]
  %v35 = vld [vmem:[%s0 + $0x40] sm:$0xf]
  %v36 = vld [vmem:[%s0 + $0x44] sm:$0xf]
  %v37 = vld [vmem:[%s2] sm:$0xff]
  %v38 = vld [vmem:[%s2 + $0x8] sm:$0xff]
  %v39 = vld [vmem:[%s2 + $0x10] sm:$0xff]
  %v40 = vld [vmem:[%s2 + $0x18] sm:$0xff]
  %42 = vset.pattern.permute.xlu0 0
  %43 = vperm.xlu0 %42, %v37
  %v44 = vpop.permute.xlu0 %43
  %47 = vset.pattern.permute.xlu0 0
  %48 = vperm.xlu0 %47, %v38
  %v49 = vpop.permute.xlu0 %48
  %52 = vset.pattern.permute.xlu0 0
  %53 = vperm.xlu0 %52, %v39
  %v54 = vpop.permute.xlu0 %53
  %57 = vset.pattern.permute.xlu0 0
  %58 = vperm.xlu0 %57, %v40
  %v59 = vpop.permute.xlu0 %58
  %v65 = vunpack.c.l.b16 %v15
  %v66 = vunpack.c.h.b16 %v15
  %v67 = vunpack.c.l.b16 %v16
  %v68 = vunpack.c.h.b16 %v16
  %v69 = vunpack.c.l.b16 %v17
  %v70 = vunpack.c.h.b16 %v17
  %v71 = vunpack.c.l.b16 %v18
  %v72 = vunpack.c.h.b16 %v18
  %v73 = vpack.c.b16 %v67, %v65
  %v74 = vpack.c.b16 %v68, %v66
  %v75 = vpack.c.b16 %v71, %v69
  %v76 = vpack.c.b16 %v72, %v70
  %v97 = vunpack.c.l.b16 %v19
  %v98 = vunpack.c.l.b16 %v20
  %v99 = vunpack.c.l.b16 %v21
  %v100 = vunpack.c.l.b16 %v22
  %v101 = vunpack.c.l.b16 %v23
  %v102 = vunpack.c.l.b16 %v24
  %v103 = vunpack.c.l.b16 %v25
  %v104 = vunpack.c.l.b16 %v26
  %v105 = vunpack.c.l.b16 %v27
  %v106 = vunpack.c.l.b16 %v28
  %v107 = vunpack.c.l.b16 %v29
  %v108 = vunpack.c.l.b16 %v30
  %v109 = vunpack.c.l.b16 %v31
  %v110 = vunpack.c.l.b16 %v32
  %v111 = vunpack.c.l.b16 %v33
  %v112 = vunpack.c.l.b16 %v34
  %v113 = vunpack.c.l.b16 %v35
  %v114 = vunpack.c.l.b16 %v36
  %v115 = vpack.c.b16 %v98, %v97
  %v116 = vpack.c.b16 %v100, %v99
  %v117 = vpack.c.b16 %v102, %v101
  %v118 = vpack.c.b16 %v104, %v103
  %v119 = vpack.c.b16 %v106, %v105
  %v120 = vpack.c.b16 %v108, %v107
  %v121 = vpack.c.b16 %v110, %v109
  %v122 = vpack.c.b16 %v112, %v111
  %v123 = vpack.c.b16 %v114, %v113
  %vm133 = vcmask 130048
  %v135 = vsel %vm133, %v74, 0
  %v138 = vsel %vm133, %v76, 0
  %140 = vmatprep.subr.bf16.mxu0 0
  %141 = vmatpush1.bf16.msra.mxu0 %v115
  %142 = vmatprep.subr.bf16.mxu0 0
  %143 = vmatpush1.bf16.msra.mxu0 %v116
  %144 = vmatprep.subr.bf16.mxu0 0
  %145 = vmatpush1.bf16.msra.mxu0 %v117
  %146 = vmatprep.subr.bf16.mxu0 0
  %147 = vmatpush1.bf16.msra.mxu0 %v118
  %148 = vmatprep.subr.bf16.mxu0 0
  %149 = vmatpush1.bf16.msra.mxu0 %v119
  %150 = vmatprep.subr.bf16.mxu0 0
  %151 = vmatpush1.bf16.msra.mxu0 %v120
  %152 = vmatprep.subr.bf16.mxu0 0
  %153 = vmatpush1.bf16.msra.mxu0 %v121
  %154 = vmatprep.subr.bf16.mxu0 0
  %155 = vmatpush1.bf16.msra.mxu0 %v122
  %156 = vmatprep.subr.bf16.mxu0 0
  %157 = vmatpush1.bf16.msra.mxu0 %v123
  %158 = vmatprep.subr.bf16.mxu0 0
  %159 = vmatpush1.bf16.msra.mxu0 0
  %160 = vmatprep.subr.bf16.mxu0 0
  %161 = vmatpush1.bf16.msra.mxu0 0
  %162 = vmatprep.subr.bf16.mxu0 0
  %163 = vmatpush1.bf16.msra.mxu0 0
  %164 = vmatprep.subr.bf16.mxu0 0
  %165 = vmatpush1.bf16.msra.mxu0 0
  %166 = vmatprep.subr.bf16.mxu0 0
  %167 = vmatpush1.bf16.msra.mxu0 0
  %168 = vmatprep.subr.bf16.mxu0 0
  %169 = vmatpush1.bf16.msra.mxu0 0
  %170 = vmatprep.subr.bf16.mxu0 0
  %171 = vmatpush1.bf16.msra.mxu0 0
  %172 = vmatprep.mubr.bf16.mxu0 %v135
  %173 = vmatmul.mubr.bf16.gmra.mrb[0].mxu0 %v73
  %v174 = vpop.f32.mrb[0].mxu0
  %v175 = vadd.f32 %v44, %v174
  %v176 = vpop.f32.mrb[0].mxu0
  %v177 = vpop.f32.mrb[0].mxu0
  %v178 = vadd.f32 %v49, %v177
  %v179 = vpop.f32.mrb[0].mxu0
  %180 = vmatprep.mubr.bf16.mxu0 %v138
  %181 = vmatmul.mubr.bf16.gmra.mrb[0].mxu0 %v75
  %v182 = vpop.f32.mrb[0].mxu0
  %v183 = vadd.f32 %v54, %v182
  %v184 = vpop.f32.mrb[0].mxu0
  %v185 = vpop.f32.mrb[0].mxu0
  %v186 = vadd.f32 %v59, %v185
  %v187 = vpop.f32.mrb[0].mxu0
  %188 = vdwg.mxu0
  %v189 = vpack.c.bf16 %v178, %v175
  %v190 = vpack.c.bf16 %v186, %v183
  %v193 = vunpack.c.l.b16 %v189
  %v194 = vunpack.c.h.b16 %v189
  %v195 = vunpack.c.l.b16 %v190
  %v196 = vunpack.c.h.b16 %v190
  %v197 = vpack.c.b16 %v193, %v193
  %v198 = vpack.c.b16 %v194, %v194
  %v199 = vpack.c.b16 %v195, %v195
  %v200 = vpack.c.b16 %v196, %v196
  %205 = vst [vmem:[%s3] sm:$0xf] %v197
  %206 = vst [vmem:[%s3 + $0x4] sm:$0xf] %v198
  %207 = vst [vmem:[%s3 + $0x8] sm:$0xf] %v199
  %208 = vst [vmem:[%s3 + $0xc] sm:$0xf] %v200
  // Predicated region
  $region14: #{generator_forward.20} parent=0 // pred_check
    _
  $region15: #{generator_forward.20} parent=0 // pred_check_branch
    %210 = sbr.rel (0) target = $region17
  $region16: #{generator_forward.20} parent=0 // pred_region
    _
  $region17: #{generator_forward.20} parent=0 // pred_fallthru
    _
  // Predicated region
  $region18: #{generator_forward.20} parent=0 // pred_check
    _
  $region19: #{generator_forward.20} parent=0 // pred_check_branch
    %212 = sbr.rel (0) target = $region21
  $region20: #{generator_forward.20} parent=0 // pred_region
    _
  $region21: #{generator_forward.20} parent=0 // pred_fallthru
    _

// kernel: generator_forward.21
$region0: #{generator_forward.21}
  #allocation0 [shape = 'u32[]', space=smem, size = 0x4, offset = 0x4, fixed_abs, tag = 'smem constant byte address 0x4 - core index']
  #allocation1 [shape = 'u32[144,128]{1,0:T(1,128)}', space=vmem, size = 0x12000, scoped, tag = 'internal scratch']
  #allocation2 [shape = 'f32[32,1]{1,0:T(8,128)}', space=vmem, size = 0x4000, scoped, tag = 'scratch operand']
  #allocation3 [shape = 'f32[32,1]{1,0:T(8,128)}', space=vmem, size = 0x4000, scoped, tag = 'scratch operand']
  %s0 = inlined_call_operand.vmem [shape: bf16[288,128], index: 0, kind: input, shape index: {}]
  %s1 = inlined_call_operand.vmem [shape: bf16[32,288], index: 1, kind: input, shape index: {}]
  %s2 = inlined_call_operand.vmem [shape: f32[32,1], index: 2, kind: input, shape index: {}]
  %s3 = inlined_call_operand.vmem [shape: bf16[32,128], index: 3, kind: output, shape index: {0}]
  %s4 = inlined_call_operand.vmem [shape: f32[32,1], index: 4, kind: output, shape index: {1}]
  %s5 = inlined_call_operand.vmem [shape: f32[32,1], index: 5, kind: output, shape index: {2}]
  %6 = xla_tuple %s3, %s4, %s5
  %s7 = sld [smem:[#allocation0]]
  $region46: #{generator_forward.21} parent=0
    _
  %s9 = ssub.s32 1, %s7
  %s10 = scalar_select 0, %s9, %s7
  // Predicated region
  $region2: #{generator_forward.21} parent=0 // pred_check
    _
  $region3: #{generator_forward.21} parent=0 // pred_check_branch
    %12 = sbr.rel (0) target = $region5
  $region4: #{generator_forward.21} parent=0 // pred_region
    _
  $region5: #{generator_forward.21} parent=0 // pred_fallthru
    _
  // Predicated region
  $region6: #{generator_forward.21} parent=0 // pred_check
    _
  $region7: #{generator_forward.21} parent=0 // pred_check_branch
    %14 = sbr.rel (0) target = $region9
  $region8: #{generator_forward.21} parent=0 // pred_region
    _
  $region9: #{generator_forward.21} parent=0 // pred_fallthru
    _
  // Predicated region
  $region10: #{generator_forward.21} parent=0 // pred_check
    _
  $region11: #{generator_forward.21} parent=0 // pred_check_branch
    %16 = sbr.rel (0) target = $region13
  $region12: #{generator_forward.21} parent=0 // pred_region
    _
  $region13: #{generator_forward.21} parent=0 // pred_fallthru
    _
  %v18 = vld [vmem:[%s1] sm:$0xff]
  %v19 = vld [vmem:[%s1 + $0x8] sm:$0xf]
  %v20 = vld [vmem:[%s1 + $0xc] sm:$0xff]
  %v21 = vld [vmem:[%s1 + $0x14] sm:$0xf]
  %v22 = vld [vmem:[%s1 + $0x18] sm:$0xff]
  %v23 = vld [vmem:[%s1 + $0x20] sm:$0xf]
  %v24 = vld [vmem:[%s1 + $0x24] sm:$0xff]
  %v25 = vld [vmem:[%s1 + $0x2c] sm:$0xf]
  %v26 = vld [vmem:[%s0] sm:$0xf]
  %v27 = vld [vmem:[%s0 + $0x4] sm:$0xf]
  %v28 = vld [vmem:[%s0 + $0x8] sm:$0xf]
  %v29 = vld [vmem:[%s0 + $0xc] sm:$0xf]
  %v30 = vld [vmem:[%s0 + $0x10] sm:$0xf]
  %v31 = vld [vmem:[%s0 + $0x14] sm:$0xf]
  %v32 = vld [vmem:[%s0 + $0x18] sm:$0xf]
  %v33 = vld [vmem:[%s0 + $0x1c] sm:$0xf]
  %v34 = vld [vmem:[%s0 + $0x20] sm:$0xf]
  %v35 = vld [vmem:[%s0 + $0x24] sm:$0xf]
  %v36 = vld [vmem:[%s0 + $0x28] sm:$0xf]
  %v37 = vld [vmem:[%s0 + $0x2c] sm:$0xf]
  %v38 = vld [vmem:[%s0 + $0x30] sm:$0xf]
  %v39 = vld [vmem:[%s0 + $0x34] sm:$0xf]
  %v40 = vld [vmem:[%s0 + $0x38] sm:$0xf]
  %v41 = vld [vmem:[%s0 + $0x3c] sm:$0xf]
  %v42 = vld [vmem:[%s0 + $0x40] sm:$0xf]
  %v43 = vld [vmem:[%s0 + $0x44] sm:$0xf]
  %v44 = vld [vmem:[%s0 + $0x48] sm:$0xf]
  %v45 = vld [vmem:[%s0 + $0x4c] sm:$0xf]
  %v46 = vld [vmem:[%s0 + $0x50] sm:$0xf]
  %v47 = vld [vmem:[%s0 + $0x54] sm:$0xf]
  %v48 = vld [vmem:[%s0 + $0x58] sm:$0xf]
  %v49 = vld [vmem:[%s0 + $0x5c] sm:$0xf]
  %v50 = vld [vmem:[%s0 + $0x60] sm:$0xf]
  %v51 = vld [vmem:[%s0 + $0x64] sm:$0xf]
  %v52 = vld [vmem:[%s0 + $0x68] sm:$0xf]
  %v53 = vld [vmem:[%s0 + $0x6c] sm:$0xf]
  %v54 = vld [vmem:[%s0 + $0x70] sm:$0xf]
  %v55 = vld [vmem:[%s0 + $0x74] sm:$0xf]
  %v56 = vld [vmem:[%s0 + $0x78] sm:$0xf]
  %v57 = vld [vmem:[%s0 + $0x7c] sm:$0xf]
  %v58 = vld [vmem:[%s0 + $0x80] sm:$0xf]
  %v59 = vld [vmem:[%s0 + $0x84] sm:$0xf]
  %v60 = vld [vmem:[%s0 + $0x88] sm:$0xf]
  %v61 = vld [vmem:[%s0 + $0x8c] sm:$0xf]
  %v62 = vld [vmem:[%s2] sm:$0xff]
  %v63 = vld [vmem:[%s2 + $0x8] sm:$0xff]
  %v64 = vld [vmem:[%s2 + $0x10] sm:$0xff]
  %v65 = vld [vmem:[%s2 + $0x18] sm:$0xff]
  %67 = vset.pattern.permute.xlu0 0
  %68 = vperm.xlu0 %67, %v62
  %v69 = vpop.permute.xlu0 %68
  %72 = vset.pattern.permute.xlu0 0
  %73 = vperm.xlu0 %72, %v63
  %v74 = vpop.permute.xlu0 %73
  %77 = vset.pattern.permute.xlu0 0
  %78 = vperm.xlu0 %77, %v64
  %v79 = vpop.permute.xlu0 %78
  %82 = vset.pattern.permute.xlu0 0
  %83 = vperm.xlu0 %82, %v65
  %v84 = vpop.permute.xlu0 %83
  %v94 = vunpack.c.l.b16 %v18
  %v95 = vunpack.c.h.b16 %v18
  %v96 = vunpack.c.l.b16 %v19
  %v97 = vunpack.c.l.b16 %v20
  %v98 = vunpack.c.h.b16 %v20
  %v99 = vunpack.c.l.b16 %v21
  %v100 = vunpack.c.l.b16 %v22
  %v101 = vunpack.c.h.b16 %v22
  %v102 = vunpack.c.l.b16 %v23
  %v103 = vunpack.c.l.b16 %v24
  %v104 = vunpack.c.h.b16 %v24
  %v105 = vunpack.c.l.b16 %v25
  %v106 = vpack.c.b16 %v97, %v94
  %v107 = vpack.c.b16 %v98, %v95
  %v108 = vpack.c.b16 %v99, %v96
  %v109 = vpack.c.b16 %v103, %v100
  %v110 = vpack.c.b16 %v104, %v101
  %v111 = vpack.c.b16 %v105, %v102
  %v152 = vunpack.c.l.b16 %v26
  %v153 = vunpack.c.l.b16 %v27
  %v154 = vunpack.c.l.b16 %v28
  %v155 = vunpack.c.l.b16 %v29
  %v156 = vunpack.c.l.b16 %v30
  %v157 = vunpack.c.l.b16 %v31
  %v158 = vunpack.c.l.b16 %v32
  %v159 = vunpack.c.l.b16 %v33
  %v160 = vunpack.c.l.b16 %v34
  %v161 = vunpack.c.l.b16 %v35
  %v162 = vunpack.c.l.b16 %v36
  %v163 = vunpack.c.l.b16 %v37
  %v164 = vunpack.c.l.b16 %v38
  %v165 = vunpack.c.l.b16 %v39
  %v166 = vunpack.c.l.b16 %v40
  %v167 = vunpack.c.l.b16 %v41
  %v168 = vunpack.c.l.b16 %v42
  %v169 = vunpack.c.l.b16 %v43
  %v170 = vunpack.c.l.b16 %v44
  %v171 = vunpack.c.l.b16 %v45
  %v172 = vunpack.c.l.b16 %v46
  %v173 = vunpack.c.l.b16 %v47
  %v174 = vunpack.c.l.b16 %v48
  %v175 = vunpack.c.l.b16 %v49
  %v176 = vunpack.c.l.b16 %v50
  %v177 = vunpack.c.l.b16 %v51
  %v178 = vunpack.c.l.b16 %v52
  %v179 = vunpack.c.l.b16 %v53
  %v180 = vunpack.c.l.b16 %v54
  %v181 = vunpack.c.l.b16 %v55
  %v182 = vunpack.c.l.b16 %v56
  %v183 = vunpack.c.l.b16 %v57
  %v184 = vunpack.c.l.b16 %v58
  %v185 = vunpack.c.l.b16 %v59
  %v186 = vunpack.c.l.b16 %v60
  %v187 = vunpack.c.l.b16 %v61
  %v188 = vpack.c.b16 %v153, %v152
  %v189 = vpack.c.b16 %v155, %v154
  %v190 = vpack.c.b16 %v157, %v156
  %v191 = vpack.c.b16 %v159, %v158
  %v192 = vpack.c.b16 %v161, %v160
  %v193 = vpack.c.b16 %v163, %v162
  %v194 = vpack.c.b16 %v165, %v164
  %v195 = vpack.c.b16 %v167, %v166
  %v196 = vpack.c.b16 %v169, %v168
  %v197 = vpack.c.b16 %v171, %v170
  %v198 = vpack.c.b16 %v173, %v172
  %v199 = vpack.c.b16 %v175, %v174
  %v200 = vpack.c.b16 %v177, %v176
  %v201 = vpack.c.b16 %v179, %v178
  %v202 = vpack.c.b16 %v181, %v180
  %v203 = vpack.c.b16 %v183, %v182
  %v204 = vpack.c.b16 %v185, %v184
  %v205 = vpack.c.b16 %v187, %v186
  %vm224 = vcmask 261120
  %v226 = vsel %vm224, %v108, 0
  %v229 = vsel %vm224, %v111, 0
  %231 = vmatprep.subr.bf16.mxu0 0
  %232 = vmatpush1.bf16.msra.mxu0 %v188
  %233 = vmatprep.subr.bf16.mxu0 0
  %234 = vmatpush1.bf16.msra.mxu0 %v189
  %235 = vmatprep.subr.bf16.mxu0 0
  %236 = vmatpush1.bf16.msra.mxu0 %v190
  %237 = vmatprep.subr.bf16.mxu0 0
  %238 = vmatpush1.bf16.msra.mxu0 %v191
  %239 = vmatprep.subr.bf16.mxu0 0
  %240 = vmatpush1.bf16.msra.mxu0 %v192
  %241 = vmatprep.subr.bf16.mxu0 0
  %242 = vmatpush1.bf16.msra.mxu0 %v193
  %243 = vmatprep.subr.bf16.mxu0 0
  %244 = vmatpush1.bf16.msra.mxu0 %v194
  %245 = vmatprep.subr.bf16.mxu0 0
  %246 = vmatpush1.bf16.msra.mxu0 %v195
  %247 = vmatprep.subr.bf16.mxu0 0
  %248 = vmatpush1.bf16.msra.mxu0 %v196
  %249 = vmatprep.subr.bf16.mxu0 0
  %250 = vmatpush1.bf16.msra.mxu0 %v197
  %251 = vmatprep.subr.bf16.mxu0 0
  %252 = vmatpush1.bf16.msra.mxu0 %v198
  %253 = vmatprep.subr.bf16.mxu0 0
  %254 = vmatpush1.bf16.msra.mxu0 %v199
  %255 = vmatprep.subr.bf16.mxu0 0
  %256 = vmatpush1.bf16.msra.mxu0 %v200
  %257 = vmatprep.subr.bf16.mxu0 0
  %258 = vmatpush1.bf16.msra.mxu0 %v201
  %259 = vmatprep.subr.bf16.mxu0 0
  %260 = vmatpush1.bf16.msra.mxu0 %v202
  %261 = vmatprep.subr.bf16.mxu0 0
  %262 = vmatpush1.bf16.msra.mxu0 %v203
  %263 = vmatprep.mubr.bf16.mxu0 %v107
  %264 = vmatmul.mubr.bf16.gmra.mrb[0].mxu0 %v106
  %v265 = vpop.f32.mrb[0].mxu0
  %v266 = vadd.f32 %v69, %v265
  %v267 = vpop.f32.mrb[0].mxu0
  %v268 = vpop.f32.mrb[0].mxu0
  %v269 = vadd.f32 %v74, %v268
  %v270 = vpop.f32.mrb[0].mxu0
  %271 = vmatprep.mubr.bf16.mxu0 %v110
  %272 = vmatmul.mubr.bf16.gmra.mrb[0].mxu0 %v109
  %v273 = vpop.f32.mrb[0].mxu0
  %v274 = vadd.f32 %v79, %v273
  %v275 = vpop.f32.mrb[0].mxu0
  %v276 = vpop.f32.mrb[0].mxu0
  %v277 = vadd.f32 %v84, %v276
  %v278 = vpop.f32.mrb[0].mxu0
  %279 = vdwg.mxu0
  %280 = vmatprep.subr.bf16.mxu0 0
  %281 = vmatpush1.bf16.msra.mxu0 %v204
  %282 = vmatprep.subr.bf16.mxu0 0
  %283 = vmatpush1.bf16.msra.mxu0 %v205
  %284 = vmatprep.subr.bf16.mxu0 0
  %285 = vmatpush1.bf16.msra.mxu0 0
  %286 = vmatprep.subr.bf16.mxu0 0
  %287 = vmatpush1.bf16.msra.mxu0 0
  %288 = vmatprep.subr.bf16.mxu0 0
  %289 = vmatpush1.bf16.msra.mxu0 0
  %290 = vmatprep.subr.bf16.mxu0 0
  %291 = vmatpush1.bf16.msra.mxu0 0
  %292 = vmatprep.subr.bf16.mxu0 0
  %293 = vmatpush1.bf16.msra.mxu0 0
  %294 = vmatprep.subr.bf16.mxu0 0
  %295 = vmatpush1.bf16.msra.mxu0 0
  %296 = vmatprep.subr.bf16.mxu0 0
  %297 = vmatpush1.bf16.msra.mxu0 0
  %298 = vmatprep.subr.bf16.mxu0 0
  %299 = vmatpush1.bf16.msra.mxu0 0
  %300 = vmatprep.subr.bf16.mxu0 0
  %301 = vmatpush1.bf16.msra.mxu0 0
  %302 = vmatprep.subr.bf16.mxu0 0
  %303 = vmatpush1.bf16.msra.mxu0 0
  %304 = vmatprep.subr.bf16.mxu0 0
  %305 = vmatpush1.bf16.msra.mxu0 0
  %306 = vmatprep.subr.bf16.mxu0 0
  %307 = vmatpush1.bf16.msra.mxu0 0
  %308 = vmatprep.subr.bf16.mxu0 0
  %309 = vmatpush1.bf16.msra.mxu0 0
  %310 = vmatprep.subr.bf16.mxu0 0
  %311 = vmatpush1.bf16.msra.mxu0 0
  %312 = vmatprep.mubr.bf16.mxu0 0
  %313 = vmatmul.mubr.bf16.gmra.mrb[0].mxu0 %v226
  %v314 = vpop.f32.mrb[0].mxu0
  %v315 = vadd.f32 %v266, %v314
  %v316 = vpop.f32.mrb[0].mxu0
  %v317 = vpop.f32.mrb[0].mxu0
  %v318 = vadd.f32 %v269, %v317
  %v319 = vpop.f32.mrb[0].mxu0
  %320 = vmatprep.mubr.bf16.mxu0 0
  %321 = vmatmul.mubr.bf16.gmra.mrb[0].mxu0 %v229
  %v322 = vpop.f32.mrb[0].mxu0
  %v323 = vadd.f32 %v274, %v322
  %v324 = vpop.f32.mrb[0].mxu0
  %v325 = vpop.f32.mrb[0].mxu0
  %v326 = vadd.f32 %v277, %v325
  %v327 = vpop.f32.mrb[0].mxu0
  %328 = vdwg.mxu0
  %p329 = scmp.eq.s32.totalorder 0, 0
  // Predicated region
  $region14: #{generator_forward.21} parent=0 // pred_check
    %p330 = pneg %p329
  $region15: #{generator_forward.21} parent=0 // pred_check_branch
    %332 = sbr.rel (%p330) target = $region17
  $region16: #{generator_forward.21} parent=0 // pred_region
    %vm333 = vcmask 7168
    %334 = vst.msk [vmem:[#allocation2] sm:$0xff] %vm333, 0.0
    %335 = vst.msk [vmem:[#allocation2 + $0x8] sm:$0xff] %vm333, 0.0
    %336 = vst.msk [vmem:[#allocation2 + $0x10] sm:$0xff] %vm333, 0.0
    %337 = vst.msk [vmem:[#allocation2 + $0x18] sm:$0xff] %vm333, 0.0
    %338 = vst.msk [vmem:[#allocation3] sm:$0xff] %vm333, 0.0
    %339 = vst.msk [vmem:[#allocation3 + $0x8] sm:$0xff] %vm333, 0.0
    %340 = vst.msk [vmem:[#allocation3 + $0x10] sm:$0xff] %vm333, 0.0
    %341 = vst.msk [vmem:[#allocation3 + $0x18] sm:$0xff] %vm333, 0.0
  $region17: #{generator_forward.21} parent=0 // pred_fallthru
    _
  %v342 = vld [vmem:[#allocation2] sm:$0xff]
  %v343 = vld [vmem:[#allocation2 + $0x8] sm:$0xff]
  %v344 = vld [vmem:[#allocation2 + $0x10] sm:$0xff]
  %v345 = vld [vmem:[#allocation2 + $0x18] sm:$0xff]
  %346 = vadd.xlane.f32.xlu0 %v315
  %v347 = vpop.xlane.xlu0 %346
  %348 = vadd.xlane.f32.xlu0 %v318
  %v349 = vpop.xlane.xlu0 %348
  %350 = vadd.xlane.f32.xlu0 %v323
  %v351 = vpop.xlane.xlu0 %350
  %352 = vadd.xlane.f32.xlu0 %v326
  %v353 = vpop.xlane.xlu0 %352
  %v354 = vadd.f32 %v342, %v347
  %v355 = vadd.f32 %v343, %v349
  %v356 = vadd.f32 %v344, %v351
  %v357 = vadd.f32 %v345, %v353
  %vm358 = vcmask 7168
  %359 = vst.msk [vmem:[#allocation2] sm:$0xff] %vm358, %v354
  %360 = vst.msk [vmem:[#allocation2 + $0x8] sm:$0xff] %vm358, %v355
  %361 = vst.msk [vmem:[#allocation2 + $0x10] sm:$0xff] %vm358, %v356
  %362 = vst.msk [vmem:[#allocation2 + $0x18] sm:$0xff] %vm358, %v357
  %v363 = vld [vmem:[#allocation3] sm:$0xff]
  %v364 = vld [vmem:[#allocation3 + $0x8] sm:$0xff]
  %v365 = vld [vmem:[#allocation3 + $0x10] sm:$0xff]
  %v366 = vld [vmem:[#allocation3 + $0x18] sm:$0xff]
  %v367 = vmul.f32 %v315, %v315
  %v368 = vmul.f32 %v318, %v318
  %v369 = vmul.f32 %v323, %v323
  %v370 = vmul.f32 %v326, %v326
  %371 = vadd.xlane.f32.xlu0 %v367
  %v372 = vpop.xlane.xlu0 %371
  %373 = vadd.xlane.f32.xlu0 %v368
  %v374 = vpop.xlane.xlu0 %373
  %375 = vadd.xlane.f32.xlu0 %v369
  %v376 = vpop.xlane.xlu0 %375
  %377 = vadd.xlane.f32.xlu0 %v370
  %v378 = vpop.xlane.xlu0 %377
  %v379 = vadd.f32 %v363, %v372
  %v380 = vadd.f32 %v364, %v374
  %v381 = vadd.f32 %v365, %v376
  %v382 = vadd.f32 %v366, %v378
  %383 = vst.msk [vmem:[#allocation3] sm:$0xff] %vm358, %v379
  %384 = vst.msk [vmem:[#allocation3 + $0x8] sm:$0xff] %vm358, %v380
  %385 = vst.msk [vmem:[#allocation3 + $0x10] sm:$0xff] %vm358, %v381
  %386 = vst.msk [vmem:[#allocation3 + $0x18] sm:$0xff] %vm358, %v382
  // Predicated region
  $region18: #{generator_forward.21} parent=0 // pred_check
    %p387 = pneg %p329
  $region19: #{generator_forward.21} parent=0 // pred_check_branch
    %389 = sbr.rel (%p387) target = $region21
  $region20: #{generator_forward.21} parent=0 // pred_region
    %v390 = vld [vmem:[#allocation2] sm:$0xff]
    %v391 = vld [vmem:[#allocation2 + $0x8] sm:$0xff]
    %v392 = vld [vmem:[#allocation2 + $0x10] sm:$0xff]
    %v393 = vld [vmem:[#allocation2 + $0x18] sm:$0xff]
    %394 = vst.msk [vmem:[%s4] sm:$0xff] %vm358, %v390
    %395 = vst.msk [vmem:[%s4 + $0x8] sm:$0xff] %vm358, %v391
    %396 = vst.msk [vmem:[%s4 + $0x10] sm:$0xff] %vm358, %v392
    %397 = vst.msk [vmem:[%s4 + $0x18] sm:$0xff] %vm358, %v393
    %v398 = vld [vmem:[#allocation3] sm:$0xff]
    %v399 = vld [vmem:[#allocation3 + $0x8] sm:$0xff]
    %v400 = vld [vmem:[#allocation3 + $0x10] sm:$0xff]
    %v401 = vld [vmem:[#allocation3 + $0x18] sm:$0xff]
    %402 = vst.msk [vmem:[%s5] sm:$0xff] %vm358, %v398
    %403 = vst.msk [vmem:[%s5 + $0x8] sm:$0xff] %vm358, %v399
    %404 = vst.msk [vmem:[%s5 + $0x10] sm:$0xff] %vm358, %v400
    %405 = vst.msk [vmem:[%s5 + $0x18] sm:$0xff] %vm358, %v401
  $region21: #{generator_forward.21} parent=0 // pred_fallthru
    _
  %v406 = vpack.c.bf16 %v318, %v315
  %v407 = vpack.c.bf16 %v326, %v323
  %v410 = vunpack.c.l.b16 %v406
  %v411 = vunpack.c.h.b16 %v406
  %v412 = vunpack.c.l.b16 %v407
  %v413 = vunpack.c.h.b16 %v407
  %v414 = vpack.c.b16 %v410, %v410
  %v415 = vpack.c.b16 %v411, %v411
  %v416 = vpack.c.b16 %v412, %v412
  %v417 = vpack.c.b16 %v413, %v413
  %422 = vst [vmem:[%s3] sm:$0xf] %v414
  %423 = vst [vmem:[%s3 + $0x4] sm:$0xf] %v415
  %424 = vst [vmem:[%s3 + $0x8] sm:$0xf] %v416
  %425 = vst [vmem:[%s3 + $0xc] sm:$0xf] %v417
  // Predicated region
  $region22: #{generator_forward.21} parent=0 // pred_check
    _
  $region23: #{generator_forward.21} parent=0 // pred_check_branch
    %427 = sbr.rel (0) target = $region25
  $region24: #{generator_forward.21} parent=0 // pred_region
    _
  $region25: #{generator_forward.21} parent=0 // pred_fallthru
    _
  // Predicated region
  $region26: #{generator_forward.21} parent=0 // pred_check
    _
  $region27: #{generator_forward.21} parent=0 // pred_check_branch
    %429 = sbr.rel (0) target = $region29
  $region28: #{generator_forward.21} parent=0 // pred_region
    _
  $region29: #{generator_forward.21} parent=0 // pred_fallthru
    _
  // Predicated region
  $region30: #{generator_forward.21} parent=0 // pred_check
    _
  $region31: #{generator_forward.21} parent=0 // pred_check_branch
    %431 = sbr.rel (0) target = $region33
  $region32: #{generator_forward.21} parent=0 // pred_region
    _
  $region33: #{generator_forward.21} parent=0 // pred_fallthru
    _
  // Predicated region
  $region34: #{generator_forward.21} parent=0 // pred_check
    _
  $region35: #{generator_forward.21} parent=0 // pred_check_branch
    %433 = sbr.rel (0) target = $region37
  $region36: #{generator_forward.21} parent=0 // pred_region
    _
  $region37: #{generator_forward.21} parent=0 // pred_fallthru
    _
  // Predicated region
  $region38: #{generator_forward.21} parent=0 // pred_check
    _
  $region39: #{generator_forward.21} parent=0 // pred_check_branch
    %435 = sbr.rel (0) target = $region41
  $region40: #{generator_forward.21} parent=0 // pred_region
    _
  $region41: #{generator_forward.21} parent=0 // pred_fallthru
    _
  // Predicated region
  $region42: #{generator_forward.21} parent=0 // pred_check
    _
  $region43: #{generator_forward.21} parent=0 // pred_check_branch
    %437 = sbr.rel (0) target = $region45
  $region44: #{generator_forward.21} parent=0 // pred_region
    _
  $region45: #{generator_forward.21} parent=0 // pred_fallthru
    _

// kernel: generator_forward.22
$region0: #{generator_forward.22}
  #allocation0 [shape = 'u32[]', space=smem, size = 0x4, offset = 0x4, fixed_abs, tag = 'smem constant byte address 0x4 - core index']
  #allocation1 [shape = 'u32[144,128]{1,0:T(1,128)}', space=vmem, size = 0x12000, scoped, tag = 'internal scratch']
  %s0 = inlined_call_operand.vmem [shape: bf16[32,128], index: 0, kind: input, shape index: {}]
  %s1 = inlined_call_operand.vmem [shape: f32[32,1], index: 1, kind: input, shape index: {}]
  %s2 = inlined_call_operand.vmem [shape: f32[32,1], index: 2, kind: input, shape index: {}]
  %s3 = inlined_call_operand.vmem [shape: bf16[32,128], index: 3, kind: output, shape index: {}]
  %s4 = sld [smem:[#allocation0]]
  $region22: #{generator_forward.22} parent=0
    _
  %s6 = ssub.s32 1, %s4
  %s7 = scalar_select 0, %s6, %s4
  // Predicated region
  $region2: #{generator_forward.22} parent=0 // pred_check
    _
  $region3: #{generator_forward.22} parent=0 // pred_check_branch
    %9 = sbr.rel (0) target = $region5
  $region4: #{generator_forward.22} parent=0 // pred_region
    _
  $region5: #{generator_forward.22} parent=0 // pred_fallthru
    _
  // Predicated region
  $region6: #{generator_forward.22} parent=0 // pred_check
    _
  $region7: #{generator_forward.22} parent=0 // pred_check_branch
    %11 = sbr.rel (0) target = $region9
  $region8: #{generator_forward.22} parent=0 // pred_region
    _
  $region9: #{generator_forward.22} parent=0 // pred_fallthru
    _
  // Predicated region
  $region10: #{generator_forward.22} parent=0 // pred_check
    _
  $region11: #{generator_forward.22} parent=0 // pred_check_branch
    %13 = sbr.rel (0) target = $region13
  $region12: #{generator_forward.22} parent=0 // pred_region
    _
  $region13: #{generator_forward.22} parent=0 // pred_fallthru
    _
  %v14 = vld [vmem:[%s0] sm:$0xf]
  %v15 = vld [vmem:[%s0 + $0x4] sm:$0xf]
  %v16 = vld [vmem:[%s0 + $0x8] sm:$0xf]
  %v17 = vld [vmem:[%s0 + $0xc] sm:$0xf]
  %v18 = vunpack.c.l.bf16 %v14
  %v19 = vunpack.c.l.bf16 %v15
  %v20 = vunpack.c.l.bf16 %v16
  %v21 = vunpack.c.l.bf16 %v17
  %v22 = vld [vmem:[%s1] sm:$0xff]
  %v23 = vld [vmem:[%s1 + $0x8] sm:$0xff]
  %v24 = vld [vmem:[%s1 + $0x10] sm:$0xff]
  %v25 = vld [vmem:[%s1 + $0x18] sm:$0xff]
  %27 = vset.pattern.permute.xlu0 0
  %28 = vperm.xlu0 %27, %v22
  %v29 = vpop.permute.xlu0 %28
  %32 = vset.pattern.permute.xlu0 0
  %33 = vperm.xlu0 %32, %v23
  %v34 = vpop.permute.xlu0 %33
  %37 = vset.pattern.permute.xlu0 0
  %38 = vperm.xlu0 %37, %v24
  %v39 = vpop.permute.xlu0 %38
  %42 = vset.pattern.permute.xlu0 0
  %43 = vperm.xlu0 %42, %v25
  %v44 = vpop.permute.xlu0 %43
  %v46 = vmul.f32 %v18, %v29
  %v47 = vmul.f32 %v19, %v34
  %v48 = vmul.f32 %v20, %v39
  %v49 = vmul.f32 %v21, %v44
  %v50 = vld [vmem:[%s2] sm:$0xff]
  %v51 = vld [vmem:[%s2 + $0x8] sm:$0xff]
  %v52 = vld [vmem:[%s2 + $0x10] sm:$0xff]
  %v53 = vld [vmem:[%s2 + $0x18] sm:$0xff]
  %55 = vset.pattern.permute.xlu0 0
  %56 = vperm.xlu0 %55, %v50
  %v57 = vpop.permute.xlu0 %56
  %60 = vset.pattern.permute.xlu0 0
  %61 = vperm.xlu0 %60, %v51
  %v62 = vpop.permute.xlu0 %61
  %65 = vset.pattern.permute.xlu0 0
  %66 = vperm.xlu0 %65, %v52
  %v67 = vpop.permute.xlu0 %66
  %70 = vset.pattern.permute.xlu0 0
  %71 = vperm.xlu0 %70, %v53
  %v72 = vpop.permute.xlu0 %71
  %v74 = vadd.f32 %v46, %v57
  %v75 = vadd.f32 %v47, %v62
  %v76 = vadd.f32 %v48, %v67
  %v77 = vadd.f32 %v49, %v72
  %v78 = vmax.f32 %v74, 0.0
  %v79 = vmax.f32 %v75, 0.0
  %v80 = vmax.f32 %v76, 0.0
  %v81 = vmax.f32 %v77, 0.0
  %v82 = vpack.c.bf16 %v79, %v78
  %v83 = vpack.c.bf16 %v81, %v80
  %v86 = vunpack.c.l.b16 %v82
  %v87 = vunpack.c.h.b16 %v82
  %v88 = vunpack.c.l.b16 %v83
  %v89 = vunpack.c.h.b16 %v83
  %v90 = vpack.c.b16 %v86, %v86
  %v91 = vpack.c.b16 %v87, %v87
  %v92 = vpack.c.b16 %v88, %v88
  %v93 = vpack.c.b16 %v89, %v89
  %98 = vst [vmem:[%s3] sm:$0xf] %v90
  %99 = vst [vmem:[%s3 + $0x4] sm:$0xf] %v91
  %100 = vst [vmem:[%s3 + $0x8] sm:$0xf] %v92
  %101 = vst [vmem:[%s3 + $0xc] sm:$0xf] %v93
  // Predicated region
  $region14: #{generator_forward.22} parent=0 // pred_check
    _
  $region15: #{generator_forward.22} parent=0 // pred_check_branch
    %103 = sbr.rel (0) target = $region17
  $region16: #{generator_forward.22} parent=0 // pred_region
    _
  $region17: #{generator_forward.22} parent=0 // pred_fallthru
    _
  // Predicated region
  $region18: #{generator_forward.22} parent=0 // pred_check
    _
  $region19: #{generator_forward.22} parent=0 // pred_check_branch
    %105 = sbr.rel (0) target = $region21
  $region20: #{generator_forward.22} parent=0 // pred_region
    _
  $region21: #{generator_forward.22} parent=0 // pred_fallthru
    _

// kernel: generator_forward.25
$region0: #{generator_forward.25}
  #allocation0 [shape = 'u32[]', space=smem, size = 0x4, offset = 0x4, fixed_abs, tag = 'smem constant byte address 0x4 - core index']
  #allocation1 [shape = 'u32[144,128]{1,0:T(1,128)}', space=vmem, size = 0x12000, scoped, tag = 'internal scratch']
  %s0 = inlined_call_operand.vmem [shape: bf16[32,128], index: 0, kind: input, shape index: {}]
  %s1 = inlined_call_operand.vmem [shape: f32[32,1], index: 1, kind: input, shape index: {}]
  %s2 = inlined_call_operand.vmem [shape: f32[32,1], index: 2, kind: input, shape index: {}]
  %s3 = inlined_call_operand.vmem [shape: bf16[32,128], index: 3, kind: input, shape index: {}]
  %s4 = inlined_call_operand.vmem [shape: bf16[32,128], index: 4, kind: output, shape index: {}]
  %s5 = sld [smem:[#allocation0]]
  $region26: #{generator_forward.25} parent=0
    _
  %s7 = ssub.s32 1, %s5
  %s8 = scalar_select 0, %s7, %s5
  // Predicated region
  $region2: #{generator_forward.25} parent=0 // pred_check
    _
  $region3: #{generator_forward.25} parent=0 // pred_check_branch
    %10 = sbr.rel (0) target = $region5
  $region4: #{generator_forward.25} parent=0 // pred_region
    _
  $region5: #{generator_forward.25} parent=0 // pred_fallthru
    _
  // Predicated region
  $region6: #{generator_forward.25} parent=0 // pred_check
    _
  $region7: #{generator_forward.25} parent=0 // pred_check_branch
    %12 = sbr.rel (0) target = $region9
  $region8: #{generator_forward.25} parent=0 // pred_region
    _
  $region9: #{generator_forward.25} parent=0 // pred_fallthru
    _
  // Predicated region
  $region10: #{generator_forward.25} parent=0 // pred_check
    _
  $region11: #{generator_forward.25} parent=0 // pred_check_branch
    %14 = sbr.rel (0) target = $region13
  $region12: #{generator_forward.25} parent=0 // pred_region
    _
  $region13: #{generator_forward.25} parent=0 // pred_fallthru
    _
  // Predicated region
  $region14: #{generator_forward.25} parent=0 // pred_check
    _
  $region15: #{generator_forward.25} parent=0 // pred_check_branch
    %16 = sbr.rel (0) target = $region17
  $region16: #{generator_forward.25} parent=0 // pred_region
    _
  $region17: #{generator_forward.25} parent=0 // pred_fallthru
    _
  %v17 = vld [vmem:[%s0] sm:$0xf]
  %v18 = vld [vmem:[%s0 + $0x4] sm:$0xf]
  %v19 = vld [vmem:[%s0 + $0x8] sm:$0xf]
  %v20 = vld [vmem:[%s0 + $0xc] sm:$0xf]
  %v21 = vunpack.c.l.bf16 %v17
  %v22 = vunpack.c.l.bf16 %v18
  %v23 = vunpack.c.l.bf16 %v19
  %v24 = vunpack.c.l.bf16 %v20
  %v25 = vld [vmem:[%s1] sm:$0xff]
  %v26 = vld [vmem:[%s1 + $0x8] sm:$0xff]
  %v27 = vld [vmem:[%s1 + $0x10] sm:$0xff]
  %v28 = vld [vmem:[%s1 + $0x18] sm:$0xff]
  %30 = vset.pattern.permute.xlu0 0
  %31 = vperm.xlu0 %30, %v25
  %v32 = vpop.permute.xlu0 %31
  %35 = vset.pattern.permute.xlu0 0
  %36 = vperm.xlu0 %35, %v26
  %v37 = vpop.permute.xlu0 %36
  %40 = vset.pattern.permute.xlu0 0
  %41 = vperm.xlu0 %40, %v27
  %v42 = vpop.permute.xlu0 %41
  %45 = vset.pattern.permute.xlu0 0
  %46 = vperm.xlu0 %45, %v28
  %v47 = vpop.permute.xlu0 %46
  %v49 = vmul.f32 %v21, %v32
  %v50 = vmul.f32 %v22, %v37
  %v51 = vmul.f32 %v23, %v42
  %v52 = vmul.f32 %v24, %v47
  %v53 = vld [vmem:[%s2] sm:$0xff]
  %v54 = vld [vmem:[%s2 + $0x8] sm:$0xff]
  %v55 = vld [vmem:[%s2 + $0x10] sm:$0xff]
  %v56 = vld [vmem:[%s2 + $0x18] sm:$0xff]
  %58 = vset.pattern.permute.xlu0 0
  %59 = vperm.xlu0 %58, %v53
  %v60 = vpop.permute.xlu0 %59
  %63 = vset.pattern.permute.xlu0 0
  %64 = vperm.xlu0 %63, %v54
  %v65 = vpop.permute.xlu0 %64
  %68 = vset.pattern.permute.xlu0 0
  %69 = vperm.xlu0 %68, %v55
  %v70 = vpop.permute.xlu0 %69
  %73 = vset.pattern.permute.xlu0 0
  %74 = vperm.xlu0 %73, %v56
  %v75 = vpop.permute.xlu0 %74
  %v77 = vadd.f32 %v49, %v60
  %v78 = vadd.f32 %v50, %v65
  %v79 = vadd.f32 %v51, %v70
  %v80 = vadd.f32 %v52, %v75
  %v81 = vld [vmem:[%s3] sm:$0xf]
  %v82 = vld [vmem:[%s3 + $0x4] sm:$0xf]
  %v83 = vld [vmem:[%s3 + $0x8] sm:$0xf]
  %v84 = vld [vmem:[%s3 + $0xc] sm:$0xf]
  %v85 = vunpack.c.l.bf16 %v81
  %v86 = vunpack.c.l.bf16 %v82
  %v87 = vunpack.c.l.bf16 %v83
  %v88 = vunpack.c.l.bf16 %v84
  %v89 = vadd.f32 %v77, %v85
  %v90 = vadd.f32 %v78, %v86
  %v91 = vadd.f32 %v79, %v87
  %v92 = vadd.f32 %v80, %v88
  %v93 = vpack.c.bf16 %v90, %v89
  %v94 = vpack.c.bf16 %v92, %v91
  %v97 = vunpack.c.l.b16 %v93
  %v98 = vunpack.c.h.b16 %v93
  %v99 = vunpack.c.l.b16 %v94
  %v100 = vunpack.c.h.b16 %v94
  %v101 = vpack.c.b16 %v97, %v97
  %v102 = vpack.c.b16 %v98, %v98
  %v103 = vpack.c.b16 %v99, %v99
  %v104 = vpack.c.b16 %v100, %v100
  %109 = vst [vmem:[%s4] sm:$0xf] %v101
  %110 = vst [vmem:[%s4 + $0x4] sm:$0xf] %v102
  %111 = vst [vmem:[%s4 + $0x8] sm:$0xf] %v103
  %112 = vst [vmem:[%s4 + $0xc] sm:$0xf] %v104
  // Predicated region
  $region18: #{generator_forward.25} parent=0 // pred_check
    _
  $region19: #{generator_forward.25} parent=0 // pred_check_branch
    %114 = sbr.rel (0) target = $region21
  $region20: #{generator_forward.25} parent=0 // pred_region
    _
  $region21: #{generator_forward.25} parent=0 // pred_fallthru
    _
  // Predicated region
  $region22: #{generator_forward.25} parent=0 // pred_check
    _
  $region23: #{generator_forward.25} parent=0 // pred_check_branch
    %116 = sbr.rel (0) target = $region25
  $region24: #{generator_forward.25} parent=0 // pred_region
    _
  $region25: #{generator_forward.25} parent=0 // pred_fallthru
    _

// kernel: generator_forward.29
$region0: #{generator_forward.29}
  #allocation0 [shape = 'u32[]', space=smem, size = 0x4, offset = 0x4, fixed_abs, tag = 'smem constant byte address 0x4 - core index']
  #allocation1 [shape = 'u32[144,128]{1,0:T(1,128)}', space=vmem, size = 0x12000, scoped, tag = 'internal scratch']
  %s0 = inlined_call_operand.vmem [shape: bf16[288,128], index: 0, kind: input, shape index: {}]
  %s1 = inlined_call_operand.vmem [shape: bf16[16,288], index: 1, kind: input, shape index: {}]
  %s2 = inlined_call_operand.vmem [shape: f32[16,1], index: 2, kind: input, shape index: {}]
  %s3 = inlined_call_operand.vmem [shape: bf16[16,128], index: 3, kind: output, shape index: {}]
  %s4 = sld [smem:[#allocation0]]
  $region22: #{generator_forward.29} parent=0
    _
  %s6 = ssub.s32 1, %s4
  %s7 = scalar_select 0, %s6, %s4
  // Predicated region
  $region2: #{generator_forward.29} parent=0 // pred_check
    _
  $region3: #{generator_forward.29} parent=0 // pred_check_branch
    %9 = sbr.rel (0) target = $region5
  $region4: #{generator_forward.29} parent=0 // pred_region
    _
  $region5: #{generator_forward.29} parent=0 // pred_fallthru
    _
  // Predicated region
  $region6: #{generator_forward.29} parent=0 // pred_check
    _
  $region7: #{generator_forward.29} parent=0 // pred_check_branch
    %11 = sbr.rel (0) target = $region9
  $region8: #{generator_forward.29} parent=0 // pred_region
    _
  $region9: #{generator_forward.29} parent=0 // pred_fallthru
    _
  // Predicated region
  $region10: #{generator_forward.29} parent=0 // pred_check
    _
  $region11: #{generator_forward.29} parent=0 // pred_check_branch
    %13 = sbr.rel (0) target = $region13
  $region12: #{generator_forward.29} parent=0 // pred_region
    _
  $region13: #{generator_forward.29} parent=0 // pred_fallthru
    _
  %v15 = vld [vmem:[%s1] sm:$0xff]
  %v16 = vld [vmem:[%s1 + $0x8] sm:$0xf]
  %v17 = vld [vmem:[%s1 + $0xc] sm:$0xff]
  %v18 = vld [vmem:[%s1 + $0x14] sm:$0xf]
  %v19 = vld [vmem:[%s0] sm:$0xf]
  %v20 = vld [vmem:[%s0 + $0x4] sm:$0xf]
  %v21 = vld [vmem:[%s0 + $0x8] sm:$0xf]
  %v22 = vld [vmem:[%s0 + $0xc] sm:$0xf]
  %v23 = vld [vmem:[%s0 + $0x10] sm:$0xf]
  %v24 = vld [vmem:[%s0 + $0x14] sm:$0xf]
  %v25 = vld [vmem:[%s0 + $0x18] sm:$0xf]
  %v26 = vld [vmem:[%s0 + $0x1c] sm:$0xf]
  %v27 = vld [vmem:[%s0 + $0x20] sm:$0xf]
  %v28 = vld [vmem:[%s0 + $0x24] sm:$0xf]
  %v29 = vld [vmem:[%s0 + $0x28] sm:$0xf]
  %v30 = vld [vmem:[%s0 + $0x2c] sm:$0xf]
  %v31 = vld [vmem:[%s0 + $0x30] sm:$0xf]
  %v32 = vld [vmem:[%s0 + $0x34] sm:$0xf]
  %v33 = vld [vmem:[%s0 + $0x38] sm:$0xf]
  %v34 = vld [vmem:[%s0 + $0x3c] sm:$0xf]
  %v35 = vld [vmem:[%s0 + $0x40] sm:$0xf]
  %v36 = vld [vmem:[%s0 + $0x44] sm:$0xf]
  %v37 = vld [vmem:[%s0 + $0x48] sm:$0xf]
  %v38 = vld [vmem:[%s0 + $0x4c] sm:$0xf]
  %v39 = vld [vmem:[%s0 + $0x50] sm:$0xf]
  %v40 = vld [vmem:[%s0 + $0x54] sm:$0xf]
  %v41 = vld [vmem:[%s0 + $0x58] sm:$0xf]
  %v42 = vld [vmem:[%s0 + $0x5c] sm:$0xf]
  %v43 = vld [vmem:[%s0 + $0x60] sm:$0xf]
  %v44 = vld [vmem:[%s0 + $0x64] sm:$0xf]
  %v45 = vld [vmem:[%s0 + $0x68] sm:$0xf]
  %v46 = vld [vmem:[%s0 + $0x6c] sm:$0xf]
  %v47 = vld [vmem:[%s0 + $0x70] sm:$0xf]
  %v48 = vld [vmem:[%s0 + $0x74] sm:$0xf]
  %v49 = vld [vmem:[%s0 + $0x78] sm:$0xf]
  %v50 = vld [vmem:[%s0 + $0x7c] sm:$0xf]
  %v51 = vld [vmem:[%s0 + $0x80] sm:$0xf]
  %v52 = vld [vmem:[%s0 + $0x84] sm:$0xf]
  %v53 = vld [vmem:[%s0 + $0x88] sm:$0xf]
  %v54 = vld [vmem:[%s0 + $0x8c] sm:$0xf]
  %v55 = vld [vmem:[%s2] sm:$0xff]
  %v56 = vld [vmem:[%s2 + $0x8] sm:$0xff]
  %58 = vset.pattern.permute.xlu0 0
  %59 = vperm.xlu0 %58, %v55
  %v60 = vpop.permute.xlu0 %59
  %63 = vset.pattern.permute.xlu0 0
  %64 = vperm.xlu0 %63, %v56
  %v65 = vpop.permute.xlu0 %64
  %v71 = vunpack.c.l.b16 %v15
  %v72 = vunpack.c.h.b16 %v15
  %v73 = vunpack.c.l.b16 %v16
  %v74 = vunpack.c.l.b16 %v17
  %v75 = vunpack.c.h.b16 %v17
  %v76 = vunpack.c.l.b16 %v18
  %v77 = vpack.c.b16 %v74, %v71
  %v78 = vpack.c.b16 %v75, %v72
  %v79 = vpack.c.b16 %v76, %v73
  %v118 = vunpack.c.l.b16 %v19
  %v119 = vunpack.c.l.b16 %v20
  %v120 = vunpack.c.l.b16 %v21
  %v121 = vunpack.c.l.b16 %v22
  %v122 = vunpack.c.l.b16 %v23
  %v123 = vunpack.c.l.b16 %v24
  %v124 = vunpack.c.l.b16 %v25
  %v125 = vunpack.c.l.b16 %v26
  %v126 = vunpack.c.l.b16 %v27
  %v127 = vunpack.c.l.b16 %v28
  %v128 = vunpack.c.l.b16 %v29
  %v129 = vunpack.c.l.b16 %v30
  %v130 = vunpack.c.l.b16 %v31
  %v131 = vunpack.c.l.b16 %v32
  %v132 = vunpack.c.l.b16 %v33
  %v133 = vunpack.c.l.b16 %v34
  %v134 = vunpack.c.l.b16 %v35
  %v135 = vunpack.c.l.b16 %v36
  %v136 = vunpack.c.l.b16 %v37
  %v137 = vunpack.c.l.b16 %v38
  %v138 = vunpack.c.l.b16 %v39
  %v139 = vunpack.c.l.b16 %v40
  %v140 = vunpack.c.l.b16 %v41
  %v141 = vunpack.c.l.b16 %v42
  %v142 = vunpack.c.l.b16 %v43
  %v143 = vunpack.c.l.b16 %v44
  %v144 = vunpack.c.l.b16 %v45
  %v145 = vunpack.c.l.b16 %v46
  %v146 = vunpack.c.l.b16 %v47
  %v147 = vunpack.c.l.b16 %v48
  %v148 = vunpack.c.l.b16 %v49
  %v149 = vunpack.c.l.b16 %v50
  %v150 = vunpack.c.l.b16 %v51
  %v151 = vunpack.c.l.b16 %v52
  %v152 = vunpack.c.l.b16 %v53
  %v153 = vunpack.c.l.b16 %v54
  %v154 = vpack.c.b16 %v119, %v118
  %v155 = vpack.c.b16 %v121, %v120
  %v156 = vpack.c.b16 %v123, %v122
  %v157 = vpack.c.b16 %v125, %v124
  %v158 = vpack.c.b16 %v127, %v126
  %v159 = vpack.c.b16 %v129, %v128
  %v160 = vpack.c.b16 %v131, %v130
  %v161 = vpack.c.b16 %v133, %v132
  %v162 = vpack.c.b16 %v135, %v134
  %v163 = vpack.c.b16 %v137, %v136
  %v164 = vpack.c.b16 %v139, %v138
  %v165 = vpack.c.b16 %v141, %v140
  %v166 = vpack.c.b16 %v143, %v142
  %v167 = vpack.c.b16 %v145, %v144
  %v168 = vpack.c.b16 %v147, %v146
  %v169 = vpack.c.b16 %v149, %v148
  %v170 = vpack.c.b16 %v151, %v150
  %v171 = vpack.c.b16 %v153, %v152
  %vm190 = vcmask 261120
  %v192 = vsel %vm190, %v79, 0
  %194 = vmatprep.subr.bf16.mxu0 0
  %195 = vmatpush1.bf16.msra.mxu0 %v154
  %196 = vmatprep.subr.bf16.mxu0 0
  %197 = vmatpush1.bf16.msra.mxu0 %v155
  %198 = vmatprep.subr.bf16.mxu0 0
  %199 = vmatpush1.bf16.msra.mxu0 %v156
  %200 = vmatprep.subr.bf16.mxu0 0
  %201 = vmatpush1.bf16.msra.mxu0 %v157
  %202 = vmatprep.subr.bf16.mxu0 0
  %203 = vmatpush1.bf16.msra.mxu0 %v158
  %204 = vmatprep.subr.bf16.mxu0 0
  %205 = vmatpush1.bf16.msra.mxu0 %v159
  %206 = vmatprep.subr.bf16.mxu0 0
  %207 = vmatpush1.bf16.msra.mxu0 %v160
  %208 = vmatprep.subr.bf16.mxu0 0
  %209 = vmatpush1.bf16.msra.mxu0 %v161
  %210 = vmatprep.subr.bf16.mxu0 0
  %211 = vmatpush1.bf16.msra.mxu0 %v162
  %212 = vmatprep.subr.bf16.mxu0 0
  %213 = vmatpush1.bf16.msra.mxu0 %v163
  %214 = vmatprep.subr.bf16.mxu0 0
  %215 = vmatpush1.bf16.msra.mxu0 %v164
  %216 = vmatprep.subr.bf16.mxu0 0
  %217 = vmatpush1.bf16.msra.mxu0 %v165
  %218 = vmatprep.subr.bf16.mxu0 0
  %219 = vmatpush1.bf16.msra.mxu0 %v166
  %220 = vmatprep.subr.bf16.mxu0 0
  %221 = vmatpush1.bf16.msra.mxu0 %v167
  %222 = vmatprep.subr.bf16.mxu0 0
  %223 = vmatpush1.bf16.msra.mxu0 %v168
  %224 = vmatprep.subr.bf16.mxu0 0
  %225 = vmatpush1.bf16.msra.mxu0 %v169
  %226 = vmatprep.mubr.bf16.mxu0 %v78
  %227 = vmatmul.mubr.bf16.gmra.mrb[0].mxu0 %v77
  %v228 = vpop.f32.mrb[0].mxu0
  %v229 = vadd.f32 %v60, %v228
  %v230 = vpop.f32.mrb[0].mxu0
  %v231 = vpop.f32.mrb[0].mxu0
  %v232 = vadd.f32 %v65, %v231
  %v233 = vpop.f32.mrb[0].mxu0
  %234 = vdwg.mxu0
  %235 = vmatprep.subr.bf16.mxu0 0
  %236 = vmatpush1.bf16.msra.mxu0 %v170
  %237 = vmatprep.subr.bf16.mxu0 0
  %238 = vmatpush1.bf16.msra.mxu0 %v171
  %239 = vmatprep.subr.bf16.mxu0 0
  %240 = vmatpush1.bf16.msra.mxu0 0
  %241 = vmatprep.subr.bf16.mxu0 0
  %242 = vmatpush1.bf16.msra.mxu0 0
  %243 = vmatprep.subr.bf16.mxu0 0
  %244 = vmatpush1.bf16.msra.mxu0 0
  %245 = vmatprep.subr.bf16.mxu0 0
  %246 = vmatpush1.bf16.msra.mxu0 0
  %247 = vmatprep.subr.bf16.mxu0 0
  %248 = vmatpush1.bf16.msra.mxu0 0
  %249 = vmatprep.subr.bf16.mxu0 0
  %250 = vmatpush1.bf16.msra.mxu0 0
  %251 = vmatprep.subr.bf16.mxu0 0
  %252 = vmatpush1.bf16.msra.mxu0 0
  %253 = vmatprep.subr.bf16.mxu0 0
  %254 = vmatpush1.bf16.msra.mxu0 0
  %255 = vmatprep.subr.bf16.mxu0 0
  %256 = vmatpush1.bf16.msra.mxu0 0
  %257 = vmatprep.subr.bf16.mxu0 0
  %258 = vmatpush1.bf16.msra.mxu0 0
  %259 = vmatprep.subr.bf16.mxu0 0
  %260 = vmatpush1.bf16.msra.mxu0 0
  %261 = vmatprep.subr.bf16.mxu0 0
  %262 = vmatpush1.bf16.msra.mxu0 0
  %263 = vmatprep.subr.bf16.mxu0 0
  %264 = vmatpush1.bf16.msra.mxu0 0
  %265 = vmatprep.subr.bf16.mxu0 0
  %266 = vmatpush1.bf16.msra.mxu0 0
  %267 = vmatprep.mubr.bf16.mxu0 0
  %268 = vmatmul.mubr.bf16.gmra.mrb[0].mxu0 %v192
  %v269 = vpop.f32.mrb[0].mxu0
  %v270 = vadd.f32 %v229, %v269
  %v271 = vpop.f32.mrb[0].mxu0
  %v272 = vpop.f32.mrb[0].mxu0
  %v273 = vadd.f32 %v232, %v272
  %v274 = vpop.f32.mrb[0].mxu0
  %275 = vdwg.mxu0
  %v276 = vpack.c.bf16 %v273, %v270
  %v278 = vunpack.c.l.b16 %v276
  %v279 = vunpack.c.h.b16 %v276
  %v280 = vpack.c.b16 %v278, %v278
  %v281 = vpack.c.b16 %v279, %v279
  %284 = vst [vmem:[%s3] sm:$0xf] %v280
  %285 = vst [vmem:[%s3 + $0x4] sm:$0xf] %v281
  // Predicated region
  $region14: #{generator_forward.29} parent=0 // pred_check
    _
  $region15: #{generator_forward.29} parent=0 // pred_check_branch
    %287 = sbr.rel (0) target = $region17
  $region16: #{generator_forward.29} parent=0 // pred_region
    _
  $region17: #{generator_forward.29} parent=0 // pred_fallthru
    _
  // Predicated region
  $region18: #{generator_forward.29} parent=0 // pred_check
    _
  $region19: #{generator_forward.29} parent=0 // pred_check_branch
    %289 = sbr.rel (0) target = $region21
  $region20: #{generator_forward.29} parent=0 // pred_region
    _
  $region21: #{generator_forward.29} parent=0 // pred_fallthru
    _

// kernel: generator_forward.31
$region0: #{generator_forward.31}
  #allocation0 [shape = 'u32[]', space=smem, size = 0x4, offset = 0x4, fixed_abs, tag = 'smem constant byte address 0x4 - core index']
  #allocation1 [shape = 'u32[144,128]{1,0:T(1,128)}', space=vmem, size = 0x12000, scoped, tag = 'internal scratch']
  %s0 = inlined_call_operand.vmem [shape: bf16[144,512], index: 0, kind: input, shape index: {}]
  %s1 = inlined_call_operand.vmem [shape: bf16[8,144], index: 1, kind: input, shape index: {}]
  %s2 = inlined_call_operand.vmem [shape: f32[8,1], index: 2, kind: input, shape index: {}]
  %s3 = inlined_call_operand.vmem [shape: bf16[8,512], index: 3, kind: output, shape index: {}]
  %s4 = sld [smem:[#allocation0]]
  $region22: #{generator_forward.31} parent=0
    _
  %s6 = ssub.s32 1, %s4
  %s7 = scalar_select 0, %s6, %s4
  // Predicated region
  $region2: #{generator_forward.31} parent=0 // pred_check
    _
  $region3: #{generator_forward.31} parent=0 // pred_check_branch
    %9 = sbr.rel (0) target = $region5
  $region4: #{generator_forward.31} parent=0 // pred_region
    _
  $region5: #{generator_forward.31} parent=0 // pred_fallthru
    _
  // Predicated region
  $region6: #{generator_forward.31} parent=0 // pred_check
    _
  $region7: #{generator_forward.31} parent=0 // pred_check_branch
    %11 = sbr.rel (0) target = $region9
  $region8: #{generator_forward.31} parent=0 // pred_region
    _
  $region9: #{generator_forward.31} parent=0 // pred_fallthru
    _
  // Predicated region
  $region10: #{generator_forward.31} parent=0 // pred_check
    _
  $region11: #{generator_forward.31} parent=0 // pred_check_branch
    %13 = sbr.rel (0) target = $region13
  $region12: #{generator_forward.31} parent=0 // pred_region
    _
  $region13: #{generator_forward.31} parent=0 // pred_fallthru
    _
  %v15 = vld [vmem:[%s1] sm:$0xff]
  %v16 = vld [vmem:[%s0] sm:$0xff]
  %v17 = vld [vmem:[%s0 + $0x8] sm:$0xff]
  %v18 = vld [vmem:[%s0 + $0x10] sm:$0xff]
  %v19 = vld [vmem:[%s0 + $0x18] sm:$0xff]
  %v20 = vld [vmem:[%s0 + $0x20] sm:$0xff]
  %v21 = vld [vmem:[%s0 + $0x28] sm:$0xff]
  %v22 = vld [vmem:[%s0 + $0x30] sm:$0xff]
  %v23 = vld [vmem:[%s0 + $0x38] sm:$0xff]
  %v24 = vld [vmem:[%s0 + $0x40] sm:$0xff]
  %v25 = vld [vmem:[%s0 + $0x48] sm:$0xff]
  %v26 = vld [vmem:[%s0 + $0x50] sm:$0xff]
  %v27 = vld [vmem:[%s0 + $0x58] sm:$0xff]
  %v28 = vld [vmem:[%s0 + $0x60] sm:$0xff]
  %v29 = vld [vmem:[%s0 + $0x68] sm:$0xff]
  %v30 = vld [vmem:[%s0 + $0x70] sm:$0xff]
  %v31 = vld [vmem:[%s0 + $0x78] sm:$0xff]
  %v32 = vld [vmem:[%s0 + $0x80] sm:$0xff]
  %v33 = vld [vmem:[%s0 + $0x88] sm:$0xff]
  %v34 = vld [vmem:[%s0 + $0x90] sm:$0xff]
  %v35 = vld [vmem:[%s0 + $0x98] sm:$0xff]
  %v36 = vld [vmem:[%s0 + $0xa0] sm:$0xff]
  %v37 = vld [vmem:[%s0 + $0xa8] sm:$0xff]
  %v38 = vld [vmem:[%s0 + $0xb0] sm:$0xff]
  %v39 = vld [vmem:[%s0 + $0xb8] sm:$0xff]
  %v40 = vld [vmem:[%s0 + $0xc0] sm:$0xff]
  %v41 = vld [vmem:[%s0 + $0xc8] sm:$0xff]
  %v42 = vld [vmem:[%s0 + $0xd0] sm:$0xff]
  %v43 = vld [vmem:[%s0 + $0xd8] sm:$0xff]
  %v44 = vld [vmem:[%s0 + $0xe0] sm:$0xff]
  %v45 = vld [vmem:[%s0 + $0xe8] sm:$0xff]
  %v46 = vld [vmem:[%s0 + $0xf0] sm:$0xff]
  %v47 = vld [vmem:[%s0 + $0xf8] sm:$0xff]
  %v48 = vld [vmem:[%s0 + $0x100] sm:$0xff]
  %v49 = vld [vmem:[%s0 + $0x108] sm:$0xff]
  %v50 = vld [vmem:[%s0 + $0x110] sm:$0xff]
  %v51 = vld [vmem:[%s0 + $0x118] sm:$0xff]
  %v52 = vld [vmem:[%s2] sm:$0xff]
  %54 = vset.pattern.permute.xlu0 0
  %55 = vperm.xlu0 %54, %v52
  %v56 = vpop.permute.xlu0 %55
  %v59 = vunpack.c.l.b16 %v15
  %v60 = vunpack.c.h.b16 %v15
  %v61 = vpack.c.b16 %v59, %v59
  %v62 = vpack.c.b16 %v60, %v60
  %v100 = vunpack.c.l.b16 %v16
  %v101 = vunpack.c.h.b16 %v16
  %v102 = vunpack.c.l.b16 %v17
  %v103 = vunpack.c.h.b16 %v17
  %v104 = vunpack.c.l.b16 %v18
  %v105 = vunpack.c.h.b16 %v18
  %v106 = vunpack.c.l.b16 %v19
  %v107 = vunpack.c.h.b16 %v19
  %v108 = vunpack.c.l.b16 %v20
  %v109 = vunpack.c.h.b16 %v20
  %v110 = vunpack.c.l.b16 %v21
  %v111 = vunpack.c.h.b16 %v21
  %v112 = vunpack.c.l.b16 %v22
  %v113 = vunpack.c.h.b16 %v22
  %v114 = vunpack.c.l.b16 %v23
  %v115 = vunpack.c.h.b16 %v23
  %v116 = vunpack.c.l.b16 %v24
  %v117 = vunpack.c.h.b16 %v24
  %v118 = vunpack.c.l.b16 %v25
  %v119 = vunpack.c.h.b16 %v25
  %v120 = vunpack.c.l.b16 %v26
  %v121 = vunpack.c.h.b16 %v26
  %v122 = vunpack.c.l.b16 %v27
  %v123 = vunpack.c.h.b16 %v27
  %v124 = vunpack.c.l.b16 %v28
  %v125 = vunpack.c.h.b16 %v28
  %v126 = vunpack.c.l.b16 %v29
  %v127 = vunpack.c.h.b16 %v29
  %v128 = vunpack.c.l.b16 %v30
  %v129 = vunpack.c.h.b16 %v30
  %v130 = vunpack.c.l.b16 %v31
  %v131 = vunpack.c.h.b16 %v31
  %v132 = vunpack.c.l.b16 %v32
  %v133 = vunpack.c.h.b16 %v32
  %v134 = vunpack.c.l.b16 %v33
  %v135 = vunpack.c.h.b16 %v33
  %v136 = vunpack.c.l.b16 %v34
  %v137 = vunpack.c.h.b16 %v34
  %v138 = vunpack.c.l.b16 %v35
  %v139 = vunpack.c.h.b16 %v35
  %v140 = vunpack.c.l.b16 %v36
  %v141 = vunpack.c.h.b16 %v36
  %v142 = vunpack.c.l.b16 %v37
  %v143 = vunpack.c.h.b16 %v37
  %v144 = vunpack.c.l.b16 %v38
  %v145 = vunpack.c.h.b16 %v38
  %v146 = vunpack.c.l.b16 %v39
  %v147 = vunpack.c.h.b16 %v39
  %v148 = vunpack.c.l.b16 %v40
  %v149 = vunpack.c.h.b16 %v40
  %v150 = vunpack.c.l.b16 %v41
  %v151 = vunpack.c.h.b16 %v41
  %v152 = vunpack.c.l.b16 %v42
  %v153 = vunpack.c.h.b16 %v42
  %v154 = vunpack.c.l.b16 %v43
  %v155 = vunpack.c.h.b16 %v43
  %v156 = vunpack.c.l.b16 %v44
  %v157 = vunpack.c.h.b16 %v44
  %v158 = vunpack.c.l.b16 %v45
  %v159 = vunpack.c.h.b16 %v45
  %v160 = vunpack.c.l.b16 %v46
  %v161 = vunpack.c.h.b16 %v46
  %v162 = vunpack.c.l.b16 %v47
  %v163 = vunpack.c.h.b16 %v47
  %v164 = vunpack.c.l.b16 %v48
  %v165 = vunpack.c.h.b16 %v48
  %v166 = vunpack.c.l.b16 %v49
  %v167 = vunpack.c.h.b16 %v49
  %v168 = vunpack.c.l.b16 %v50
  %v169 = vunpack.c.h.b16 %v50
  %v170 = vunpack.c.l.b16 %v51
  %v171 = vunpack.c.h.b16 %v51
  %v172 = vpack.c.b16 %v104, %v100
  %v173 = vpack.c.b16 %v105, %v101
  %v174 = vpack.c.b16 %v106, %v102
  %v175 = vpack.c.b16 %v107, %v103
  %v176 = vpack.c.b16 %v112, %v108
  %v177 = vpack.c.b16 %v113, %v109
  %v178 = vpack.c.b16 %v114, %v110
  %v179 = vpack.c.b16 %v115, %v111
  %v180 = vpack.c.b16 %v120, %v116
  %v181 = vpack.c.b16 %v121, %v117
  %v182 = vpack.c.b16 %v122, %v118
  %v183 = vpack.c.b16 %v123, %v119
  %v184 = vpack.c.b16 %v128, %v124
  %v185 = vpack.c.b16 %v129, %v125
  %v186 = vpack.c.b16 %v130, %v126
  %v187 = vpack.c.b16 %v131, %v127
  %v188 = vpack.c.b16 %v136, %v132
  %v189 = vpack.c.b16 %v137, %v133
  %v190 = vpack.c.b16 %v138, %v134
  %v191 = vpack.c.b16 %v139, %v135
  %v192 = vpack.c.b16 %v144, %v140
  %v193 = vpack.c.b16 %v145, %v141
  %v194 = vpack.c.b16 %v146, %v142
  %v195 = vpack.c.b16 %v147, %v143
  %v196 = vpack.c.b16 %v152, %v148
  %v197 = vpack.c.b16 %v153, %v149
  %v198 = vpack.c.b16 %v154, %v150
  %v199 = vpack.c.b16 %v155, %v151
  %v200 = vpack.c.b16 %v160, %v156
  %v201 = vpack.c.b16 %v161, %v157
  %v202 = vpack.c.b16 %v162, %v158
  %v203 = vpack.c.b16 %v163, %v159
  %v204 = vpack.c.b16 %v168, %v164
  %v205 = vpack.c.b16 %v169, %v165
  %v206 = vpack.c.b16 %v170, %v166
  %v207 = vpack.c.b16 %v171, %v167
  %vm244 = vcmask 130048
  %v246 = vsel %vm244, %v62, 0
  %248 = vmatprep.subr.bf16.mxu0 %v173
  %249 = vmatpush1.bf16.msra.mxu0 %v172
  %250 = vmatprep.subr.bf16.mxu0 %v177
  %251 = vmatpush1.bf16.msra.mxu0 %v176
  %252 = vmatprep.subr.bf16.mxu0 %v181
  %253 = vmatpush1.bf16.msra.mxu0 %v180
  %254 = vmatprep.subr.bf16.mxu0 %v185
  %255 = vmatpush1.bf16.msra.mxu0 %v184
  %256 = vmatprep.subr.bf16.mxu0 %v189
  %257 = vmatpush1.bf16.msra.mxu0 %v188
  %258 = vmatprep.subr.bf16.mxu0 %v193
  %259 = vmatpush1.bf16.msra.mxu0 %v192
  %260 = vmatprep.subr.bf16.mxu0 %v197
  %261 = vmatpush1.bf16.msra.mxu0 %v196
  %262 = vmatprep.subr.bf16.mxu0 %v201
  %263 = vmatpush1.bf16.msra.mxu0 %v200
  %264 = vmatprep.subr.bf16.mxu0 %v205
  %265 = vmatpush1.bf16.msra.mxu0 %v204
  %266 = vmatprep.subr.bf16.mxu0 0
  %267 = vmatpush1.bf16.msra.mxu0 0
  %268 = vmatprep.subr.bf16.mxu0 0
  %269 = vmatpush1.bf16.msra.mxu0 0
  %270 = vmatprep.subr.bf16.mxu0 0
  %271 = vmatpush1.bf16.msra.mxu0 0
  %272 = vmatprep.subr.bf16.mxu0 0
  %273 = vmatpush1.bf16.msra.mxu0 0
  %274 = vmatprep.subr.bf16.mxu0 0
  %275 = vmatpush1.bf16.msra.mxu0 0
  %276 = vmatprep.subr.bf16.mxu0 0
  %277 = vmatpush1.bf16.msra.mxu0 0
  %278 = vmatprep.subr.bf16.mxu0 0
  %279 = vmatpush1.bf16.msra.mxu0 0
  %280 = vmatprep.mubr.bf16.mxu0 %v246
  %281 = vmatmul.mubr.bf16.gmra.mrb[0].mxu0 %v61
  %v282 = vpop.f32.mrb[0].mxu0
  %v283 = vadd.f32 %v56, %v282
  %v284 = vpop.f32.mrb[0].mxu0
  %v285 = vadd.f32 %v56, %v284
  %v286 = vpop.f32.mrb[0].mxu0
  %v287 = vpop.f32.mrb[0].mxu0
  %288 = vdwg.mxu0
  %289 = vmatprep.subr.bf16.mxu0 %v175
  %290 = vmatpush1.bf16.msra.mxu0 %v174
  %291 = vmatprep.subr.bf16.mxu0 %v179
  %292 = vmatpush1.bf16.msra.mxu0 %v178
  %293 = vmatprep.subr.bf16.mxu0 %v183
  %294 = vmatpush1.bf16.msra.mxu0 %v182
  %295 = vmatprep.subr.bf16.mxu0 %v187
  %296 = vmatpush1.bf16.msra.mxu0 %v186
  %297 = vmatprep.subr.bf16.mxu0 %v191
  %298 = vmatpush1.bf16.msra.mxu0 %v190
  %299 = vmatprep.subr.bf16.mxu0 %v195
  %300 = vmatpush1.bf16.msra.mxu0 %v194
  %301 = vmatprep.subr.bf16.mxu0 %v199
  %302 = vmatpush1.bf16.msra.mxu0 %v198
  %303 = vmatprep.subr.bf16.mxu0 %v203
  %304 = vmatpush1.bf16.msra.mxu0 %v202
  %305 = vmatprep.subr.bf16.mxu0 %v207
  %306 = vmatpush1.bf16.msra.mxu0 %v206
  %307 = vmatprep.subr.bf16.mxu0 0
  %308 = vmatpush1.bf16.msra.mxu0 0
  %309 = vmatprep.subr.bf16.mxu0 0
  %310 = vmatpush1.bf16.msra.mxu0 0
  %311 = vmatprep.subr.bf16.mxu0 0
  %312 = vmatpush1.bf16.msra.mxu0 0
  %313 = vmatprep.subr.bf16.mxu0 0
  %314 = vmatpush1.bf16.msra.mxu0 0
  %315 = vmatprep.subr.bf16.mxu0 0
  %316 = vmatpush1.bf16.msra.mxu0 0
  %317 = vmatprep.subr.bf16.mxu0 0
  %318 = vmatpush1.bf16.msra.mxu0 0
  %319 = vmatprep.subr.bf16.mxu0 0
  %320 = vmatpush1.bf16.msra.mxu0 0
  %321 = vmatprep.mubr.bf16.mxu0 %v246
  %322 = vmatmul.mubr.bf16.gmra.mrb[0].mxu0 %v61
  %v323 = vpop.f32.mrb[0].mxu0
  %v324 = vadd.f32 %v56, %v323
  %v325 = vpop.f32.mrb[0].mxu0
  %v326 = vadd.f32 %v56, %v325
  %v327 = vpop.f32.mrb[0].mxu0
  %v328 = vpop.f32.mrb[0].mxu0
  %329 = vdwg.mxu0
  %v330 = vpack.c.bf16 %v283, %v283
  %v331 = vpack.c.bf16 %v285, %v285
  %v332 = vpack.c.bf16 %v324, %v324
  %v333 = vpack.c.bf16 %v326, %v326
  %v338 = vunpack.c.l.b16 %v330
  %v339 = vunpack.c.l.b16 %v331
  %v340 = vunpack.c.l.b16 %v332
  %v341 = vunpack.c.l.b16 %v333
  %v342 = vpack.c.b16 %v339, %v338
  %v343 = vpack.c.b16 %v341, %v340
  %346 = vst [vmem:[%s3] sm:$0xff] %v342
  %347 = vst [vmem:[%s3 + $0x8] sm:$0xff] %v343
  // Predicated region
  $region14: #{generator_forward.31} parent=0 // pred_check
    _
  $region15: #{generator_forward.31} parent=0 // pred_check_branch
    %349 = sbr.rel (0) target = $region17
  $region16: #{generator_forward.31} parent=0 // pred_region
    _
  $region17: #{generator_forward.31} parent=0 // pred_fallthru
    _
  // Predicated region
  $region18: #{generator_forward.31} parent=0 // pred_check
    _
  $region19: #{generator_forward.31} parent=0 // pred_check_branch
    %351 = sbr.rel (0) target = $region21
  $region20: #{generator_forward.31} parent=0 // pred_region
    _
  $region21: #{generator_forward.31} parent=0 // pred_fallthru
    _

// kernel: generator_forward.32
$region0: #{generator_forward.32}
  #allocation0 [shape = 'u32[]', space=smem, size = 0x4, offset = 0x4, fixed_abs, tag = 'smem constant byte address 0x4 - core index']
  #allocation1 [shape = 'u32[144,128]{1,0:T(1,128)}', space=vmem, size = 0x12000, scoped, tag = 'internal scratch']
  #allocation2 [shape = 'f32[8,1]{1,0:T(8,128)}', space=vmem, size = 0x1000, scoped, tag = 'scratch operand']
  #allocation3 [shape = 'f32[8,1]{1,0:T(8,128)}', space=vmem, size = 0x1000, scoped, tag = 'scratch operand']
  %s0 = inlined_call_operand.vmem [shape: bf16[72,512], index: 0, kind: input, shape index: {}]
  %s1 = inlined_call_operand.vmem [shape: bf16[8,72], index: 1, kind: input, shape index: {}]
  %s2 = inlined_call_operand.vmem [shape: f32[8,1], index: 2, kind: input, shape index: {}]
  %s3 = inlined_call_operand.vmem [shape: bf16[8,512], index: 3, kind: output, shape index: {0}]
  %s4 = inlined_call_operand.vmem [shape: f32[8,1], index: 4, kind: output, shape index: {1}]
  %s5 = inlined_call_operand.vmem [shape: f32[8,1], index: 5, kind: output, shape index: {2}]
  %6 = xla_tuple %s3, %s4, %s5
  %s7 = sld [smem:[#allocation0]]
  $region46: #{generator_forward.32} parent=0
    _
  %s9 = ssub.s32 1, %s7
  %s10 = scalar_select 0, %s9, %s7
  // Predicated region
  $region2: #{generator_forward.32} parent=0 // pred_check
    _
  $region3: #{generator_forward.32} parent=0 // pred_check_branch
    %12 = sbr.rel (0) target = $region5
  $region4: #{generator_forward.32} parent=0 // pred_region
    _
  $region5: #{generator_forward.32} parent=0 // pred_fallthru
    _
  // Predicated region
  $region6: #{generator_forward.32} parent=0 // pred_check
    _
  $region7: #{generator_forward.32} parent=0 // pred_check_branch
    %14 = sbr.rel (0) target = $region9
  $region8: #{generator_forward.32} parent=0 // pred_region
    _
  $region9: #{generator_forward.32} parent=0 // pred_fallthru
    _
  // Predicated region
  $region10: #{generator_forward.32} parent=0 // pred_check
    _
  $region11: #{generator_forward.32} parent=0 // pred_check_branch
    %16 = sbr.rel (0) target = $region13
  $region12: #{generator_forward.32} parent=0 // pred_region
    _
  $region13: #{generator_forward.32} parent=0 // pred_fallthru
    _
  %v18 = vld [vmem:[%s1] sm:$0xf]
  %v19 = vld [vmem:[%s0] sm:$0xff]
  %v20 = vld [vmem:[%s0 + $0x8] sm:$0xff]
  %v21 = vld [vmem:[%s0 + $0x10] sm:$0xff]
  %v22 = vld [vmem:[%s0 + $0x18] sm:$0xff]
  %v23 = vld [vmem:[%s0 + $0x20] sm:$0xff]
  %v24 = vld [vmem:[%s0 + $0x28] sm:$0xff]
  %v25 = vld [vmem:[%s0 + $0x30] sm:$0xff]
  %v26 = vld [vmem:[%s0 + $0x38] sm:$0xff]
  %v27 = vld [vmem:[%s0 + $0x40] sm:$0xff]
  %v28 = vld [vmem:[%s0 + $0x48] sm:$0xff]
  %v29 = vld [vmem:[%s0 + $0x50] sm:$0xff]
  %v30 = vld [vmem:[%s0 + $0x58] sm:$0xff]
  %v31 = vld [vmem:[%s0 + $0x60] sm:$0xff]
  %v32 = vld [vmem:[%s0 + $0x68] sm:$0xff]
  %v33 = vld [vmem:[%s0 + $0x70] sm:$0xff]
  %v34 = vld [vmem:[%s0 + $0x78] sm:$0xff]
  %v35 = vld [vmem:[%s0 + $0x80] sm:$0xff]
  %v36 = vld [vmem:[%s0 + $0x88] sm:$0xff]
  %v37 = vld [vmem:[%s2] sm:$0xff]
  %39 = vset.pattern.permute.xlu0 0
  %40 = vperm.xlu0 %39, %v37
  %v41 = vpop.permute.xlu0 %40
  %v61 = vunpack.c.l.b16 %v19
  %v62 = vunpack.c.h.b16 %v19
  %v63 = vunpack.c.l.b16 %v20
  %v64 = vunpack.c.h.b16 %v20
  %v65 = vunpack.c.l.b16 %v21
  %v66 = vunpack.c.h.b16 %v21
  %v67 = vunpack.c.l.b16 %v22
  %v68 = vunpack.c.h.b16 %v22
  %v69 = vunpack.c.l.b16 %v23
  %v70 = vunpack.c.h.b16 %v23
  %v71 = vunpack.c.l.b16 %v24
  %v72 = vunpack.c.h.b16 %v24
  %v73 = vunpack.c.l.b16 %v25
  %v74 = vunpack.c.h.b16 %v25
  %v75 = vunpack.c.l.b16 %v26
  %v76 = vunpack.c.h.b16 %v26
  %v77 = vunpack.c.l.b16 %v27
  %v78 = vunpack.c.h.b16 %v27
  %v79 = vunpack.c.l.b16 %v28
  %v80 = vunpack.c.h.b16 %v28
  %v81 = vunpack.c.l.b16 %v29
  %v82 = vunpack.c.h.b16 %v29
  %v83 = vunpack.c.l.b16 %v30
  %v84 = vunpack.c.h.b16 %v30
  %v85 = vunpack.c.l.b16 %v31
  %v86 = vunpack.c.h.b16 %v31
  %v87 = vunpack.c.l.b16 %v32
  %v88 = vunpack.c.h.b16 %v32
  %v89 = vunpack.c.l.b16 %v33
  %v90 = vunpack.c.h.b16 %v33
  %v91 = vunpack.c.l.b16 %v34
  %v92 = vunpack.c.h.b16 %v34
  %v93 = vunpack.c.l.b16 %v35
  %v94 = vunpack.c.h.b16 %v35
  %v95 = vunpack.c.l.b16 %v36
  %v96 = vunpack.c.h.b16 %v36
  %v97 = vpack.c.b16 %v65, %v61
  %v98 = vpack.c.b16 %v66, %v62
  %v99 = vpack.c.b16 %v67, %v63
  %v100 = vpack.c.b16 %v68, %v64
  %v101 = vpack.c.b16 %v73, %v69
  %v102 = vpack.c.b16 %v74, %v70
  %v103 = vpack.c.b16 %v75, %v71
  %v104 = vpack.c.b16 %v76, %v72
  %v105 = vpack.c.b16 %v81, %v77
  %v106 = vpack.c.b16 %v82, %v78
  %v107 = vpack.c.b16 %v83, %v79
  %v108 = vpack.c.b16 %v84, %v80
  %v109 = vpack.c.b16 %v89, %v85
  %v110 = vpack.c.b16 %v90, %v86
  %v111 = vpack.c.b16 %v91, %v87
  %v112 = vpack.c.b16 %v92, %v88
  %v113 = vpack.c.b16 %v93, %v93
  %v114 = vpack.c.b16 %v94, %v94
  %v115 = vpack.c.b16 %v95, %v95
  %v116 = vpack.c.b16 %v96, %v96
  %vm133 = vcmask 588800
  %v135 = vsel %vm133, %v18, 0
  %vm137 = vcmask 1043456
  %v139 = vsel %vm137, %v113, 0
  %v142 = vsel %vm137, %v114, 0
  %v145 = vsel %vm137, %v115, 0
  %v148 = vsel %vm137, %v116, 0
  %150 = vmatprep.subr.bf16.mxu0 %v98
  %151 = vmatpush1.bf16.msra.mxu0 %v97
  %152 = vmatprep.subr.bf16.mxu0 %v102
  %153 = vmatpush1.bf16.msra.mxu0 %v101
  %154 = vmatprep.subr.bf16.mxu0 %v106
  %155 = vmatpush1.bf16.msra.mxu0 %v105
  %156 = vmatprep.subr.bf16.mxu0 %v110
  %157 = vmatpush1.bf16.msra.mxu0 %v109
  %158 = vmatprep.subr.bf16.mxu0 %v142
  %159 = vmatpush1.bf16.msra.mxu0 %v139
  %160 = vmatprep.subr.bf16.mxu0 0
  %161 = vmatpush1.bf16.msra.mxu0 0
  %162 = vmatprep.subr.bf16.mxu0 0
  %163 = vmatpush1.bf16.msra.mxu0 0
  %164 = vmatprep.subr.bf16.mxu0 0
  %165 = vmatpush1.bf16.msra.mxu0 0
  %166 = vmatprep.subr.bf16.mxu0 0
  %167 = vmatpush1.bf16.msra.mxu0 0
  %168 = vmatprep.subr.bf16.mxu0 0
  %169 = vmatpush1.bf16.msra.mxu0 0
  %170 = vmatprep.subr.bf16.mxu0 0
  %171 = vmatpush1.bf16.msra.mxu0 0
  %172 = vmatprep.subr.bf16.mxu0 0
  %173 = vmatpush1.bf16.msra.mxu0 0
  %174 = vmatprep.subr.bf16.mxu0 0
  %175 = vmatpush1.bf16.msra.mxu0 0
  %176 = vmatprep.subr.bf16.mxu0 0
  %177 = vmatpush1.bf16.msra.mxu0 0
  %178 = vmatprep.subr.bf16.mxu0 0
  %179 = vmatpush1.bf16.msra.mxu0 0
  %180 = vmatprep.subr.bf16.mxu0 0
  %181 = vmatpush1.bf16.msra.mxu0 0
  %182 = vmatprep.mubr.bf16.mxu0 0
  %183 = vmatmul.mubr.bf16.gmra.mrb[0].mxu0 %v135
  %v184 = vpop.f32.mrb[0].mxu0
  %v185 = vadd.f32 %v41, %v184
  %v186 = vpop.f32.mrb[0].mxu0
  %v187 = vadd.f32 %v41, %v186
  %v188 = vpop.f32.mrb[0].mxu0
  %v189 = vpop.f32.mrb[0].mxu0
  %190 = vdwg.mxu0
  %191 = vmatprep.subr.bf16.mxu0 %v100
  %192 = vmatpush1.bf16.msra.mxu0 %v99
  %193 = vmatprep.subr.bf16.mxu0 %v104
  %194 = vmatpush1.bf16.msra.mxu0 %v103
  %195 = vmatprep.subr.bf16.mxu0 %v108
  %196 = vmatpush1.bf16.msra.mxu0 %v107
  %197 = vmatprep.subr.bf16.mxu0 %v112
  %198 = vmatpush1.bf16.msra.mxu0 %v111
  %199 = vmatprep.subr.bf16.mxu0 %v148
  %200 = vmatpush1.bf16.msra.mxu0 %v145
  %201 = vmatprep.subr.bf16.mxu0 0
  %202 = vmatpush1.bf16.msra.mxu0 0
  %203 = vmatprep.subr.bf16.mxu0 0
  %204 = vmatpush1.bf16.msra.mxu0 0
  %205 = vmatprep.subr.bf16.mxu0 0
  %206 = vmatpush1.bf16.msra.mxu0 0
  %207 = vmatprep.subr.bf16.mxu0 0
  %208 = vmatpush1.bf16.msra.mxu0 0
  %209 = vmatprep.subr.bf16.mxu0 0
  %210 = vmatpush1.bf16.msra.mxu0 0
  %211 = vmatprep.subr.bf16.mxu0 0
  %212 = vmatpush1.bf16.msra.mxu0 0
  %213 = vmatprep.subr.bf16.mxu0 0
  %214 = vmatpush1.bf16.msra.mxu0 0
  %215 = vmatprep.subr.bf16.mxu0 0
  %216 = vmatpush1.bf16.msra.mxu0 0
  %217 = vmatprep.subr.bf16.mxu0 0
  %218 = vmatpush1.bf16.msra.mxu0 0
  %219 = vmatprep.subr.bf16.mxu0 0
  %220 = vmatpush1.bf16.msra.mxu0 0
  %221 = vmatprep.subr.bf16.mxu0 0
  %222 = vmatpush1.bf16.msra.mxu0 0
  %223 = vmatprep.mubr.bf16.mxu0 0
  %224 = vmatmul.mubr.bf16.gmra.mrb[0].mxu0 %v135
  %v225 = vpop.f32.mrb[0].mxu0
  %v226 = vadd.f32 %v41, %v225
  %v227 = vpop.f32.mrb[0].mxu0
  %v228 = vadd.f32 %v41, %v227
  %v229 = vpop.f32.mrb[0].mxu0
  %v230 = vpop.f32.mrb[0].mxu0
  %231 = vdwg.mxu0
  %p232 = scmp.eq.s32.totalorder 0, 0
  // Predicated region
  $region14: #{generator_forward.32} parent=0 // pred_check
    %p233 = pneg %p232
  $region15: #{generator_forward.32} parent=0 // pred_check_branch
    %235 = sbr.rel (%p233) target = $region17
  $region16: #{generator_forward.32} parent=0 // pred_region
    %vm236 = vcmask 7168
    %237 = vst.msk [vmem:[#allocation2] sm:$0xff] %vm236, 0.0
    %238 = vst.msk [vmem:[#allocation3] sm:$0xff] %vm236, 0.0
  $region17: #{generator_forward.32} parent=0 // pred_fallthru
    _
  %v239 = vld [vmem:[#allocation2] sm:$0xff]
  %v240 = vadd.f32 %v185, %v187
  %v241 = vadd.f32 %v240, %v226
  %v242 = vadd.f32 %v241, %v228
  %243 = vadd.xlane.f32.xlu0 %v242
  %v244 = vpop.xlane.xlu0 %243
  %v245 = vadd.f32 %v239, %v244
  %vm246 = vcmask 7168
  %247 = vst.msk [vmem:[#allocation2] sm:$0xff] %vm246, %v245
  %v248 = vld [vmem:[#allocation3] sm:$0xff]
  %v249 = vmul.f32 %v185, %v185
  %v250 = vmul.f32 %v187, %v187
  %v251 = vmul.f32 %v226, %v226
  %v252 = vmul.f32 %v228, %v228
  %v253 = vadd.f32 %v249, %v250
  %v254 = vadd.f32 %v253, %v251
  %v255 = vadd.f32 %v254, %v252
  %256 = vadd.xlane.f32.xlu0 %v255
  %v257 = vpop.xlane.xlu0 %256
  %v258 = vadd.f32 %v248, %v257
  %259 = vst.msk [vmem:[#allocation3] sm:$0xff] %vm246, %v258
  // Predicated region
  $region18: #{generator_forward.32} parent=0 // pred_check
    %p260 = pneg %p232
  $region19: #{generator_forward.32} parent=0 // pred_check_branch
    %262 = sbr.rel (%p260) target = $region21
  $region20: #{generator_forward.32} parent=0 // pred_region
    %v263 = vld [vmem:[#allocation2] sm:$0xff]
    %264 = vst.msk [vmem:[%s4] sm:$0xff] %vm246, %v263
    %v265 = vld [vmem:[#allocation3] sm:$0xff]
    %266 = vst.msk [vmem:[%s5] sm:$0xff] %vm246, %v265
  $region21: #{generator_forward.32} parent=0 // pred_fallthru
    _
  %v267 = vpack.c.bf16 %v185, %v185
  %v268 = vpack.c.bf16 %v187, %v187
  %v269 = vpack.c.bf16 %v226, %v226
  %v270 = vpack.c.bf16 %v228, %v228
  %v275 = vunpack.c.l.b16 %v267
  %v276 = vunpack.c.l.b16 %v268
  %v277 = vunpack.c.l.b16 %v269
  %v278 = vunpack.c.l.b16 %v270
  %v279 = vpack.c.b16 %v276, %v275
  %v280 = vpack.c.b16 %v278, %v277
  %283 = vst [vmem:[%s3] sm:$0xff] %v279
  %284 = vst [vmem:[%s3 + $0x8] sm:$0xff] %v280
  // Predicated region
  $region22: #{generator_forward.32} parent=0 // pred_check
    _
  $region23: #{generator_forward.32} parent=0 // pred_check_branch
    %286 = sbr.rel (0) target = $region25
  $region24: #{generator_forward.32} parent=0 // pred_region
    _
  $region25: #{generator_forward.32} parent=0 // pred_fallthru
    _
  // Predicated region
  $region26: #{generator_forward.32} parent=0 // pred_check
    _
  $region27: #{generator_forward.32} parent=0 // pred_check_branch
    %288 = sbr.rel (0) target = $region29
  $region28: #{generator_forward.32} parent=0 // pred_region
    _
  $region29: #{generator_forward.32} parent=0 // pred_fallthru
    _
  // Predicated region
  $region30: #{generator_forward.32} parent=0 // pred_check
    _
  $region31: #{generator_forward.32} parent=0 // pred_check_branch
    %290 = sbr.rel (0) target = $region33
  $region32: #{generator_forward.32} parent=0 // pred_region
    _
  $region33: #{generator_forward.32} parent=0 // pred_fallthru
    _
  // Predicated region
  $region34: #{generator_forward.32} parent=0 // pred_check
    _
  $region35: #{generator_forward.32} parent=0 // pred_check_branch
    %292 = sbr.rel (0) target = $region37
  $region36: #{generator_forward.32} parent=0 // pred_region
    _
  $region37: #{generator_forward.32} parent=0 // pred_fallthru
    _
  // Predicated region
  $region38: #{generator_forward.32} parent=0 // pred_check
    _
  $region39: #{generator_forward.32} parent=0 // pred_check_branch
    %294 = sbr.rel (0) target = $region41
  $region40: #{generator_forward.32} parent=0 // pred_region
    _
  $region41: #{generator_forward.32} parent=0 // pred_fallthru
    _
  // Predicated region
  $region42: #{generator_forward.32} parent=0 // pred_check
    _
  $region43: #{generator_forward.32} parent=0 // pred_check_branch
    %296 = sbr.rel (0) target = $region45
  $region44: #{generator_forward.32} parent=0 // pred_region
    _
  $region45: #{generator_forward.32} parent=0 // pred_fallthru
    _

// kernel: generator_forward.33
$region0: #{generator_forward.33}
  #allocation0 [shape = 'u32[]', space=smem, size = 0x4, offset = 0x4, fixed_abs, tag = 'smem constant byte address 0x4 - core index']
  #allocation1 [shape = 'u32[144,128]{1,0:T(1,128)}', space=vmem, size = 0x12000, scoped, tag = 'internal scratch']
  %s0 = inlined_call_operand.vmem [shape: bf16[392,512], index: 0, kind: input, shape index: {}]
  %s1 = inlined_call_operand.vmem [shape: bf16[3,392], index: 1, kind: input, shape index: {}]
  %s2 = inlined_call_operand.vmem [shape: f32[3,1], index: 2, kind: input, shape index: {}]
  %s3 = inlined_call_operand.vmem [shape: f32[3,512], index: 3, kind: output, shape index: {}]
  %s4 = sld [smem:[#allocation0]]
  $region22: #{generator_forward.33} parent=0
    _
  %s6 = ssub.s32 1, %s4
  %s7 = scalar_select 0, %s6, %s4
  // Predicated region
  $region2: #{generator_forward.33} parent=0 // pred_check
    _
  $region3: #{generator_forward.33} parent=0 // pred_check_branch
    %9 = sbr.rel (0) target = $region5
  $region4: #{generator_forward.33} parent=0 // pred_region
    _
  $region5: #{generator_forward.33} parent=0 // pred_fallthru
    _
  // Predicated region
  $region6: #{generator_forward.33} parent=0 // pred_check
    _
  $region7: #{generator_forward.33} parent=0 // pred_check_branch
    %11 = sbr.rel (0) target = $region9
  $region8: #{generator_forward.33} parent=0 // pred_region
    _
  $region9: #{generator_forward.33} parent=0 // pred_fallthru
    _
  // Predicated region
  $region10: #{generator_forward.33} parent=0 // pred_check
    _
  $region11: #{generator_forward.33} parent=0 // pred_check_branch
    %13 = sbr.rel (0) target = $region13
  $region12: #{generator_forward.33} parent=0 // pred_region
    _
  $region13: #{generator_forward.33} parent=0 // pred_fallthru
    _
  %v15 = vld [vmem:[%s1] sm:$0xff]
  %v16 = vld [vmem:[%s0] sm:$0xff]
  %v17 = vld [vmem:[%s0 + $0x8] sm:$0xff]
  %v18 = vld [vmem:[%s0 + $0x10] sm:$0xff]
  %v19 = vld [vmem:[%s0 + $0x18] sm:$0xff]
  %v20 = vld [vmem:[%s0 + $0x20] sm:$0xff]
  %v21 = vld [vmem:[%s0 + $0x28] sm:$0xff]
  %v22 = vld [vmem:[%s0 + $0x30] sm:$0xff]
  %v23 = vld [vmem:[%s0 + $0x38] sm:$0xff]
  %v24 = vld [vmem:[%s0 + $0x40] sm:$0xff]
  %v25 = vld [vmem:[%s0 + $0x48] sm:$0xff]
  %v26 = vld [vmem:[%s0 + $0x50] sm:$0xff]
  %v27 = vld [vmem:[%s0 + $0x58] sm:$0xff]
  %v28 = vld [vmem:[%s0 + $0x60] sm:$0xff]
  %v29 = vld [vmem:[%s0 + $0x68] sm:$0xff]
  %v30 = vld [vmem:[%s0 + $0x70] sm:$0xff]
  %v31 = vld [vmem:[%s0 + $0x78] sm:$0xff]
  %v32 = vld [vmem:[%s0 + $0x80] sm:$0xff]
  %v33 = vld [vmem:[%s0 + $0x88] sm:$0xff]
  %v34 = vld [vmem:[%s0 + $0x90] sm:$0xff]
  %v35 = vld [vmem:[%s0 + $0x98] sm:$0xff]
  %v36 = vld [vmem:[%s0 + $0xa0] sm:$0xff]
  %v37 = vld [vmem:[%s0 + $0xa8] sm:$0xff]
  %v38 = vld [vmem:[%s0 + $0xb0] sm:$0xff]
  %v39 = vld [vmem:[%s0 + $0xb8] sm:$0xff]
  %v40 = vld [vmem:[%s0 + $0xc0] sm:$0xff]
  %v41 = vld [vmem:[%s0 + $0xc8] sm:$0xff]
  %v42 = vld [vmem:[%s0 + $0xd0] sm:$0xff]
  %v43 = vld [vmem:[%s0 + $0xd8] sm:$0xff]
  %v44 = vld [vmem:[%s0 + $0xe0] sm:$0xff]
  %v45 = vld [vmem:[%s0 + $0xe8] sm:$0xff]
  %v46 = vld [vmem:[%s0 + $0xf0] sm:$0xff]
  %v47 = vld [vmem:[%s0 + $0xf8] sm:$0xff]
  %v48 = vld [vmem:[%s0 + $0x100] sm:$0xff]
  %v49 = vld [vmem:[%s0 + $0x108] sm:$0xff]
  %v50 = vld [vmem:[%s0 + $0x110] sm:$0xff]
  %v51 = vld [vmem:[%s0 + $0x118] sm:$0xff]
  %v52 = vld [vmem:[%s0 + $0x120] sm:$0xff]
  %v53 = vld [vmem:[%s0 + $0x128] sm:$0xff]
  %v54 = vld [vmem:[%s0 + $0x130] sm:$0xff]
  %v55 = vld [vmem:[%s0 + $0x138] sm:$0xff]
  %v56 = vld [vmem:[%s0 + $0x140] sm:$0xff]
  %v57 = vld [vmem:[%s0 + $0x148] sm:$0xff]
  %v58 = vld [vmem:[%s0 + $0x150] sm:$0xff]
  %v59 = vld [vmem:[%s0 + $0x158] sm:$0xff]
  %v60 = vld [vmem:[%s0 + $0x160] sm:$0xff]
  %v61 = vld [vmem:[%s0 + $0x168] sm:$0xff]
  %v62 = vld [vmem:[%s0 + $0x170] sm:$0xff]
  %v63 = vld [vmem:[%s0 + $0x178] sm:$0xff]
  %v64 = vld [vmem:[%s0 + $0x180] sm:$0xff]
  %v65 = vld [vmem:[%s0 + $0x188] sm:$0xff]
  %v66 = vld [vmem:[%s0 + $0x190] sm:$0xff]
  %v67 = vld [vmem:[%s0 + $0x198] sm:$0xff]
  %v68 = vld [vmem:[%s0 + $0x1a0] sm:$0xff]
  %v69 = vld [vmem:[%s0 + $0x1a8] sm:$0xff]
  %v70 = vld [vmem:[%s0 + $0x1b0] sm:$0xff]
  %v71 = vld [vmem:[%s0 + $0x1b8] sm:$0xff]
  %v72 = vld [vmem:[%s0 + $0x1c0] sm:$0xff]
  %v73 = vld [vmem:[%s0 + $0x1c8] sm:$0xff]
  %v74 = vld [vmem:[%s0 + $0x1d0] sm:$0xff]
  %v75 = vld [vmem:[%s0 + $0x1d8] sm:$0xff]
  %v76 = vld [vmem:[%s0 + $0x1e0] sm:$0xff]
  %v77 = vld [vmem:[%s0 + $0x1e8] sm:$0xff]
  %v78 = vld [vmem:[%s0 + $0x1f0] sm:$0xff]
  %v79 = vld [vmem:[%s0 + $0x1f8] sm:$0xff]
  %v80 = vld [vmem:[%s0 + $0x200] sm:$0xff]
  %v81 = vld [vmem:[%s0 + $0x208] sm:$0xff]
  %v82 = vld [vmem:[%s0 + $0x210] sm:$0xff]
  %v83 = vld [vmem:[%s0 + $0x218] sm:$0xff]
  %v84 = vld [vmem:[%s0 + $0x220] sm:$0xff]
  %v85 = vld [vmem:[%s0 + $0x228] sm:$0xff]
  %v86 = vld [vmem:[%s0 + $0x230] sm:$0xff]
  %v87 = vld [vmem:[%s0 + $0x238] sm:$0xff]
  %v88 = vld [vmem:[%s0 + $0x240] sm:$0xff]
  %v89 = vld [vmem:[%s0 + $0x248] sm:$0xff]
  %v90 = vld [vmem:[%s0 + $0x250] sm:$0xff]
  %v91 = vld [vmem:[%s0 + $0x258] sm:$0xff]
  %v92 = vld [vmem:[%s0 + $0x260] sm:$0xff]
  %v93 = vld [vmem:[%s0 + $0x268] sm:$0xff]
  %v94 = vld [vmem:[%s0 + $0x270] sm:$0xff]
  %v95 = vld [vmem:[%s0 + $0x278] sm:$0xff]
  %v96 = vld [vmem:[%s0 + $0x280] sm:$0xff]
  %v97 = vld [vmem:[%s0 + $0x288] sm:$0xff]
  %v98 = vld [vmem:[%s0 + $0x290] sm:$0xff]
  %v99 = vld [vmem:[%s0 + $0x298] sm:$0xff]
  %v100 = vld [vmem:[%s0 + $0x2a0] sm:$0xff]
  %v101 = vld [vmem:[%s0 + $0x2a8] sm:$0xff]
  %v102 = vld [vmem:[%s0 + $0x2b0] sm:$0xff]
  %v103 = vld [vmem:[%s0 + $0x2b8] sm:$0xff]
  %v104 = vld [vmem:[%s0 + $0x2c0] sm:$0xff]
  %v105 = vld [vmem:[%s0 + $0x2c8] sm:$0xff]
  %v106 = vld [vmem:[%s0 + $0x2d0] sm:$0xff]
  %v107 = vld [vmem:[%s0 + $0x2d8] sm:$0xff]
  %v108 = vld [vmem:[%s0 + $0x2e0] sm:$0xff]
  %v109 = vld [vmem:[%s0 + $0x2e8] sm:$0xff]
  %v110 = vld [vmem:[%s0 + $0x2f0] sm:$0xff]
  %v111 = vld [vmem:[%s0 + $0x2f8] sm:$0xff]
  %v112 = vld [vmem:[%s0 + $0x300] sm:$0xff]
  %v113 = vld [vmem:[%s0 + $0x308] sm:$0xff]
  %v114 = vld [vmem:[%s2] sm:$0x7]
  %116 = vset.pattern.permute.xlu0 0
  %117 = vperm.xlu0 %116, %v114
  %v118 = vpop.permute.xlu0 %117
  %v121 = vcombine.high %v15, %v15
  %v123 = vunpack.c.l.s4 1983009808
  %v124 = vunpack.c.0.s8 %v123
  %v125 = vlaneseq
  %v126 = vshrl.u32 %v125, 7
  %v127 = vsub.s32 %v124, %v126
  %v128 = vrot.slane %v15, %v127
  %v130 = vunpack.c.l.s4 1983009808
  %v131 = vunpack.c.0.s8 %v130
  %v132 = vlaneseq
  %v133 = vshrl.u32 %v132, 7
  %v134 = vsub.s32 %v131, %v133
  %v135 = vrot.slane %v121, %v134
  %v136 = vcombine.high %v128, %v128
  %v137 = vcombine.high %v135, %v135
  %v239 = vunpack.c.l.b16 %v16
  %v240 = vunpack.c.h.b16 %v16
  %v241 = vunpack.c.l.b16 %v17
  %v242 = vunpack.c.h.b16 %v17
  %v243 = vunpack.c.l.b16 %v18
  %v244 = vunpack.c.h.b16 %v18
  %v245 = vunpack.c.l.b16 %v19
  %v246 = vunpack.c.h.b16 %v19
  %v247 = vunpack.c.l.b16 %v20
  %v248 = vunpack.c.h.b16 %v20
  %v249 = vunpack.c.l.b16 %v21
  %v250 = vunpack.c.h.b16 %v21
  %v251 = vunpack.c.l.b16 %v22
  %v252 = vunpack.c.h.b16 %v22
  %v253 = vunpack.c.l.b16 %v23
  %v254 = vunpack.c.h.b16 %v23
  %v255 = vunpack.c.l.b16 %v24
  %v256 = vunpack.c.h.b16 %v24
  %v257 = vunpack.c.l.b16 %v25
  %v258 = vunpack.c.h.b16 %v25
  %v259 = vunpack.c.l.b16 %v26
  %v260 = vunpack.c.h.b16 %v26
  %v261 = vunpack.c.l.b16 %v27
  %v262 = vunpack.c.h.b16 %v27
  %v263 = vunpack.c.l.b16 %v28
  %v264 = vunpack.c.h.b16 %v28
  %v265 = vunpack.c.l.b16 %v29
  %v266 = vunpack.c.h.b16 %v29
  %v267 = vunpack.c.l.b16 %v30
  %v268 = vunpack.c.h.b16 %v30
  %v269 = vunpack.c.l.b16 %v31
  %v270 = vunpack.c.h.b16 %v31
  %v271 = vunpack.c.l.b16 %v32
  %v272 = vunpack.c.h.b16 %v32
  %v273 = vunpack.c.l.b16 %v33
  %v274 = vunpack.c.h.b16 %v33
  %v275 = vunpack.c.l.b16 %v34
  %v276 = vunpack.c.h.b16 %v34
  %v277 = vunpack.c.l.b16 %v35
  %v278 = vunpack.c.h.b16 %v35
  %v279 = vunpack.c.l.b16 %v36
  %v280 = vunpack.c.h.b16 %v36
  %v281 = vunpack.c.l.b16 %v37
  %v282 = vunpack.c.h.b16 %v37
  %v283 = vunpack.c.l.b16 %v38
  %v284 = vunpack.c.h.b16 %v38
  %v285 = vunpack.c.l.b16 %v39
  %v286 = vunpack.c.h.b16 %v39
  %v287 = vunpack.c.l.b16 %v40
  %v288 = vunpack.c.h.b16 %v40
  %v289 = vunpack.c.l.b16 %v41
  %v290 = vunpack.c.h.b16 %v41
  %v291 = vunpack.c.l.b16 %v42
  %v292 = vunpack.c.h.b16 %v42
  %v293 = vunpack.c.l.b16 %v43
  %v294 = vunpack.c.h.b16 %v43
  %v295 = vunpack.c.l.b16 %v44
  %v296 = vunpack.c.h.b16 %v44
  %v297 = vunpack.c.l.b16 %v45
  %v298 = vunpack.c.h.b16 %v45
  %v299 = vunpack.c.l.b16 %v46
  %v300 = vunpack.c.h.b16 %v46
  %v301 = vunpack.c.l.b16 %v47
  %v302 = vunpack.c.h.b16 %v47
  %v303 = vunpack.c.l.b16 %v48
  %v304 = vunpack.c.h.b16 %v48
  %v305 = vunpack.c.l.b16 %v49
  %v306 = vunpack.c.h.b16 %v49
  %v307 = vunpack.c.l.b16 %v50
  %v308 = vunpack.c.h.b16 %v50
  %v309 = vunpack.c.l.b16 %v51
  %v310 = vunpack.c.h.b16 %v51
  %v311 = vunpack.c.l.b16 %v52
  %v312 = vunpack.c.h.b16 %v52
  %v313 = vunpack.c.l.b16 %v53
  %v314 = vunpack.c.h.b16 %v53
  %v315 = vunpack.c.l.b16 %v54
  %v316 = vunpack.c.h.b16 %v54
  %v317 = vunpack.c.l.b16 %v55
  %v318 = vunpack.c.h.b16 %v55
  %v319 = vunpack.c.l.b16 %v56
  %v320 = vunpack.c.h.b16 %v56
  %v321 = vunpack.c.l.b16 %v57
  %v322 = vunpack.c.h.b16 %v57
  %v323 = vunpack.c.l.b16 %v58
  %v324 = vunpack.c.h.b16 %v58
  %v325 = vunpack.c.l.b16 %v59
  %v326 = vunpack.c.h.b16 %v59
  %v327 = vunpack.c.l.b16 %v60
  %v328 = vunpack.c.h.b16 %v60
  %v329 = vunpack.c.l.b16 %v61
  %v330 = vunpack.c.h.b16 %v61
  %v331 = vunpack.c.l.b16 %v62
  %v332 = vunpack.c.h.b16 %v62
  %v333 = vunpack.c.l.b16 %v63
  %v334 = vunpack.c.h.b16 %v63
  %v335 = vunpack.c.l.b16 %v64
  %v336 = vunpack.c.h.b16 %v64
  %v337 = vunpack.c.l.b16 %v65
  %v338 = vunpack.c.h.b16 %v65
  %v339 = vunpack.c.l.b16 %v66
  %v340 = vunpack.c.h.b16 %v66
  %v341 = vunpack.c.l.b16 %v67
  %v342 = vunpack.c.h.b16 %v67
  %v343 = vunpack.c.l.b16 %v68
  %v344 = vunpack.c.h.b16 %v68
  %v345 = vunpack.c.l.b16 %v69
  %v346 = vunpack.c.h.b16 %v69
  %v347 = vunpack.c.l.b16 %v70
  %v348 = vunpack.c.h.b16 %v70
  %v349 = vunpack.c.l.b16 %v71
  %v350 = vunpack.c.h.b16 %v71
  %v351 = vunpack.c.l.b16 %v72
  %v352 = vunpack.c.h.b16 %v72
  %v353 = vunpack.c.l.b16 %v73
  %v354 = vunpack.c.h.b16 %v73
  %v355 = vunpack.c.l.b16 %v74
  %v356 = vunpack.c.h.b16 %v74
  %v357 = vunpack.c.l.b16 %v75
  %v358 = vunpack.c.h.b16 %v75
  %v359 = vunpack.c.l.b16 %v76
  %v360 = vunpack.c.h.b16 %v76
  %v361 = vunpack.c.l.b16 %v77
  %v362 = vunpack.c.h.b16 %v77
  %v363 = vunpack.c.l.b16 %v78
  %v364 = vunpack.c.h.b16 %v78
  %v365 = vunpack.c.l.b16 %v79
  %v366 = vunpack.c.h.b16 %v79
  %v367 = vunpack.c.l.b16 %v80
  %v368 = vunpack.c.h.b16 %v80
  %v369 = vunpack.c.l.b16 %v81
  %v370 = vunpack.c.h.b16 %v81
  %v371 = vunpack.c.l.b16 %v82
  %v372 = vunpack.c.h.b16 %v82
  %v373 = vunpack.c.l.b16 %v83
  %v374 = vunpack.c.h.b16 %v83
  %v375 = vunpack.c.l.b16 %v84
  %v376 = vunpack.c.h.b16 %v84
  %v377 = vunpack.c.l.b16 %v85
  %v378 = vunpack.c.h.b16 %v85
  %v379 = vunpack.c.l.b16 %v86
  %v380 = vunpack.c.h.b16 %v86
  %v381 = vunpack.c.l.b16 %v87
  %v382 = vunpack.c.h.b16 %v87
  %v383 = vunpack.c.l.b16 %v88
  %v384 = vunpack.c.h.b16 %v88
  %v385 = vunpack.c.l.b16 %v89
  %v386 = vunpack.c.h.b16 %v89
  %v387 = vunpack.c.l.b16 %v90
  %v388 = vunpack.c.h.b16 %v90
  %v389 = vunpack.c.l.b16 %v91
  %v390 = vunpack.c.h.b16 %v91
  %v391 = vunpack.c.l.b16 %v92
  %v392 = vunpack.c.h.b16 %v92
  %v393 = vunpack.c.l.b16 %v93
  %v394 = vunpack.c.h.b16 %v93
  %v395 = vunpack.c.l.b16 %v94
  %v396 = vunpack.c.h.b16 %v94
  %v397 = vunpack.c.l.b16 %v95
  %v398 = vunpack.c.h.b16 %v95
  %v399 = vunpack.c.l.b16 %v96
  %v400 = vunpack.c.h.b16 %v96
  %v401 = vunpack.c.l.b16 %v97
  %v402 = vunpack.c.h.b16 %v97
  %v403 = vunpack.c.l.b16 %v98
  %v404 = vunpack.c.h.b16 %v98
  %v405 = vunpack.c.l.b16 %v99
  %v406 = vunpack.c.h.b16 %v99
  %v407 = vunpack.c.l.b16 %v100
  %v408 = vunpack.c.h.b16 %v100
  %v409 = vunpack.c.l.b16 %v101
  %v410 = vunpack.c.h.b16 %v101
  %v411 = vunpack.c.l.b16 %v102
  %v412 = vunpack.c.h.b16 %v102
  %v413 = vunpack.c.l.b16 %v103
  %v414 = vunpack.c.h.b16 %v103
  %v415 = vunpack.c.l.b16 %v104
  %v416 = vunpack.c.h.b16 %v104
  %v417 = vunpack.c.l.b16 %v105
  %v418 = vunpack.c.h.b16 %v105
  %v419 = vunpack.c.l.b16 %v106
  %v420 = vunpack.c.h.b16 %v106
  %v421 = vunpack.c.l.b16 %v107
  %v422 = vunpack.c.h.b16 %v107
  %v423 = vunpack.c.l.b16 %v108
  %v424 = vunpack.c.h.b16 %v108
  %v425 = vunpack.c.l.b16 %v109
  %v426 = vunpack.c.h.b16 %v109
  %v427 = vunpack.c.l.b16 %v110
  %v428 = vunpack.c.h.b16 %v110
  %v429 = vunpack.c.l.b16 %v111
  %v430 = vunpack.c.h.b16 %v111
  %v431 = vunpack.c.l.b16 %v112
  %v432 = vunpack.c.h.b16 %v112
  %v433 = vunpack.c.l.b16 %v113
  %v434 = vunpack.c.h.b16 %v113
  %v435 = vpack.c.b16 %v243, %v239
  %v436 = vpack.c.b16 %v244, %v240
  %v437 = vpack.c.b16 %v245, %v241
  %v438 = vpack.c.b16 %v246, %v242
  %v439 = vpack.c.b16 %v251, %v247
  %v440 = vpack.c.b16 %v252, %v248
  %v441 = vpack.c.b16 %v253, %v249
  %v442 = vpack.c.b16 %v254, %v250
  %v443 = vpack.c.b16 %v259, %v255
  %v444 = vpack.c.b16 %v260, %v256
  %v445 = vpack.c.b16 %v261, %v257
  %v446 = vpack.c.b16 %v262, %v258
  %v447 = vpack.c.b16 %v267, %v263
  %v448 = vpack.c.b16 %v268, %v264
  %v449 = vpack.c.b16 %v269, %v265
  %v450 = vpack.c.b16 %v270, %v266
  %v451 = vpack.c.b16 %v275, %v271
  %v452 = vpack.c.b16 %v276, %v272
  %v453 = vpack.c.b16 %v277, %v273
  %v454 = vpack.c.b16 %v278, %v274
  %v455 = vpack.c.b16 %v283, %v279
  %v456 = vpack.c.b16 %v284, %v280
  %v457 = vpack.c.b16 %v285, %v281
  %v458 = vpack.c.b16 %v286, %v282
  %v459 = vpack.c.b16 %v291, %v287
  %v460 = vpack.c.b16 %v292, %v288
  %v461 = vpack.c.b16 %v293, %v289
  %v462 = vpack.c.b16 %v294, %v290
  %v463 = vpack.c.b16 %v299, %v295
  %v464 = vpack.c.b16 %v300, %v296
  %v465 = vpack.c.b16 %v301, %v297
  %v466 = vpack.c.b16 %v302, %v298
  %v467 = vpack.c.b16 %v307, %v303
  %v468 = vpack.c.b16 %v308, %v304
  %v469 = vpack.c.b16 %v309, %v305
  %v470 = vpack.c.b16 %v310, %v306
  %v471 = vpack.c.b16 %v315, %v311
  %v472 = vpack.c.b16 %v316, %v312
  %v473 = vpack.c.b16 %v317, %v313
  %v474 = vpack.c.b16 %v318, %v314
  %v475 = vpack.c.b16 %v323, %v319
  %v476 = vpack.c.b16 %v324, %v320
  %v477 = vpack.c.b16 %v325, %v321
  %v478 = vpack.c.b16 %v326, %v322
  %v479 = vpack.c.b16 %v331, %v327
  %v480 = vpack.c.b16 %v332, %v328
  %v481 = vpack.c.b16 %v333, %v329
  %v482 = vpack.c.b16 %v334, %v330
  %v483 = vpack.c.b16 %v339, %v335
  %v484 = vpack.c.b16 %v340, %v336
  %v485 = vpack.c.b16 %v341, %v337
  %v486 = vpack.c.b16 %v342, %v338
  %v487 = vpack.c.b16 %v347, %v343
  %v488 = vpack.c.b16 %v348, %v344
  %v489 = vpack.c.b16 %v349, %v345
  %v490 = vpack.c.b16 %v350, %v346
  %v491 = vpack.c.b16 %v355, %v351
  %v492 = vpack.c.b16 %v356, %v352
  %v493 = vpack.c.b16 %v357, %v353
  %v494 = vpack.c.b16 %v358, %v354
  %v495 = vpack.c.b16 %v363, %v359
  %v496 = vpack.c.b16 %v364, %v360
  %v497 = vpack.c.b16 %v365, %v361
  %v498 = vpack.c.b16 %v366, %v362
  %v499 = vpack.c.b16 %v371, %v367
  %v500 = vpack.c.b16 %v372, %v368
  %v501 = vpack.c.b16 %v373, %v369
  %v502 = vpack.c.b16 %v374, %v370
  %v503 = vpack.c.b16 %v379, %v375
  %v504 = vpack.c.b16 %v380, %v376
  %v505 = vpack.c.b16 %v381, %v377
  %v506 = vpack.c.b16 %v382, %v378
  %v507 = vpack.c.b16 %v387, %v383
  %v508 = vpack.c.b16 %v388, %v384
  %v509 = vpack.c.b16 %v389, %v385
  %v510 = vpack.c.b16 %v390, %v386
  %v511 = vpack.c.b16 %v395, %v391
  %v512 = vpack.c.b16 %v396, %v392
  %v513 = vpack.c.b16 %v397, %v393
  %v514 = vpack.c.b16 %v398, %v394
  %v515 = vpack.c.b16 %v403, %v399
  %v516 = vpack.c.b16 %v404, %v400
  %v517 = vpack.c.b16 %v405, %v401
  %v518 = vpack.c.b16 %v406, %v402
  %v519 = vpack.c.b16 %v411, %v407
  %v520 = vpack.c.b16 %v412, %v408
  %v521 = vpack.c.b16 %v413, %v409
  %v522 = vpack.c.b16 %v414, %v410
  %v523 = vpack.c.b16 %v419, %v415
  %v524 = vpack.c.b16 %v420, %v416
  %v525 = vpack.c.b16 %v421, %v417
  %v526 = vpack.c.b16 %v422, %v418
  %v527 = vpack.c.b16 %v427, %v423
  %v528 = vpack.c.b16 %v428, %v424
  %v529 = vpack.c.b16 %v429, %v425
  %v530 = vpack.c.b16 %v430, %v426
  %v531 = vpack.c.b16 %v431, %v431
  %v532 = vpack.c.b16 %v432, %v432
  %v533 = vpack.c.b16 %v433, %v433
  %v534 = vpack.c.b16 %v434, %v434
  %vm631 = vcmask 64512
  %v633 = vsel %vm631, %v137, 0
  %vm635 = vcmask 1043456
  %v637 = vsel %vm635, %v531, 0
  %v640 = vsel %vm635, %v532, 0
  %v643 = vsel %vm635, %v533, 0
  %v646 = vsel %vm635, %v534, 0
  %648 = vmatprep.subr.bf16.mxu0 %v436
  %649 = vmatpush1.bf16.msra.mxu0 %v435
  %650 = vmatprep.subr.bf16.mxu0 %v440
  %651 = vmatpush1.bf16.msra.mxu0 %v439
  %652 = vmatprep.subr.bf16.mxu0 %v444
  %653 = vmatpush1.bf16.msra.mxu0 %v443
  %654 = vmatprep.subr.bf16.mxu0 %v448
  %655 = vmatpush1.bf16.msra.mxu0 %v447
  %656 = vmatprep.subr.bf16.mxu0 %v452
  %657 = vmatpush1.bf16.msra.mxu0 %v451
  %658 = vmatprep.subr.bf16.mxu0 %v456
  %659 = vmatpush1.bf16.msra.mxu0 %v455
  %660 = vmatprep.subr.bf16.mxu0 %v460
  %661 = vmatpush1.bf16.msra.mxu0 %v459
  %662 = vmatprep.subr.bf16.mxu0 %v464
  %663 = vmatpush1.bf16.msra.mxu0 %v463
  %664 = vmatprep.subr.bf16.mxu0 %v468
  %665 = vmatpush1.bf16.msra.mxu0 %v467
  %666 = vmatprep.subr.bf16.mxu0 %v472
  %667 = vmatpush1.bf16.msra.mxu0 %v471
  %668 = vmatprep.subr.bf16.mxu0 %v476
  %669 = vmatpush1.bf16.msra.mxu0 %v475
  %670 = vmatprep.subr.bf16.mxu0 %v480
  %671 = vmatpush1.bf16.msra.mxu0 %v479
  %672 = vmatprep.subr.bf16.mxu0 %v484
  %673 = vmatpush1.bf16.msra.mxu0 %v483
  %674 = vmatprep.subr.bf16.mxu0 %v488
  %675 = vmatpush1.bf16.msra.mxu0 %v487
  %676 = vmatprep.subr.bf16.mxu0 %v492
  %677 = vmatpush1.bf16.msra.mxu0 %v491
  %678 = vmatprep.subr.bf16.mxu0 %v496
  %679 = vmatpush1.bf16.msra.mxu0 %v495
  %680 = vmatprep.mubr.bf16.mxu0 %v136
  %681 = vmatmul.mubr.bf16.gmra.mrb[0].mxu0 %v128
  %v682 = vpop.f32.mrb[0].mxu0
  %v683 = vadd.f32 %v118, %v682
  %v684 = vpop.f32.mrb[0].mxu0
  %v685 = vadd.f32 %v118, %v684
  %v686 = vpop.f32.mrb[0].mxu0
  %v687 = vpop.f32.mrb[0].mxu0
  %688 = vdwg.mxu0
  %689 = vmatprep.subr.bf16.mxu0 %v500
  %690 = vmatpush1.bf16.msra.mxu0 %v499
  %691 = vmatprep.subr.bf16.mxu0 %v504
  %692 = vmatpush1.bf16.msra.mxu0 %v503
  %693 = vmatprep.subr.bf16.mxu0 %v508
  %694 = vmatpush1.bf16.msra.mxu0 %v507
  %695 = vmatprep.subr.bf16.mxu0 %v512
  %696 = vmatpush1.bf16.msra.mxu0 %v511
  %697 = vmatprep.subr.bf16.mxu0 %v516
  %698 = vmatpush1.bf16.msra.mxu0 %v515
  %699 = vmatprep.subr.bf16.mxu0 %v520
  %700 = vmatpush1.bf16.msra.mxu0 %v519
  %701 = vmatprep.subr.bf16.mxu0 %v524
  %702 = vmatpush1.bf16.msra.mxu0 %v523
  %703 = vmatprep.subr.bf16.mxu0 %v528
  %704 = vmatpush1.bf16.msra.mxu0 %v527
  %705 = vmatprep.subr.bf16.mxu0 %v640
  %706 = vmatpush1.bf16.msra.mxu0 %v637
  %707 = vmatprep.subr.bf16.mxu0 0
  %708 = vmatpush1.bf16.msra.mxu0 0
  %709 = vmatprep.subr.bf16.mxu0 0
  %710 = vmatpush1.bf16.msra.mxu0 0
  %711 = vmatprep.subr.bf16.mxu0 0
  %712 = vmatpush1.bf16.msra.mxu0 0
  %713 = vmatprep.subr.bf16.mxu0 0
  %714 = vmatpush1.bf16.msra.mxu0 0
  %715 = vmatprep.subr.bf16.mxu0 0
  %716 = vmatpush1.bf16.msra.mxu0 0
  %717 = vmatprep.subr.bf16.mxu0 0
  %718 = vmatpush1.bf16.msra.mxu0 0
  %719 = vmatprep.subr.bf16.mxu0 0
  %720 = vmatpush1.bf16.msra.mxu0 0
  %721 = vmatprep.mubr.bf16.mxu0 %v633
  %722 = vmatmul.mubr.bf16.gmra.mrb[0].mxu0 %v135
  %v723 = vpop.f32.mrb[0].mxu0
  %v724 = vadd.f32 %v683, %v723
  %v725 = vpop.f32.mrb[0].mxu0
  %v726 = vadd.f32 %v685, %v725
  %v727 = vpop.f32.mrb[0].mxu0
  %v728 = vpop.f32.mrb[0].mxu0
  %729 = vdwg.mxu0
  %730 = vmatprep.subr.bf16.mxu0 %v438
  %731 = vmatpush1.bf16.msra.mxu0 %v437
  %732 = vmatprep.subr.bf16.mxu0 %v442
  %733 = vmatpush1.bf16.msra.mxu0 %v441
  %734 = vmatprep.subr.bf16.mxu0 %v446
  %735 = vmatpush1.bf16.msra.mxu0 %v445
  %736 = vmatprep.subr.bf16.mxu0 %v450
  %737 = vmatpush1.bf16.msra.mxu0 %v449
  %738 = vmatprep.subr.bf16.mxu0 %v454
  %739 = vmatpush1.bf16.msra.mxu0 %v453
  %740 = vmatprep.subr.bf16.mxu0 %v458
  %741 = vmatpush1.bf16.msra.mxu0 %v457
  %742 = vmatprep.subr.bf16.mxu0 %v462
  %743 = vmatpush1.bf16.msra.mxu0 %v461
  %744 = vmatprep.subr.bf16.mxu0 %v466
  %745 = vmatpush1.bf16.msra.mxu0 %v465
  %746 = vmatprep.subr.bf16.mxu0 %v470
  %747 = vmatpush1.bf16.msra.mxu0 %v469
  %748 = vmatprep.subr.bf16.mxu0 %v474
  %749 = vmatpush1.bf16.msra.mxu0 %v473
  %750 = vmatprep.subr.bf16.mxu0 %v478
  %751 = vmatpush1.bf16.msra.mxu0 %v477
  %752 = vmatprep.subr.bf16.mxu0 %v482
  %753 = vmatpush1.bf16.msra.mxu0 %v481
  %754 = vmatprep.subr.bf16.mxu0 %v486
  %755 = vmatpush1.bf16.msra.mxu0 %v485
  %756 = vmatprep.subr.bf16.mxu0 %v490
  %757 = vmatpush1.bf16.msra.mxu0 %v489
  %758 = vmatprep.subr.bf16.mxu0 %v494
  %759 = vmatpush1.bf16.msra.mxu0 %v493
  %760 = vmatprep.subr.bf16.mxu0 %v498
  %761 = vmatpush1.bf16.msra.mxu0 %v497
  %762 = vmatprep.mubr.bf16.mxu0 %v136
  %763 = vmatmul.mubr.bf16.gmra.mrb[0].mxu0 %v128
  %v764 = vpop.f32.mrb[0].mxu0
  %v765 = vadd.f32 %v118, %v764
  %v766 = vpop.f32.mrb[0].mxu0
  %v767 = vadd.f32 %v118, %v766
  %v768 = vpop.f32.mrb[0].mxu0
  %v769 = vpop.f32.mrb[0].mxu0
  %770 = vdwg.mxu0
  %771 = vmatprep.subr.bf16.mxu0 %v502
  %772 = vmatpush1.bf16.msra.mxu0 %v501
  %773 = vmatprep.subr.bf16.mxu0 %v506
  %774 = vmatpush1.bf16.msra.mxu0 %v505
  %775 = vmatprep.subr.bf16.mxu0 %v510
  %776 = vmatpush1.bf16.msra.mxu0 %v509
  %777 = vmatprep.subr.bf16.mxu0 %v514
  %778 = vmatpush1.bf16.msra.mxu0 %v513
  %779 = vmatprep.subr.bf16.mxu0 %v518
  %780 = vmatpush1.bf16.msra.mxu0 %v517
  %781 = vmatprep.subr.bf16.mxu0 %v522
  %782 = vmatpush1.bf16.msra.mxu0 %v521
  %783 = vmatprep.subr.bf16.mxu0 %v526
  %784 = vmatpush1.bf16.msra.mxu0 %v525
  %785 = vmatprep.subr.bf16.mxu0 %v530
  %786 = vmatpush1.bf16.msra.mxu0 %v529
  %787 = vmatprep.subr.bf16.mxu0 %v646
  %788 = vmatpush1.bf16.msra.mxu0 %v643
  %789 = vmatprep.subr.bf16.mxu0 0
  %790 = vmatpush1.bf16.msra.mxu0 0
  %791 = vmatprep.subr.bf16.mxu0 0
  %792 = vmatpush1.bf16.msra.mxu0 0
  %793 = vmatprep.subr.bf16.mxu0 0
  %794 = vmatpush1.bf16.msra.mxu0 0
  %795 = vmatprep.subr.bf16.mxu0 0
  %796 = vmatpush1.bf16.msra.mxu0 0
  %797 = vmatprep.subr.bf16.mxu0 0
  %798 = vmatpush1.bf16.msra.mxu0 0
  %799 = vmatprep.subr.bf16.mxu0 0
  %800 = vmatpush1.bf16.msra.mxu0 0
  %801 = vmatprep.subr.bf16.mxu0 0
  %802 = vmatpush1.bf16.msra.mxu0 0
  %803 = vmatprep.mubr.bf16.mxu0 %v633
  %804 = vmatmul.mubr.bf16.gmra.mrb[0].mxu0 %v135
  %v805 = vpop.f32.mrb[0].mxu0
  %v806 = vadd.f32 %v765, %v805
  %v807 = vpop.f32.mrb[0].mxu0
  %v808 = vadd.f32 %v767, %v807
  %v809 = vpop.f32.mrb[0].mxu0
  %v810 = vpop.f32.mrb[0].mxu0
  %811 = vdwg.mxu0
  %v812 = vtanh.pop %v724
  %v813 = vtanh.pop %v726
  %v814 = vtanh.pop %v806
  %v815 = vtanh.pop %v808
  %v820 = vcombine.low %v812, %v813
  %v821 = vcombine.low %v814, %v815
  %824 = vst [vmem:[%s3] sm:$0x77] %v820
  %825 = vst [vmem:[%s3 + $0x8] sm:$0x77] %v821
  // Predicated region
  $region14: #{generator_forward.33} parent=0 // pred_check
    _
  $region15: #{generator_forward.33} parent=0 // pred_check_branch
    %827 = sbr.rel (0) target = $region17
  $region16: #{generator_forward.33} parent=0 // pred_region
    _
  $region17: #{generator_forward.33} parent=0 // pred_fallthru
    _
  // Predicated region
  $region18: #{generator_forward.33} parent=0 // pred_check
    _
  $region19: #{generator_forward.33} parent=0 // pred_check_branch
    %829 = sbr.rel (0) target = $region21
  $region20: #{generator_forward.33} parent=0 // pred_region
    _
  $region21: #{generator_forward.33} parent=0 // pred_fallthru
    _

</llo_original>
